<compile_context>
chip_gen: v7x
topology: tpu7x:2x2x1
jax: 0.10.0
libtpu: 0.0.40
codegen_flags: <defaults>
</compile_context>

<pallas_src>
import jax
import jax.numpy as jnp
from jax import lax
from jax.experimental import pallas as pl
from jax.experimental.pallas import tpu as pltpu

LANES = 128
_TK_CAP = 2048
_VMEM_LIMIT = 32 * 1024 * 1024   # safe on v5e (16 MiB default), v6e, v7x (64 MiB/TC)


def _round_up(x, m):
    return (x + m - 1) // m * m


def _kpad(k):
    kp = _round_up(k, LANES)
    if kp > _TK_CAP:
        kp = _round_up(k, _TK_CAP)
    return kp


# ---------------------------------------------------------------------------
# Kernel 1a: single-K-step   o = relu(x @ w + b)    (no scratch accumulator)
# ---------------------------------------------------------------------------
def _linear_relu_1k_kernel(x_ref, w_ref, b_ref, o_ref):
    y = jnp.dot(x_ref[...], w_ref[...], preferred_element_type=jnp.float32)
    o_ref[...] = jnp.maximum(y + b_ref[...], 0.0).astype(o_ref.dtype)


# ---------------------------------------------------------------------------
# Kernel 1b: multi-K fallback (accumulator initialized with the bias at k==0)
# ---------------------------------------------------------------------------
def _linear_relu_acc_kernel(x_ref, w_ref, b_ref, o_ref, acc_ref):
    @pl.when(pl.program_id(2) == 0)
    def _():
        acc_ref[...] = jnp.broadcast_to(b_ref[...], acc_ref.shape).astype(jnp.float32)

    acc_ref[...] += jnp.dot(x_ref[...], w_ref[...],
                            preferred_element_type=jnp.float32)

    @pl.when(pl.program_id(2) == pl.num_programs(2) - 1)
    def _():
        o_ref[...] = jnp.maximum(acc_ref[...], 0.0).astype(o_ref.dtype)


def linear_relu(x, w_pad, b_row, out_dtype=jnp.bfloat16):
    """x: (M, K); w_pad: (Kp, Np) bf16 (pre-padded); b_row: (1, Np) f32.
    Returns the padded (Mp, Np) result; the caller slices the valid region."""
    M, K = x.shape
    Kp, Np = w_pad.shape
    assert Kp >= K and Kp % LANES == 0 and Np % LANES == 0, (K, Kp, Np)
    assert b_row.shape == (1, Np), b_row.shape

    # Row tiling: small M -> single block; mid M -> 2 blocks so the "parallel"
    # M axis has work for both v7x TensorCores; large M -> 1024-row blocks.
    m8 = _round_up(max(M, 8), 8)
    if m8 <= 256:
        tm = m8
    elif m8 <= 2048:
        tm = _round_up((m8 + 1) // 2, 8)
    else:
        tm = 1024
    Mp = _round_up(M, tm)
    tn = LANES

    xp = x.astype(jnp.bfloat16)
    if (Mp, Kp) != (M, K):
        xp = jnp.pad(xp, ((0, Mp - M), (0, Kp - K)))

    if Kp <= _TK_CAP:  # single K step -> no scratch, direct compute + epilogue
        return pl.pallas_call(
            _linear_relu_1k_kernel,
            out_shape=jax.ShapeDtypeStruct((Mp, Np), out_dtype),
            grid_spec=pltpu.PrefetchScalarGridSpec(
                num_scalar_prefetch=0,
                grid=(Mp // tm, Np // tn),
                in_specs=[
                    pl.BlockSpec((tm, Kp), lambda i, j: (i, 0)),
                    pl.BlockSpec((Kp, tn), lambda i, j: (0, j)),
                    pl.BlockSpec((1, tn), lambda i, j: (0, j)),
                ],
                out_specs=pl.BlockSpec((tm, tn), lambda i, j: (i, j)),
            ),
            compiler_params=pltpu.CompilerParams(
                dimension_semantics=("parallel", "parallel"),
                vmem_limit_bytes=_VMEM_LIMIT),
        )(xp, w_pad, b_row)

    assert Kp % _TK_CAP == 0, Kp
    tk = _TK_CAP
    return pl.pallas_call(
        _linear_relu_acc_kernel,
        out_shape=jax.ShapeDtypeStruct((Mp, Np), out_dtype),
        grid_spec=pltpu.PrefetchScalarGridSpec(
            num_scalar_prefetch=0,
            grid=(Mp // tm, Np // tn, Kp // tk),
            in_specs=[
                pl.BlockSpec((tm, tk), lambda i, j, k: (i, k)),
                pl.BlockSpec((tk, tn), lambda i, j, k: (k, j)),
                pl.BlockSpec((1, tn), lambda i, j, k: (0, j)),
            ],
            out_specs=pl.BlockSpec((tm, tn), lambda i, j, k: (i, j)),
            scratch_shapes=[pltpu.VMEM((tm, tn), jnp.float32)],
        ),
        compiler_params=pltpu.CompilerParams(
            dimension_semantics=("parallel", "parallel", "arbitrary"),
            vmem_limit_bytes=_VMEM_LIMIT),
    )(xp, w_pad, b_row)


# ---------------------------------------------------------------------------
# Conv2d (VALID, square stride) = fused XLA patch producer + Pallas matmul
# ---------------------------------------------------------------------------
def conv2d_relu(x_nhwc, w_mat, b_row, k, stride, out_channels):
    n, h, w, c = x_nhwc.shape
    patches = lax.conv_general_dilated_patches(
        x_nhwc, (k, k), (stride, stride), "VALID",
        dimension_numbers=("NHWC", "HWIO", "NHWC"))
    # patches: (n, oh, ow, c*k*k); feature order = (c, kh, kw), c slowest.
    oh, ow = patches.shape[1], patches.shape[2]
    rows = n * oh * ow
    out = linear_relu(patches.reshape(rows, c * k * k), w_mat, b_row)
    return out[:rows, :out_channels].reshape(n, oh, ow, out_channels)


# ---------------------------------------------------------------------------
# Kernel 2: fused conv3 + fc4 + fc5  (everything after conv2 in one call)
#   rows of p3 are ordered (spatial position, padded batch) so fc4 can slice
#   8-aligned row blocks instead of doing an in-kernel NHWC flatten.
# ---------------------------------------------------------------------------
def _conv3_fc_kernel(p3_ref, w3_ref, b3_ref, w4_ref, b4_ref, w5_ref, b5_ref, o_ref):
    # conv3 as a single MXU matmul + bias + ReLU.
    h3 = jnp.dot(p3_ref[...], w3_ref[...], preferred_element_type=jnp.float32)
    h3 = jnp.maximum(h3 + b3_ref[...], 0.0).astype(jnp.bfloat16)

    # fc4 over the flattened conv3 output = sum over spatial positions of a
    # per-position (Bp, C3) @ (C3, 32pad) matmul; the 32-wide activation never
    # leaves vregs/VMEM.
    npos = w4_ref.shape[0]
    bp = o_ref.shape[0]
    acc = jnp.zeros(o_ref.shape, jnp.float32)
    for p in range(npos):                       # static unroll (npos == 9)
        acc = acc + jnp.dot(h3[p * bp:(p + 1) * bp, :], w4_ref[p],
                            preferred_element_type=jnp.float32)
    h4 = jnp.maximum(acc + b4_ref[...], 0.0).astype(jnp.bfloat16)

    # fc5 epilogue.  NOTE: the original module applies ReLU to fc5's output.
    q = jnp.dot(h4, w5_ref[...], preferred_element_type=jnp.float32) + b5_ref[...]
    o_ref[...] = jnp.maximum(q, 0.0)


def conv3_fc_fused(x_nhwc, pp, k, num_actions):
    n = x_nhwc.shape[0]
    patches = lax.conv_general_dilated_patches(
        x_nhwc, (k, k), (1, 1), "VALID",
        dimension_numbers=("NHWC", "HWIO", "NHWC"))
    oh, ow, ckk = patches.shape[1], patches.shape[2], patches.shape[3]
    npos = oh * ow

    w3, b3 = pp["conv3_wm"], pp["conv3_b"]
    w4g, b4 = pp["fc4_wg"], pp["fc4_b"]
    w5, b5 = pp["fc5_wm"], pp["fc5_b"]
    kp = w3.shape[0]
    assert kp >= ckk and w4g.shape[0] == npos, (kp, ckk, w4g.shape, npos)

    bp = _round_up(max(n, 8), 8)
    # Reorder rows to (position, padded-batch); pads contribute only to rows
    # that are sliced away at the end.
    p3 = patches.reshape(n, npos, ckk).transpose(1, 0, 2).astype(jnp.bfloat16)
    p3 = jnp.pad(p3, ((0, 0), (0, bp - n), (0, kp - ckk))).reshape(npos * bp, kp)
    rows = npos * bp

    out = pl.pallas_call(
        _conv3_fc_kernel,
        out_shape=jax.ShapeDtypeStruct((bp, LANES), jnp.float32),
        grid_spec=pltpu.PrefetchScalarGridSpec(
            num_scalar_prefetch=0,
            grid=(1,),
            in_specs=[
                pl.BlockSpec((rows, kp), lambda i: (0, 0)),
                pl.BlockSpec(w3.shape, lambda i: (0, 0)),
                pl.BlockSpec((1, LANES), lambda i: (0, 0)),
                pl.BlockSpec(w4g.shape, lambda i: (0, 0, 0)),
                pl.BlockSpec((1, LANES), lambda i: (0, 0)),
                pl.BlockSpec(w5.shape, lambda i: (0, 0)),
                pl.BlockSpec((1, LANES), lambda i: (0, 0)),
            ],
            out_specs=pl.BlockSpec((bp, LANES), lambda i: (0, 0)),
        ),
        compiler_params=pltpu.CompilerParams(
            dimension_semantics=("arbitrary",),
            vmem_limit_bytes=_VMEM_LIMIT),
    )(p3, w3, b3, w4g, b4, w5, b5)
    return out[:n, :num_actions]


# ---------------------------------------------------------------------------
# Parameters (PyTorch layout) + one-time layout/pad/bf16 prep for Pallas
# ---------------------------------------------------------------------------
def init_params(key, in_spatial, num_actions=9):
    def out_sz(s, ksz, st):
        return (s - ksz) // st + 1

    s1 = out_sz(in_spatial, 8, 4)
    s2 = out_sz(s1, 4, 2)
    s3 = out_sz(s2, 4, 1)
    fc4_in = 128 * s3 * s3

    ks = jax.random.split(key, 10)

    def norm(k, shape, scale=0.05):
        return scale * jax.random.normal(k, shape, dtype=jnp.float32)

    return dict(
        conv1_w=norm(ks[0], (32, 4, 8, 8)),
        conv1_b=norm(ks[1], (32,)),
        conv2_w=norm(ks[2], (64, 32, 4, 4)),
        conv2_b=norm(ks[3], (64,)),
        conv3_w=norm(ks[4], (128, 64, 4, 4)),
        conv3_b=norm(ks[5], (128,)),
        fc4_w=norm(ks[6], (32, fc4_in)),   # PyTorch Linear: (out, in), NCHW flatten
        fc4_b=norm(ks[7], (32,)),
        fc5_w=norm(ks[8], (num_actions, 32)),
        fc5_b=norm(ks[9], (num_actions,)),
    )


def prepare_params(p, conv3_hw):
    """One-time (outside the hot path) weight reorder + pad + bf16 cast."""
    h3, w3 = conv3_hw

    def conv_mat(w_oihw):
        # (O,I,KH,KW) -> (I,KH,KW,O) -> (I*KH*KW, O): matches patch feature order,
        # padded to (Kp, 128*m) so no per-forward weight padding is needed.
        o, i, kh, kw = w_oihw.shape
        k_dim = i * kh * kw
        m = jnp.transpose(w_oihw, (1, 2, 3, 0)).reshape(k_dim, o)
        kp, np_ = _kpad(k_dim), _round_up(o, LANES)
        return jnp.pad(m, ((0, kp - k_dim), (0, np_ - o))).astype(jnp.bfloat16)

    def bias_row(b):
        n = b.shape[0]
        return jnp.pad(b.astype(jnp.float32),
                       (0, _round_up(n, LANES) - n)).reshape(1, -1)

    c3 = p["conv3_w"].shape[0]
    n4, fc4_in = p["fc4_w"].shape
    n5 = p["fc5_w"].shape[0]
    assert fc4_in == c3 * h3 * w3, (fc4_in, c3, h3, w3)
    assert n4 <= LANES and n5 <= LANES, (n4, n5)
    c3p = _round_up(c3, LANES)

    # fc4: permute the input dim from NCHW-flatten to (position, channel) groups
    # matching conv3's NHWC matmul output; grouped as (npos, C3pad, 128).
    w4g = (p["fc4_w"].reshape(n4, c3, h3, w3)
           .transpose(2, 3, 1, 0)                 # (h3, w3, c3, n4)
           .reshape(h3 * w3, c3, n4))
    w4g = jnp.pad(w4g, ((0, 0), (0, c3p - c3), (0, LANES - n4))).astype(jnp.bfloat16)

    w5m = jnp.pad(p["fc5_w"].T,
                  ((0, LANES - n4), (0, LANES - n5))).astype(jnp.bfloat16)

    return dict(
        conv1_wm=conv_mat(p["conv1_w"]), conv1_b=bias_row(p["conv1_b"]),
        conv2_wm=conv_mat(p["conv2_w"]), conv2_b=bias_row(p["conv2_b"]),
        conv3_wm=conv_mat(p["conv3_w"]), conv3_b=bias_row(p["conv3_b"]),
        fc4_wg=w4g, fc4_b=bias_row(p["fc4_b"]),
        fc5_wm=w5m, fc5_b=bias_row(p["fc5_b"]),
    )


# ---------------------------------------------------------------------------
# Forward pass (Pallas hot path): 3 pallas_calls total
# ---------------------------------------------------------------------------
def deep_q_turtle_forward(pp, x_nchw, *, num_actions=9):
    x = jnp.transpose(x_nchw, (0, 2, 3, 1)).astype(jnp.bfloat16)  # NCHW -> NHWC once
    x = conv2d_relu(x, pp["conv1_wm"], pp["conv1_b"], k=8, stride=4, out_channels=32)
    x = conv2d_relu(x, pp["conv2_wm"], pp["conv2_b"], k=4, stride=2, out_channels=64)
    return conv3_fc_fused(x, pp, k=4, num_actions=num_actions)


# Pure-JAX reference (lax conv), mirrors the bf16-operand / f32-accum numerics.
def reference_forward(params, x):
    dn = ("NCHW", "OIHW", "NCHW")

    def conv(x, w, b, s):
        y = lax.conv_general_dilated(
            x.astype(jnp.bfloat16), w.astype(jnp.bfloat16), (s, s), "VALID",
            dimension_numbers=dn, preferred_element_type=jnp.float32)
        return jnp.maximum(y + b[None, :, None, None], 0.0)

    x = conv(x, params["conv1_w"], params["conv1_b"], 4)
    x = conv(x, params["conv2_w"], params["conv2_b"], 2)
    x = conv(x, params["conv3_w"], params["conv3_b"], 1)
    x = x.reshape(x.shape[0], -1)
    h = jnp.maximum(
        jnp.dot(x.astype(jnp.bfloat16), params["fc4_w"].T.astype(jnp.bfloat16),
                preferred_element_type=jnp.float32) + params["fc4_b"], 0.0)
    q = jnp.maximum(
        jnp.dot(h.astype(jnp.bfloat16), params["fc5_w"].T.astype(jnp.bfloat16),
                preferred_element_type=jnp.float32) + params["fc5_b"], 0.0)
    return q


if __name__ == "__main__":
    key = jax.random.PRNGKey(0)
    kx, kp = jax.random.split(key)

    # Smallest convenient NCHW shape that survives the 8/4, 4/2, 4/1 conv stack.
    B, C, S = 2, 4, 64
    x = jax.random.normal(kx, (B, C, S, S), dtype=jnp.float32)
    params = init_params(kp, S, num_actions=9)

    s1 = (S - 8) // 4 + 1
    s2 = (s1 - 4) // 2 + 1
    s3 = (s2 - 4) // 1 + 1
    prepped = prepare_params(params, (s3, s3))   # one-time layout prep

    fwd = jax.jit(deep_q_turtle_forward)
    out = jax.block_until_ready(fwd(prepped, x))
    ref = jax.block_until_ready(reference_forward(params, x))

    assert out.shape == (B, 9), out.shape
    if not bool(jnp.allclose(out, ref, atol=2e-2, rtol=2e-2)):
        raise AssertionError("Pallas output does not match JAX reference")

    print("KERNEL_OK")
</pallas_src>

<mosaic_0001>
module attributes {stable_mosaic.version = 11 : i64} {
  func.func @_linear_relu_1k_kernel(%arg0: i32, %arg1: i32, %arg2: memref<232x256xbf16, #tpu.memory_space<vmem>>, %arg3: memref<256x128xbf16, #tpu.memory_space<vmem>>, %arg4: memref<1x128xf32, #tpu.memory_space<vmem>>, %arg5: memref<232x128xbf16, #tpu.memory_space<vmem>>) attributes {dimension_semantics = [#tpu.dimension_semantics<parallel>, #tpu.dimension_semantics<parallel>], iteration_bounds = array<i64: 2, 1>, scalar_prefetch = 0 : i64, scratch_operands = 0 : i64, tpu.core_type = #tpu.core_type<tc>, window_params = [{transform_indices = @transform_0, window_bounds = array<i64: 232, 256>}, {transform_indices = @transform_1, window_bounds = array<i64: 256, 128>}, {transform_indices = @transform_2, window_bounds = array<i64: 1, 128>}, {transform_indices = @transform_3, window_bounds = array<i64: 232, 128>}]} {
    %c0 = arith.constant 0 : index
    %c0_0 = arith.constant 0 : index
    %0 = vector.load %arg2[%c0, %c0_0] : memref<232x256xbf16, #tpu.memory_space<vmem>>, vector<232x256xbf16>
    %c0_1 = arith.constant 0 : index
    %c0_2 = arith.constant 0 : index
    %1 = vector.load %arg3[%c0_1, %c0_2] : memref<256x128xbf16, #tpu.memory_space<vmem>>, vector<256x128xbf16>
    %cst = arith.constant dense<0.000000e+00> : vector<232x128xf32>
    %2 = tpu.matmul %0, %1, %cst {dimension_numbers = #tpu.dot_dimension_numbers<[1], [0], [0], [1], [0, 0, 1, 1], [], []>} : vector<232x256xbf16>, vector<256x128xbf16>, vector<232x128xf32> -> vector<232x128xf32>
    %c0_3 = arith.constant 0 : index
    %c0_4 = arith.constant 0 : index
    %3 = vector.load %arg4[%c0_3, %c0_4] : memref<1x128xf32, #tpu.memory_space<vmem>>, vector<1x128xf32>
    %4 = vector.broadcast %3 : vector<1x128xf32> to vector<232x128xf32>
    %5 = arith.addf %2, %4 : vector<232x128xf32>
    %cst_5 = arith.constant 0.000000e+00 : f32
    %6 = vector.broadcast %cst_5 : f32 to vector<232x128xf32>
    %7 = arith.maximumf %5, %6 : vector<232x128xf32>
    %8 = arith.truncf %7 : vector<232x128xf32> to vector<232x128xbf16>
    %c0_6 = arith.constant 0 : index
    %c0_7 = arith.constant 0 : index
    %9 = vector.load %arg5[%c0_6, %c0_7] : memref<232x128xbf16, #tpu.memory_space<vmem>>, vector<232x128xbf16>
    tpu.vector_store %arg5[%c0_6, %c0_7], %8 {strides = array<i32>} : memref<232x128xbf16, #tpu.memory_space<vmem>>, vector<232x128xbf16>,
    return
  }
  func.func @transform_0(%arg0: i32, %arg1: i32) -> (i32, i32) {
    %c0_i32 = arith.constant 0 : i32
    %c0_i32_0 = arith.constant 0 : i32
    return %arg0, %c0_i32 : i32, i32
  }
  func.func @transform_1(%arg0: i32, %arg1: i32) -> (i32, i32) {
    %c0_i32 = arith.constant 0 : i32
    %c0_i32_0 = arith.constant 0 : i32
    return %c0_i32, %arg1 : i32, i32
  }
  func.func @transform_2(%arg0: i32, %arg1: i32) -> (i32, i32) {
    %c0_i32 = arith.constant 0 : i32
    %c0_i32_0 = arith.constant 0 : i32
    return %c0_i32, %arg1 : i32, i32
  }
  func.func @transform_3(%arg0: i32, %arg1: i32) -> (i32, i32) {
    %c0_i32 = arith.constant 0 : i32
    return %arg0, %arg1 : i32, i32
  }
}

module attributes {stable_mosaic.version = 11 : i64} {
  func.func @_linear_relu_1k_kernel(%arg0: i32, %arg1: i32, %arg2: memref<72x512xbf16, #tpu.memory_space<vmem>>, %arg3: memref<512x128xbf16, #tpu.memory_space<vmem>>, %arg4: memref<1x128xf32, #tpu.memory_space<vmem>>, %arg5: memref<72x128xbf16, #tpu.memory_space<vmem>>) attributes {dimension_semantics = [#tpu.dimension_semantics<parallel>, #tpu.dimension_semantics<parallel>], iteration_bounds = array<i64: 1, 1>, scalar_prefetch = 0 : i64, scratch_operands = 0 : i64, tpu.core_type = #tpu.core_type<tc>, window_params = [{transform_indices = @transform_0, window_bounds = array<i64: 72, 512>}, {transform_indices = @transform_1, window_bounds = array<i64: 512, 128>}, {transform_indices = @transform_2, window_bounds = array<i64: 1, 128>}, {transform_indices = @transform_3, window_bounds = array<i64: 72, 128>}]} {
    %c0 = arith.constant 0 : index
    %c0_0 = arith.constant 0 : index
    %0 = vector.load %arg2[%c0, %c0_0] : memref<72x512xbf16, #tpu.memory_space<vmem>>, vector<72x512xbf16>
    %c0_1 = arith.constant 0 : index
    %c0_2 = arith.constant 0 : index
    %1 = vector.load %arg3[%c0_1, %c0_2] : memref<512x128xbf16, #tpu.memory_space<vmem>>, vector<512x128xbf16>
    %cst = arith.constant dense<0.000000e+00> : vector<72x128xf32>
    %2 = tpu.matmul %0, %1, %cst {dimension_numbers = #tpu.dot_dimension_numbers<[1], [0], [0], [1], [0, 0, 1, 1], [], []>} : vector<72x512xbf16>, vector<512x128xbf16>, vector<72x128xf32> -> vector<72x128xf32>
    %c0_3 = arith.constant 0 : index
    %c0_4 = arith.constant 0 : index
    %3 = vector.load %arg4[%c0_3, %c0_4] : memref<1x128xf32, #tpu.memory_space<vmem>>, vector<1x128xf32>
    %4 = vector.broadcast %3 : vector<1x128xf32> to vector<72x128xf32>
    %5 = arith.addf %2, %4 : vector<72x128xf32>
    %cst_5 = arith.constant 0.000000e+00 : f32
    %6 = vector.broadcast %cst_5 : f32 to vector<72x128xf32>
    %7 = arith.maximumf %5, %6 : vector<72x128xf32>
    %8 = arith.truncf %7 : vector<72x128xf32> to vector<72x128xbf16>
    %c0_6 = arith.constant 0 : index
    %c0_7 = arith.constant 0 : index
    %9 = vector.load %arg5[%c0_6, %c0_7] : memref<72x128xbf16, #tpu.memory_space<vmem>>, vector<72x128xbf16>
    tpu.vector_store %arg5[%c0_6, %c0_7], %8 {strides = array<i32>} : memref<72x128xbf16, #tpu.memory_space<vmem>>, vector<72x128xbf16>,
    return
  }
  func.func @transform_0(%arg0: i32, %arg1: i32) -> (i32, i32) {
    %c0_i32 = arith.constant 0 : i32
    %c0_i32_0 = arith.constant 0 : i32
    return %arg0, %c0_i32 : i32, i32
  }
  func.func @transform_1(%arg0: i32, %arg1: i32) -> (i32, i32) {
    %c0_i32 = arith.constant 0 : i32
    %c0_i32_0 = arith.constant 0 : i32
    return %c0_i32, %arg1 : i32, i32
  }
  func.func @transform_2(%arg0: i32, %arg1: i32) -> (i32, i32) {
    %c0_i32 = arith.constant 0 : i32
    %c0_i32_0 = arith.constant 0 : i32
    return %c0_i32, %arg1 : i32, i32
  }
  func.func @transform_3(%arg0: i32, %arg1: i32) -> (i32, i32) {
    %c0_i32 = arith.constant 0 : i32
    return %arg0, %arg1 : i32, i32
  }
}

module attributes {stable_mosaic.version = 11 : i64} {
  func.func @_conv3_fc_kernel(%arg0: i32, %arg1: memref<72x1024xbf16, #tpu.memory_space<vmem>>, %arg2: memref<1024x128xbf16, #tpu.memory_space<vmem>>, %arg3: memref<1x128xf32, #tpu.memory_space<vmem>>, %arg4: memref<9x128x128xbf16, #tpu.memory_space<vmem>>, %arg5: memref<1x128xf32, #tpu.memory_space<vmem>>, %arg6: memref<128x128xbf16, #tpu.memory_space<vmem>>, %arg7: memref<1x128xf32, #tpu.memory_space<vmem>>, %arg8: memref<8x128xf32, #tpu.memory_space<vmem>>) attributes {dimension_semantics = [#tpu.dimension_semantics<arbitrary>], iteration_bounds = array<i64: 1>, scalar_prefetch = 0 : i64, scratch_operands = 0 : i64, tpu.core_type = #tpu.core_type<tc>, window_params = [{pipeline_mode = #tpu.pipeline_mode<synchronous>, transform_indices = @transform_0, window_bounds = array<i64: 72, 1024>}, {pipeline_mode = #tpu.pipeline_mode<synchronous>, transform_indices = @transform_1, window_bounds = array<i64: 1024, 128>}, {pipeline_mode = #tpu.pipeline_mode<synchronous>, transform_indices = @transform_2, window_bounds = array<i64: 1, 128>}, {pipeline_mode = #tpu.pipeline_mode<synchronous>, transform_indices = @transform_3, window_bounds = array<i64: 9, 128, 128>}, {pipeline_mode = #tpu.pipeline_mode<synchronous>, transform_indices = @transform_4, window_bounds = array<i64: 1, 128>}, {pipeline_mode = #tpu.pipeline_mode<synchronous>, transform_indices = @transform_5, window_bounds = array<i64: 128, 128>}, {pipeline_mode = #tpu.pipeline_mode<synchronous>, transform_indices = @transform_6, window_bounds = array<i64: 1, 128>}, {pipeline_mode = #tpu.pipeline_mode<synchronous>, transform_indices = @transform_7, window_bounds = array<i64: 8, 128>}]} {
    %c0 = arith.constant 0 : index
    %c0_0 = arith.constant 0 : index
    %0 = vector.load %arg1[%c0, %c0_0] : memref<72x1024xbf16, #tpu.memory_space<vmem>>, vector<72x1024xbf16>
    %c0_1 = arith.constant 0 : index
    %c0_2 = arith.constant 0 : index
    %1 = vector.load %arg2[%c0_1, %c0_2] : memref<1024x128xbf16, #tpu.memory_space<vmem>>, vector<1024x128xbf16>
    %cst = arith.constant dense<0.000000e+00> : vector<72x128xf32>
    %2 = tpu.matmul %0, %1, %cst {dimension_numbers = #tpu.dot_dimension_numbers<[1], [0], [0], [1], [0, 0, 1, 1], [], []>} : vector<72x1024xbf16>, vector<1024x128xbf16>, vector<72x128xf32> -> vector<72x128xf32>
    %c0_3 = arith.constant 0 : index
    %c0_4 = arith.constant 0 : index
    %3 = vector.load %arg3[%c0_3, %c0_4] : memref<1x128xf32, #tpu.memory_space<vmem>>, vector<1x128xf32>
    %4 = vector.broadcast %3 : vector<1x128xf32> to vector<72x128xf32>
    %5 = arith.addf %2, %4 : vector<72x128xf32>
    %cst_5 = arith.constant 0.000000e+00 : f32
    %6 = vector.broadcast %cst_5 : f32 to vector<72x128xf32>
    %7 = arith.maximumf %5, %6 : vector<72x128xf32>
    %8 = arith.truncf %7 : vector<72x128xf32> to vector<72x128xbf16>
    %cst_6 = arith.constant 0.000000e+00 : f32
    %9 = vector.broadcast %cst_6 : f32 to vector<8x128xf32>
    %10 = vector.extract_strided_slice %8 {offsets = [0, 0], sizes = [8, 128], strides = [1, 1]} : vector<72x128xbf16> to vector<8x128xbf16>
    %c0_7 = arith.constant 0 : index
    %c0_8 = arith.constant 0 : index
    %c0_9 = arith.constant 0 : index
    %11 = vector.load %arg4[%c0_7, %c0_8, %c0_9] : memref<9x128x128xbf16, #tpu.memory_space<vmem>>, vector<1x128x128xbf16>
    %12 = vector.shape_cast %11 : vector<1x128x128xbf16> to vector<128x128xbf16>
    %cst_10 = arith.constant dense<0.000000e+00> : vector<8x128xf32>
    %13 = tpu.matmul %10, %12, %cst_10 {dimension_numbers = #tpu.dot_dimension_numbers<[1], [0], [0], [1], [0, 0, 1, 1], [], []>} : vector<8x128xbf16>, vector<128x128xbf16>, vector<8x128xf32> -> vector<8x128xf32>
    %14 = arith.addf %9, %13 : vector<8x128xf32>
    %15 = vector.extract_strided_slice %8 {offsets = [8, 0], sizes = [8, 128], strides = [1, 1]} : vector<72x128xbf16> to vector<8x128xbf16>
    %c1 = arith.constant 1 : index
    %c0_11 = arith.constant 0 : index
    %c0_12 = arith.constant 0 : index
    %16 = vector.load %arg4[%c1, %c0_11, %c0_12] : memref<9x128x128xbf16, #tpu.memory_space<vmem>>, vector<1x128x128xbf16>
    %17 = vector.shape_cast %16 : vector<1x128x128xbf16> to vector<128x128xbf16>
    %cst_13 = arith.constant dense<0.000000e+00> : vector<8x128xf32>
    %18 = tpu.matmul %15, %17, %cst_13 {dimension_numbers = #tpu.dot_dimension_numbers<[1], [0], [0], [1], [0, 0, 1, 1], [], []>} : vector<8x128xbf16>, vector<128x128xbf16>, vector<8x128xf32> -> vector<8x128xf32>
    %19 = arith.addf %14, %18 : vector<8x128xf32>
    %20 = vector.extract_strided_slice %8 {offsets = [16, 0], sizes = [8, 128], strides = [1, 1]} : vector<72x128xbf16> to vector<8x128xbf16>
    %c2 = arith.constant 2 : index
    %c0_14 = arith.constant 0 : index
    %c0_15 = arith.constant 0 : index
    %21 = vector.load %arg4[%c2, %c0_14, %c0_15] : memref<9x128x128xbf16, #tpu.memory_space<vmem>>, vector<1x128x128xbf16>
    %22 = vector.shape_cast %21 : vector<1x128x128xbf16> to vector<128x128xbf16>
    %cst_16 = arith.constant dense<0.000000e+00> : vector<8x128xf32>
    %23 = tpu.matmul %20, %22, %cst_16 {dimension_numbers = #tpu.dot_dimension_numbers<[1], [0], [0], [1], [0, 0, 1, 1], [], []>} : vector<8x128xbf16>, vector<128x128xbf16>, vector<8x128xf32> -> vector<8x128xf32>
    %24 = arith.addf %19, %23 : vector<8x128xf32>
    %25 = vector.extract_strided_slice %8 {offsets = [24, 0], sizes = [8, 128], strides = [1, 1]} : vector<72x128xbf16> to vector<8x128xbf16>
    %c3 = arith.constant 3 : index
    %c0_17 = arith.constant 0 : index
    %c0_18 = arith.constant 0 : index
    %26 = vector.load %arg4[%c3, %c0_17, %c0_18] : memref<9x128x128xbf16, #tpu.memory_space<vmem>>, vector<1x128x128xbf16>
    %27 = vector.shape_cast %26 : vector<1x128x128xbf16> to vector<128x128xbf16>
    %cst_19 = arith.constant dense<0.000000e+00> : vector<8x128xf32>
    %28 = tpu.matmul %25, %27, %cst_19 {dimension_numbers = #tpu.dot_dimension_numbers<[1], [0], [0], [1], [0, 0, 1, 1], [], []>} : vector<8x128xbf16>, vector<128x128xbf16>, vector<8x128xf32> -> vector<8x128xf32>
    %29 = arith.addf %24, %28 : vector<8x128xf32>
    %30 = vector.extract_strided_slice %8 {offsets = [32, 0], sizes = [8, 128], strides = [1, 1]} : vector<72x128xbf16> to vector<8x128xbf16>
    %c4 = arith.constant 4 : index
    %c0_20 = arith.constant 0 : index
    %c0_21 = arith.constant 0 : index
    %31 = vector.load %arg4[%c4, %c0_20, %c0_21] : memref<9x128x128xbf16, #tpu.memory_space<vmem>>, vector<1x128x128xbf16>
    %32 = vector.shape_cast %31 : vector<1x128x128xbf16> to vector<128x128xbf16>
    %cst_22 = arith.constant dense<0.000000e+00> : vector<8x128xf32>
    %33 = tpu.matmul %30, %32, %cst_22 {dimension_numbers = #tpu.dot_dimension_numbers<[1], [0], [0], [1], [0, 0, 1, 1], [], []>} : vector<8x128xbf16>, vector<128x128xbf16>, vector<8x128xf32> -> vector<8x128xf32>
    %34 = arith.addf %29, %33 : vector<8x128xf32>
    %35 = vector.extract_strided_slice %8 {offsets = [40, 0], sizes = [8, 128], strides = [1, 1]} : vector<72x128xbf16> to vector<8x128xbf16>
    %c5 = arith.constant 5 : index
    %c0_23 = arith.constant 0 : index
    %c0_24 = arith.constant 0 : index
    %36 = vector.load %arg4[%c5, %c0_23, %c0_24] : memref<9x128x128xbf16, #tpu.memory_space<vmem>>, vector<1x128x128xbf16>
    %37 = vector.shape_cast %36 : vector<1x128x128xbf16> to vector<128x128xbf16>
    %cst_25 = arith.constant dense<0.000000e+00> : vector<8x128xf32>
    %38 = tpu.matmul %35, %37, %cst_25 {dimension_numbers = #tpu.dot_dimension_numbers<[1], [0], [0], [1], [0, 0, 1, 1], [], []>} : vector<8x128xbf16>, vector<128x128xbf16>, vector<8x128xf32> -> vector<8x128xf32>
    %39 = arith.addf %34, %38 : vector<8x128xf32>
    %40 = vector.extract_strided_slice %8 {offsets = [48, 0], sizes = [8, 128], strides = [1, 1]} : vector<72x128xbf16> to vector<8x128xbf16>
    %c6 = arith.constant 6 : index
    %c0_26 = arith.constant 0 : index
    %c0_27 = arith.constant 0 : index
    %41 = vector.load %arg4[%c6, %c0_26, %c0_27] : memref<9x128x128xbf16, #tpu.memory_space<vmem>>, vector<1x128x128xbf16>
    %42 = vector.shape_cast %41 : vector<1x128x128xbf16> to vector<128x128xbf16>
    %cst_28 = arith.constant dense<0.000000e+00> : vector<8x128xf32>
    %43 = tpu.matmul %40, %42, %cst_28 {dimension_numbers = #tpu.dot_dimension_numbers<[1], [0], [0], [1], [0, 0, 1, 1], [], []>} : vector<8x128xbf16>, vector<128x128xbf16>, vector<8x128xf32> -> vector<8x128xf32>
    %44 = arith.addf %39, %43 : vector<8x128xf32>
    %45 = vector.extract_strided_slice %8 {offsets = [56, 0], sizes = [8, 128], strides = [1, 1]} : vector<72x128xbf16> to vector<8x128xbf16>
    %c7 = arith.constant 7 : index
    %c0_29 = arith.constant 0 : index
    %c0_30 = arith.constant 0 : index
    %46 = vector.load %arg4[%c7, %c0_29, %c0_30] : memref<9x128x128xbf16, #tpu.memory_space<vmem>>, vector<1x128x128xbf16>
    %47 = vector.shape_cast %46 : vector<1x128x128xbf16> to vector<128x128xbf16>
    %cst_31 = arith.constant dense<0.000000e+00> : vector<8x128xf32>
    %48 = tpu.matmul %45, %47, %cst_31 {dimension_numbers = #tpu.dot_dimension_numbers<[1], [0], [0], [1], [0, 0, 1, 1], [], []>} : vector<8x128xbf16>, vector<128x128xbf16>, vector<8x128xf32> -> vector<8x128xf32>
    %49 = arith.addf %44, %48 : vector<8x128xf32>
    %50 = vector.extract_strided_slice %8 {offsets = [64, 0], sizes = [8, 128], strides = [1, 1]} : vector<72x128xbf16> to vector<8x128xbf16>
    %c8 = arith.constant 8 : index
    %c0_32 = arith.constant 0 : index
    %c0_33 = arith.constant 0 : index
    %51 = vector.load %arg4[%c8, %c0_32, %c0_33] : memref<9x128x128xbf16, #tpu.memory_space<vmem>>, vector<1x128x128xbf16>
    %52 = vector.shape_cast %51 : vector<1x128x128xbf16> to vector<128x128xbf16>
    %cst_34 = arith.constant dense<0.000000e+00> : vector<8x128xf32>
    %53 = tpu.matmul %50, %52, %cst_34 {dimension_numbers = #tpu.dot_dimension_numbers<[1], [0], [0], [1], [0, 0, 1, 1], [], []>} : vector<8x128xbf16>, vector<128x128xbf16>, vector<8x128xf32> -> vector<8x128xf32>
    %54 = arith.addf %49, %53 : vector<8x128xf32>
    %c0_35 = arith.constant 0 : index
    %c0_36 = arith.constant 0 : index
    %55 = vector.load %arg5[%c0_35, %c0_36] : memref<1x128xf32, #tpu.memory_space<vmem>>, vector<1x128xf32>
    %56 = vector.broadcast %55 : vector<1x128xf32> to vector<8x128xf32>
    %57 = arith.addf %54, %56 : vector<8x128xf32>
    %cst_37 = arith.constant 0.000000e+00 : f32
    %58 = vector.broadcast %cst_37 : f32 to vector<8x128xf32>
    %59 = arith.maximumf %57, %58 : vector<8x128xf32>
    %60 = arith.truncf %59 : vector<8x128xf32> to vector<8x128xbf16>
    %c0_38 = arith.constant 0 : index
    %c0_39 = arith.constant 0 : index
    %61 = vector.load %arg6[%c0_38, %c0_39] : memref<128x128xbf16, #tpu.memory_space<vmem>>, vector<128x128xbf16>
    %cst_40 = arith.constant dense<0.000000e+00> : vector<8x128xf32>
    %62 = tpu.matmul %60, %61, %cst_40 {dimension_numbers = #tpu.dot_dimension_numbers<[1], [0], [0], [1], [0, 0, 1, 1], [], []>} : vector<8x128xbf16>, vector<128x128xbf16>, vector<8x128xf32> -> vector<8x128xf32>
    %c0_41 = arith.constant 0 : index
    %c0_42 = arith.constant 0 : index
    %63 = vector.load %arg7[%c0_41, %c0_42] : memref<1x128xf32, #tpu.memory_space<vmem>>, vector<1x128xf32>
    %64 = vector.broadcast %63 : vector<1x128xf32> to vector<8x128xf32>
    %65 = arith.addf %62, %64 : vector<8x128xf32>
    %cst_43 = arith.constant 0.000000e+00 : f32
    %66 = vector.broadcast %cst_43 : f32 to vector<8x128xf32>
    %67 = arith.maximumf %65, %66 : vector<8x128xf32>
    %c0_44 = arith.constant 0 : index
    %c0_45 = arith.constant 0 : index
    %68 = vector.load %arg8[%c0_44, %c0_45] : memref<8x128xf32, #tpu.memory_space<vmem>>, vector<8x128xf32>
    tpu.vector_store %arg8[%c0_44, %c0_45], %67 {strides = array<i32>} : memref<8x128xf32, #tpu.memory_space<vmem>>, vector<8x128xf32>,
    return
  }
  func.func @transform_0(%arg0: i32) -> (i32, i32) {
    %c0_i32 = arith.constant 0 : i32
    %c0_i32_0 = arith.constant 0 : i32
    %c0_i32_1 = arith.constant 0 : i32
    return %c0_i32, %c0_i32_0 : i32, i32
  }
  func.func @transform_1(%arg0: i32) -> (i32, i32) {
    %c0_i32 = arith.constant 0 : i32
    %c0_i32_0 = arith.constant 0 : i32
    %c0_i32_1 = arith.constant 0 : i32
    return %c0_i32, %c0_i32_0 : i32, i32
  }
  func.func @transform_2(%arg0: i32) -> (i32, i32) {
    %c0_i32 = arith.constant 0 : i32
    %c0_i32_0 = arith.constant 0 : i32
    %c0_i32_1 = arith.constant 0 : i32
    return %c0_i32, %c0_i32_0 : i32, i32
  }
  func.func @transform_3(%arg0: i32) -> (i32, i32, i32) {
    %c0_i32 = arith.constant 0 : i32
    %c0_i32_0 = arith.constant 0 : i32
    %c0_i32_1 = arith.constant 0 : i32
    %c0_i32_2 = arith.constant 0 : i32
    return %c0_i32, %c0_i32_0, %c0_i32_1 : i32, i32, i32
  }
  func.func @transform_4(%arg0: i32) -> (i32, i32) {
    %c0_i32 = arith.constant 0 : i32
    %c0_i32_0 = arith.constant 0 : i32
    %c0_i32_1 = arith.constant 0 : i32
    return %c0_i32, %c0_i32_0 : i32, i32
  }
  func.func @transform_5(%arg0: i32) -> (i32, i32) {
    %c0_i32 = arith.constant 0 : i32
    %c0_i32_0 = arith.constant 0 : i32
    %c0_i32_1 = arith.constant 0 : i32
    return %c0_i32, %c0_i32_0 : i32, i32
  }
  func.func @transform_6(%arg0: i32) -> (i32, i32) {
    %c0_i32 = arith.constant 0 : i32
    %c0_i32_0 = arith.constant 0 : i32
    %c0_i32_1 = arith.constant 0 : i32
    return %c0_i32, %c0_i32_0 : i32, i32
  }
  func.func @transform_7(%arg0: i32) -> (i32, i32) {
    %c0_i32 = arith.constant 0 : i32
    %c0_i32_0 = arith.constant 0 : i32
    %c0_i32_1 = arith.constant 0 : i32
    return %c0_i32, %c0_i32_0 : i32, i32
  }
}

</mosaic_0001>

<llo_original>
// kernel: deep_q_turtle_forward.3
$region0: #{deep_q_turtle_forward.3}
  #allocation0 [shape = 'u32[]', space=smem, size = 0x4, offset = 0x4, fixed_abs, tag = 'smem constant byte address 0x4 - core index']
  #allocation1 [shape = 'u32[144,128]{1,0:T(1,128)}', space=vmem, size = 0x12000, scoped, tag = 'internal scratch']
  %s0 = inlined_call_operand.vmem [shape: bf16[464,256], index: 0, kind: input, shape index: {}]
  %s1 = inlined_call_operand.vmem [shape: bf16[256,128], index: 1, kind: input, shape index: {}]
  %s2 = inlined_call_operand.vmem [shape: f32[1,128], index: 2, kind: input, shape index: {}]
  %s3 = inlined_call_operand.vmem [shape: bf16[464,128], index: 3, kind: output, shape index: {}]
  %s4 = sld [smem:[#allocation0]]
  $region45: #{deep_q_turtle_forward.3} parent=0
    _
  %s6 = ssub.s32 1, %s4
  %s7 = scalar_select 0, %s6, %s4
  loop: start=0, step=1, limit=4
  $region2: #{deep_q_turtle_forward.3} parent=0 // loop_pre_header
    _
  $region3: #{deep_q_turtle_forward.3} parent=0 // loop_header
    %s9 = sphi 0, %s13
    %p10 = scmp.ge.s32.totalorder %s9, 4
    %s16 = sphi 0, %s28
    %s17 = sphi 0, %s24
    %s18 = sphi 0, %s16
    %s19 = sphi 0, %s17
    %s20 = sphi 0, %s18
    %s21 = sphi 0, %s19
    %s31 = sphi 0, %s33
    %s34 = sphi 0, %s31
    %s35 = sphi 0, %s34
    %s51 = sphi 0, %s35
    %s57 = sphi 0, %s59
    %s60 = sphi 0, %s57
    %s61 = sphi 0, %s60
    %s77 = sphi 0, %s61
    %s83 = sphi 0, %s85
    %s86 = sphi 0, %s83
    %s87 = sphi 0, %s86
    %s103 = sphi 0, %s87
    %s111 = sphi 0, %s113
    %s114 = sphi 0, %s111
    %s115 = sphi 0, %s114
    %s131 = sphi 0, %s115
  $region4: #{deep_q_turtle_forward.3} parent=0 // loop_header_branch
    %12 = sbr.rel (%p10) target = $region8
  $region5: #{deep_q_turtle_forward.3} parent=0 // loop_body
    %s14 = ssub.s32 %s9, 1
    %s15 = ssub.s32 %s9, 2
    %s22 = sadd.s32 1, %s17
    %p23 = scmp.ge.s32.totalorder %s22, 1
    %s24 = scalar_select %p23, 0, %s22
    %s25 = sadd.s32 1, %s16
    %s26 = scalar_select %p23, %s25, %s16
    %p27 = scmp.ge.s32.totalorder %s26, 2
    %s28 = scalar_select %p27, 0, %s26
    %s29 = ssub.s32 %s16, %s28
    %p30 = scmp.eq.s32.totalorder %s29, 0
    %s32 = sadd.s32 %s31, 1
    %s33 = scalar_select %p30, %s31, %s32
    %p36 = pneg %p30
    %p37 = scmp.eq.s32.totalorder %s9, 1
    %p38 = por %p36, %p37
    %p39 = scmp.ne.s32.totalorder %s31, %s34
    %p40 = scmp.eq.s32.totalorder %s9, 0
    %p41 = por %p39, %p40
    %p42 = scmp.ne.s32.totalorder %s31, %s34
    %p43 = scmp.eq.s32.totalorder %s14, 1
    %p44 = por %p42, %p43
    %p45 = scmp.ne.s32.totalorder %s34, %s35
    %p46 = scmp.eq.s32.totalorder %s14, 0
    %p47 = por %p45, %p46
    %p48 = scmp.ne.s32.totalorder %s34, %s35
    %p49 = scmp.eq.s32.totalorder %s15, 1
    %p50 = por %p48, %p49
    %p52 = scmp.ne.s32.totalorder %s35, %s51
    %p53 = scmp.eq.s32.totalorder %s15, 0
    %p54 = por %p52, %p53
    %s55 = ssub.s32 %s17, %s24
    %p56 = scmp.eq.s32.totalorder %s55, 0
    %s58 = sadd.s32 %s57, 1
    %s59 = scalar_select %p56, %s57, %s58
    %p62 = pneg %p56
    %p63 = scmp.eq.s32.totalorder %s9, 1
    %p64 = por %p62, %p63
    %p65 = scmp.ne.s32.totalorder %s57, %s60
    %p66 = scmp.eq.s32.totalorder %s9, 0
    %p67 = por %p65, %p66
    %p68 = scmp.ne.s32.totalorder %s57, %s60
    %p69 = scmp.eq.s32.totalorder %s14, 1
    %p70 = por %p68, %p69
    %p71 = scmp.ne.s32.totalorder %s60, %s61
    %p72 = scmp.eq.s32.totalorder %s14, 0
    %p73 = por %p71, %p72
    %p74 = scmp.ne.s32.totalorder %s60, %s61
    %p75 = scmp.eq.s32.totalorder %s15, 1
    %p76 = por %p74, %p75
    %p78 = scmp.ne.s32.totalorder %s61, %s77
    %p79 = scmp.eq.s32.totalorder %s15, 0
    %p80 = por %p78, %p79
    %s81 = ssub.s32 %s17, %s24
    %p82 = scmp.eq.s32.totalorder %s81, 0
    %s84 = sadd.s32 %s83, 1
    %s85 = scalar_select %p82, %s83, %s84
    %p88 = pneg %p82
    %p89 = scmp.eq.s32.totalorder %s9, 1
    %p90 = por %p88, %p89
    %p91 = scmp.ne.s32.totalorder %s83, %s86
    %p92 = scmp.eq.s32.totalorder %s9, 0
    %p93 = por %p91, %p92
    %p94 = scmp.ne.s32.totalorder %s83, %s86
    %p95 = scmp.eq.s32.totalorder %s14, 1
    %p96 = por %p94, %p95
    %p97 = scmp.ne.s32.totalorder %s86, %s87
    %p98 = scmp.eq.s32.totalorder %s14, 0
    %p99 = por %p97, %p98
    %p100 = scmp.ne.s32.totalorder %s86, %s87
    %p101 = scmp.eq.s32.totalorder %s15, 1
    %p102 = por %p100, %p101
    %p104 = scmp.ne.s32.totalorder %s87, %s103
    %p105 = scmp.eq.s32.totalorder %s15, 0
    %p106 = por %p104, %p105
    %s107 = ssub.s32 %s16, %s28
    %s108 = ssub.s32 %s17, %s24
    %s109 = sor.u32 %s107, %s108
    %p110 = scmp.eq.s32.totalorder %s109, 0
    %s112 = sadd.s32 %s111, 1
    %s113 = scalar_select %p110, %s111, %s112
    %p116 = pneg %p110
    %p117 = scmp.eq.s32.totalorder %s9, 1
    %p118 = por %p116, %p117
    %p119 = scmp.ne.s32.totalorder %s111, %s114
    %p120 = scmp.eq.s32.totalorder %s9, 0
    %p121 = por %p119, %p120
    %p122 = scmp.ne.s32.totalorder %s111, %s114
    %p123 = scmp.eq.s32.totalorder %s14, 1
    %p124 = por %p122, %p123
    %p125 = scmp.ne.s32.totalorder %s114, %s115
    %p126 = scmp.eq.s32.totalorder %s14, 0
    %p127 = por %p125, %p126
    %p128 = scmp.ne.s32.totalorder %s114, %s115
    %p129 = scmp.eq.s32.totalorder %s15, 1
    %p130 = por %p128, %p129
    %p132 = scmp.ne.s32.totalorder %s115, %s131
    %p133 = scmp.eq.s32.totalorder %s15, 0
    %p134 = por %p132, %p133
    %p135 = scmp.le.s32.totalorder 1, %s9
    %p136 = scmp.lt.s32.totalorder %s9, 3
    %p137 = pnand %p135, %p136
    %p138 = pneg %p137
    // Predicated region
    $region9: #{deep_q_turtle_forward.3} parent=5 // pred_check
      _
    $region10: #{deep_q_turtle_forward.3} parent=5 // pred_check_branch
      %140 = sbr.rel (%p137) target = $region12
    $region11: #{deep_q_turtle_forward.3} parent=5 // pred_region
      %s141 = ssub.s32 %s9, 1
      // Predicated region
      $region13: #{deep_q_turtle_forward.3} parent=11 // pred_check
        %p142 = pneg %p73
      $region14: #{deep_q_turtle_forward.3} parent=11 // pred_check_branch
        %144 = sbr.rel (%p142) target = $region16
      $region15: #{deep_q_turtle_forward.3} parent=11 // pred_region
        %p145 = scmp.lt.s32.totalorder %s19, 0
        %s146 = scalar_select %p145, %s19, 0
        %s147 = smul.addr %s146, 4
        %s148 = scalar_lea.vmem %s1, %s147
      $region16: #{deep_q_turtle_forward.3} parent=11 // pred_fallthru
        _
      // Predicated region
      $region17: #{deep_q_turtle_forward.3} parent=11 // pred_check
        %p149 = pneg %p99
      $region18: #{deep_q_turtle_forward.3} parent=11 // pred_check_branch
        %151 = sbr.rel (%p149) target = $region20
      $region19: #{deep_q_turtle_forward.3} parent=11 // pred_region
        %p152 = scmp.lt.s32.totalorder %s19, 0
        %s153 = scalar_select %p152, %s19, 0
        %s154 = scalar_lea.vmem %s2, %s153
      $region20: #{deep_q_turtle_forward.3} parent=11 // pred_fallthru
        _
    $region12: #{deep_q_turtle_forward.3} parent=5 // pred_fallthru
      _
    %p155 = scmp.lt.s32.totalorder %s9, 2
    // Predicated region
    $region21: #{deep_q_turtle_forward.3} parent=5 // pred_check
      %p156 = pneg %p155
    $region22: #{deep_q_turtle_forward.3} parent=5 // pred_check_branch
      %158 = sbr.rel (%p156) target = $region24
    $region23: #{deep_q_turtle_forward.3} parent=5 // pred_region
      // Predicated region
      $region25: #{deep_q_turtle_forward.3} parent=23 // pred_check
        %p159 = pneg %p41
      $region26: #{deep_q_turtle_forward.3} parent=23 // pred_check_branch
        %161 = sbr.rel (%p159) target = $region28
      $region27: #{deep_q_turtle_forward.3} parent=23 // pred_region
        %s162 = smul.u32 29, %s16
        %p163 = scmp.lt.s32.totalorder %s162, 57
        %s164 = scalar_select %p163, %s162, 57
        %s165 = smul.addr %s164, 2
        %s166 = smul.addr %s165, 4
        %s167 = scalar_lea.vmem %s0, %s166
        %s168 = smul.u32 29, %s16
      $region28: #{deep_q_turtle_forward.3} parent=23 // pred_fallthru
        _
    $region24: #{deep_q_turtle_forward.3} parent=5 // pred_fallthru
      _
    %p169 = scmp.le.s32.totalorder 1, %s9
    %p170 = scmp.lt.s32.totalorder %s9, 3
    %p171 = pnand %p169, %p170
    %p172 = pneg %p171
    // Predicated region
    $region29: #{deep_q_turtle_forward.3} parent=5 // pred_check
      _
    $region30: #{deep_q_turtle_forward.3} parent=5 // pred_check_branch
      %174 = sbr.rel (%p171) target = $region32
    $region31: #{deep_q_turtle_forward.3} parent=5 // pred_region
      %s175 = ssub.s32 %s9, 1
      %s176 = smul.u32 29, %s18
      %p177 = scmp.lt.s32.totalorder %s176, 57
      %s178 = scalar_select %p177, %s176, 57
      %s179 = smul.addr %s178, 2
      %s180 = smul.addr %s179, 4
      %s181 = scalar_lea.vmem %s0, %s180
      %p182 = pneg %p47
      %p183 = pneg %p44
      %p184 = scmp.lt.s32.totalorder %s19, 0
      %s185 = scalar_select %p184, %s19, 0
      %s186 = smul.addr %s185, 4
      %s187 = scalar_lea.vmem %s1, %s186
      %p188 = pneg %p73
      %p189 = pneg %p70
      %p190 = scmp.lt.s32.totalorder %s19, 0
      %s191 = scalar_select %p190, %s19, 0
      %s192 = scalar_lea.vmem %s2, %s191
      %p193 = pneg %p99
      %p194 = pneg %p96
      %p195 = pneg %p127
      %p196 = pneg %p124
      %s197 = smul.u32 29, %s18
      %p198 = scmp.lt.s32.totalorder %s197, 57
      %s199 = scalar_select %p198, %s197, 57
      %p200 = scmp.lt.s32.totalorder %s19, 0
      %s201 = scalar_select %p200, %s19, 0
      %s202 = sadd.s32 %s201, %s199
      %s203 = smul.addr %s202, 4
      %s204 = scalar_lea.vmem %s3, %s203
      %s205 = smul.u32 29, %s18
      %p206 = scmp.lt.s32.totalorder %s205, 57
      %s207 = scalar_select %p206, %s205, 57
      %s208 = smul.addr %s207, 2
      %s209 = smul.addr %s208, 4
      %s210 = scalar_lea.vmem %s0, %s209
      %s211 = smul.u32 29, %s18
      %p212 = scmp.lt.s32.totalorder %s19, 0
      %s213 = scalar_select %p212, %s19, 0
      %s214 = smul.addr %s213, 4
      %s215 = scalar_lea.vmem %s1, %s214
      %p216 = scmp.lt.s32.totalorder %s19, 0
      %s217 = scalar_select %p216, %s19, 0
      %s218 = scalar_lea.vmem %s2, %s217
      %s219 = smul.u32 29, %s18
      %p220 = scmp.lt.s32.totalorder %s219, 57
      %s221 = scalar_select %p220, %s219, 57
      %p222 = scmp.lt.s32.totalorder %s19, 0
      %s223 = scalar_select %p222, %s19, 0
      %s224 = sadd.s32 %s223, %s221
      %s225 = smul.addr %s224, 4
      %s226 = scalar_lea.vmem %s3, %s225
      %s227 = smul.u32 29, %s18
      %v229 = vld [vmem:[%s210] sm:$0xff]
      %v230 = vld [vmem:[%s210 + $0x8] sm:$0xff]
      %v231 = vld [vmem:[%s210 + $0x10] sm:$0xff]
      %v232 = vld [vmem:[%s210 + $0x18] sm:$0xff]
      %v233 = vld [vmem:[%s210 + $0x20] sm:$0xff]
      %v234 = vld [vmem:[%s210 + $0x28] sm:$0xff]
      %v235 = vld [vmem:[%s210 + $0x30] sm:$0xff]
      %v236 = vld [vmem:[%s210 + $0x38] sm:$0xff]
      %v237 = vld [vmem:[%s210 + $0x40] sm:$0xff]
      %v238 = vld [vmem:[%s210 + $0x48] sm:$0xff]
      %v239 = vld [vmem:[%s210 + $0x50] sm:$0xff]
      %v240 = vld [vmem:[%s210 + $0x58] sm:$0xff]
      %v241 = vld [vmem:[%s210 + $0x60] sm:$0xff]
      %v242 = vld [vmem:[%s210 + $0x68] sm:$0xff]
      %v243 = vld [vmem:[%s210 + $0x70] sm:$0xff]
      %v244 = vld [vmem:[%s210 + $0x78] sm:$0xff]
      %v245 = vld [vmem:[%s210 + $0x80] sm:$0xff]
      %v246 = vld [vmem:[%s210 + $0x88] sm:$0xff]
      %v247 = vld [vmem:[%s210 + $0x90] sm:$0xff]
      %v248 = vld [vmem:[%s210 + $0x98] sm:$0xff]
      %v249 = vld [vmem:[%s210 + $0xa0] sm:$0xff]
      %v250 = vld [vmem:[%s210 + $0xa8] sm:$0xff]
      %v251 = vld [vmem:[%s210 + $0xb0] sm:$0xff]
      %v252 = vld [vmem:[%s210 + $0xb8] sm:$0xff]
      %v253 = vld [vmem:[%s210 + $0xc0] sm:$0xff]
      %v254 = vld [vmem:[%s210 + $0xc8] sm:$0xff]
      %v255 = vld [vmem:[%s210 + $0xd0] sm:$0xff]
      %v256 = vld [vmem:[%s210 + $0xd8] sm:$0xff]
      %v257 = vld [vmem:[%s210 + $0xe0] sm:$0xff]
      %v258 = vld [vmem:[%s215] sm:$0xf]
      %v259 = vld [vmem:[%s215 + $0x4] sm:$0xf]
      %v260 = vld [vmem:[%s215 + $0x8] sm:$0xf]
      %v261 = vld [vmem:[%s215 + $0xc] sm:$0xf]
      %v262 = vld [vmem:[%s215 + $0x10] sm:$0xf]
      %v263 = vld [vmem:[%s215 + $0x14] sm:$0xf]
      %v264 = vld [vmem:[%s215 + $0x18] sm:$0xf]
      %v265 = vld [vmem:[%s215 + $0x1c] sm:$0xf]
      %v266 = vld [vmem:[%s215 + $0x20] sm:$0xf]
      %v267 = vld [vmem:[%s215 + $0x24] sm:$0xf]
      %v268 = vld [vmem:[%s215 + $0x28] sm:$0xf]
      %v269 = vld [vmem:[%s215 + $0x2c] sm:$0xf]
      %v270 = vld [vmem:[%s215 + $0x30] sm:$0xf]
      %v271 = vld [vmem:[%s215 + $0x34] sm:$0xf]
      %v272 = vld [vmem:[%s215 + $0x38] sm:$0xf]
      %v273 = vld [vmem:[%s215 + $0x3c] sm:$0xf]
      %v274 = vld [vmem:[%s215 + $0x40] sm:$0xf]
      %v275 = vld [vmem:[%s215 + $0x44] sm:$0xf]
      %v276 = vld [vmem:[%s215 + $0x48] sm:$0xf]
      %v277 = vld [vmem:[%s215 + $0x4c] sm:$0xf]
      %v278 = vld [vmem:[%s215 + $0x50] sm:$0xf]
      %v279 = vld [vmem:[%s215 + $0x54] sm:$0xf]
      %v280 = vld [vmem:[%s215 + $0x58] sm:$0xf]
      %v281 = vld [vmem:[%s215 + $0x5c] sm:$0xf]
      %v282 = vld [vmem:[%s215 + $0x60] sm:$0xf]
      %v283 = vld [vmem:[%s215 + $0x64] sm:$0xf]
      %v284 = vld [vmem:[%s215 + $0x68] sm:$0xf]
      %v285 = vld [vmem:[%s215 + $0x6c] sm:$0xf]
      %v286 = vld [vmem:[%s215 + $0x70] sm:$0xf]
      %v287 = vld [vmem:[%s215 + $0x74] sm:$0xf]
      %v288 = vld [vmem:[%s215 + $0x78] sm:$0xf]
      %v289 = vld [vmem:[%s215 + $0x7c] sm:$0xf]
      %v290 = vld [vmem:[%s218] sm:$0x1]
      %v292 = vlaneseq
      %v293 = vshrl.u32 %v292, 7
      %v294 = vsub.s32 0, %v293
      %v295 = vrot.slane %v290, %v294
      %v326 = vunpack.c.l.b16 %v229
      %v327 = vunpack.c.h.b16 %v229
      %v328 = vunpack.c.l.b16 %v230
      %v329 = vunpack.c.h.b16 %v230
      %v330 = vunpack.c.l.b16 %v231
      %v331 = vunpack.c.h.b16 %v231
      %v332 = vunpack.c.l.b16 %v232
      %v333 = vunpack.c.h.b16 %v232
      %v334 = vunpack.c.l.b16 %v233
      %v335 = vunpack.c.h.b16 %v233
      %v336 = vunpack.c.l.b16 %v234
      %v337 = vunpack.c.h.b16 %v234
      %v338 = vunpack.c.l.b16 %v235
      %v339 = vunpack.c.h.b16 %v235
      %v340 = vunpack.c.l.b16 %v236
      %v341 = vunpack.c.h.b16 %v236
      %v342 = vunpack.c.l.b16 %v237
      %v343 = vunpack.c.h.b16 %v237
      %v344 = vunpack.c.l.b16 %v238
      %v345 = vunpack.c.h.b16 %v238
      %v346 = vunpack.c.l.b16 %v239
      %v347 = vunpack.c.h.b16 %v239
      %v348 = vunpack.c.l.b16 %v240
      %v349 = vunpack.c.h.b16 %v240
      %v350 = vunpack.c.l.b16 %v241
      %v351 = vunpack.c.h.b16 %v241
      %v352 = vunpack.c.l.b16 %v242
      %v353 = vunpack.c.h.b16 %v242
      %v354 = vunpack.c.l.b16 %v243
      %v355 = vunpack.c.h.b16 %v243
      %v356 = vunpack.c.l.b16 %v244
      %v357 = vunpack.c.h.b16 %v244
      %v358 = vunpack.c.l.b16 %v245
      %v359 = vunpack.c.h.b16 %v245
      %v360 = vunpack.c.l.b16 %v246
      %v361 = vunpack.c.h.b16 %v246
      %v362 = vunpack.c.l.b16 %v247
      %v363 = vunpack.c.h.b16 %v247
      %v364 = vunpack.c.l.b16 %v248
      %v365 = vunpack.c.h.b16 %v248
      %v366 = vunpack.c.l.b16 %v249
      %v367 = vunpack.c.h.b16 %v249
      %v368 = vunpack.c.l.b16 %v250
      %v369 = vunpack.c.h.b16 %v250
      %v370 = vunpack.c.l.b16 %v251
      %v371 = vunpack.c.h.b16 %v251
      %v372 = vunpack.c.l.b16 %v252
      %v373 = vunpack.c.h.b16 %v252
      %v374 = vunpack.c.l.b16 %v253
      %v375 = vunpack.c.h.b16 %v253
      %v376 = vunpack.c.l.b16 %v254
      %v377 = vunpack.c.h.b16 %v254
      %v378 = vunpack.c.l.b16 %v255
      %v379 = vunpack.c.h.b16 %v255
      %v380 = vunpack.c.l.b16 %v256
      %v381 = vunpack.c.h.b16 %v256
      %v382 = vunpack.c.l.b16 %v257
      %v383 = vunpack.c.h.b16 %v257
      %v384 = vpack.c.b16 %v328, %v326
      %v385 = vpack.c.b16 %v329, %v327
      %v386 = vpack.c.b16 %v332, %v330
      %v387 = vpack.c.b16 %v333, %v331
      %v388 = vpack.c.b16 %v336, %v334
      %v389 = vpack.c.b16 %v337, %v335
      %v390 = vpack.c.b16 %v340, %v338
      %v391 = vpack.c.b16 %v341, %v339
      %v392 = vpack.c.b16 %v344, %v342
      %v393 = vpack.c.b16 %v345, %v343
      %v394 = vpack.c.b16 %v348, %v346
      %v395 = vpack.c.b16 %v349, %v347
      %v396 = vpack.c.b16 %v352, %v350
      %v397 = vpack.c.b16 %v353, %v351
      %v398 = vpack.c.b16 %v356, %v354
      %v399 = vpack.c.b16 %v357, %v355
      %v400 = vpack.c.b16 %v360, %v358
      %v401 = vpack.c.b16 %v361, %v359
      %v402 = vpack.c.b16 %v364, %v362
      %v403 = vpack.c.b16 %v365, %v363
      %v404 = vpack.c.b16 %v368, %v366
      %v405 = vpack.c.b16 %v369, %v367
      %v406 = vpack.c.b16 %v372, %v370
      %v407 = vpack.c.b16 %v373, %v371
      %v408 = vpack.c.b16 %v376, %v374
      %v409 = vpack.c.b16 %v377, %v375
      %v410 = vpack.c.b16 %v380, %v378
      %v411 = vpack.c.b16 %v381, %v379
      %v412 = vpack.c.b16 %v382, %v382
      %v413 = vpack.c.b16 %v383, %v383
      %v476 = vunpack.c.l.b16 %v258
      %v477 = vunpack.c.l.b16 %v259
      %v478 = vunpack.c.l.b16 %v260
      %v479 = vunpack.c.l.b16 %v261
      %v480 = vunpack.c.l.b16 %v262
      %v481 = vunpack.c.l.b16 %v263
      %v482 = vunpack.c.l.b16 %v264
      %v483 = vunpack.c.l.b16 %v265
      %v484 = vunpack.c.l.b16 %v266
      %v485 = vunpack.c.l.b16 %v267
      %v486 = vunpack.c.l.b16 %v268
      %v487 = vunpack.c.l.b16 %v269
      %v488 = vunpack.c.l.b16 %v270
      %v489 = vunpack.c.l.b16 %v271
      %v490 = vunpack.c.l.b16 %v272
      %v491 = vunpack.c.l.b16 %v273
      %v492 = vunpack.c.l.b16 %v274
      %v493 = vunpack.c.l.b16 %v275
      %v494 = vunpack.c.l.b16 %v276
      %v495 = vunpack.c.l.b16 %v277
      %v496 = vunpack.c.l.b16 %v278
      %v497 = vunpack.c.l.b16 %v279
      %v498 = vunpack.c.l.b16 %v280
      %v499 = vunpack.c.l.b16 %v281
      %v500 = vunpack.c.l.b16 %v282
      %v501 = vunpack.c.l.b16 %v283
      %v502 = vunpack.c.l.b16 %v284
      %v503 = vunpack.c.l.b16 %v285
      %v504 = vunpack.c.l.b16 %v286
      %v505 = vunpack.c.l.b16 %v287
      %v506 = vunpack.c.l.b16 %v288
      %v507 = vunpack.c.l.b16 %v289
      %v508 = vpack.c.b16 %v477, %v476
      %v509 = vpack.c.b16 %v479, %v478
      %v510 = vpack.c.b16 %v481, %v480
      %v511 = vpack.c.b16 %v483, %v482
      %v512 = vpack.c.b16 %v485, %v484
      %v513 = vpack.c.b16 %v487, %v486
      %v514 = vpack.c.b16 %v489, %v488
      %v515 = vpack.c.b16 %v491, %v490
      %v516 = vpack.c.b16 %v493, %v492
      %v517 = vpack.c.b16 %v495, %v494
      %v518 = vpack.c.b16 %v497, %v496
      %v519 = vpack.c.b16 %v499, %v498
      %v520 = vpack.c.b16 %v501, %v500
      %v521 = vpack.c.b16 %v503, %v502
      %v522 = vpack.c.b16 %v505, %v504
      %v523 = vpack.c.b16 %v507, %v506
      %540 = vmatprep.subr.bf16.mxu0 0
      %541 = vmatpush1.bf16.msra.mxu0 %v508
      %542 = vmatprep.subr.bf16.mxu0 0
      %543 = vmatpush1.bf16.msra.mxu0 %v509
      %544 = vmatprep.subr.bf16.mxu0 0
      %545 = vmatpush1.bf16.msra.mxu0 %v510
      %546 = vmatprep.subr.bf16.mxu0 0
      %547 = vmatpush1.bf16.msra.mxu0 %v511
      %548 = vmatprep.subr.bf16.mxu0 0
      %549 = vmatpush1.bf16.msra.mxu0 %v512
      %550 = vmatprep.subr.bf16.mxu0 0
      %551 = vmatpush1.bf16.msra.mxu0 %v513
      %552 = vmatprep.subr.bf16.mxu0 0
      %553 = vmatpush1.bf16.msra.mxu0 %v514
      %554 = vmatprep.subr.bf16.mxu0 0
      %555 = vmatpush1.bf16.msra.mxu0 %v515
      %556 = vmatprep.subr.bf16.mxu0 0
      %557 = vmatpush1.bf16.msra.mxu0 %v516
      %558 = vmatprep.subr.bf16.mxu0 0
      %559 = vmatpush1.bf16.msra.mxu0 %v517
      %560 = vmatprep.subr.bf16.mxu0 0
      %561 = vmatpush1.bf16.msra.mxu0 %v518
      %562 = vmatprep.subr.bf16.mxu0 0
      %563 = vmatpush1.bf16.msra.mxu0 %v519
      %564 = vmatprep.subr.bf16.mxu0 0
      %565 = vmatpush1.bf16.msra.mxu0 %v520
      %566 = vmatprep.subr.bf16.mxu0 0
      %567 = vmatpush1.bf16.msra.mxu0 %v521
      %568 = vmatprep.subr.bf16.mxu0 0
      %569 = vmatpush1.bf16.msra.mxu0 %v522
      %570 = vmatprep.subr.bf16.mxu0 0
      %571 = vmatpush1.bf16.msra.mxu0 %v523
      %572 = vmatprep.mubr.bf16.mxu0 %v385
      %573 = vmatmul.mubr.bf16.gmra.mrb[0].mxu0 %v384
      %v574 = vpop.f32.mrb[0].mxu0
      %v575 = vadd.f32 %v295, %v574
      %v576 = vpop.f32.mrb[0].mxu0
      %v577 = vpop.f32.mrb[0].mxu0
      %v578 = vadd.f32 %v295, %v577
      %v579 = vpop.f32.mrb[0].mxu0
      %580 = vmatprep.mubr.bf16.mxu0 %v387
      %581 = vmatmul.mubr.bf16.gmra.mrb[0].mxu0 %v386
      %v582 = vpop.f32.mrb[0].mxu0
      %v583 = vadd.f32 %v295, %v582
      %v584 = vpop.f32.mrb[0].mxu0
      %v585 = vpop.f32.mrb[0].mxu0
      %v586 = vadd.f32 %v295, %v585
      %v587 = vpop.f32.mrb[0].mxu0
      %588 = vmatprep.mubr.bf16.mxu0 %v389
      %589 = vmatmul.mubr.bf16.gmra.mrb[0].mxu0 %v388
      %v590 = vpop.f32.mrb[0].mxu0
      %v591 = vadd.f32 %v295, %v590
      %v592 = vpop.f32.mrb[0].mxu0
      %v593 = vpop.f32.mrb[0].mxu0
      %v594 = vadd.f32 %v295, %v593
      %v595 = vpop.f32.mrb[0].mxu0
      %596 = vmatprep.mubr.bf16.mxu0 %v391
      %597 = vmatmul.mubr.bf16.gmra.mrb[0].mxu0 %v390
      %v598 = vpop.f32.mrb[0].mxu0
      %v599 = vadd.f32 %v295, %v598
      %v600 = vpop.f32.mrb[0].mxu0
      %v601 = vpop.f32.mrb[0].mxu0
      %v602 = vadd.f32 %v295, %v601
      %v603 = vpop.f32.mrb[0].mxu0
      %604 = vmatprep.mubr.bf16.mxu0 %v393
      %605 = vmatmul.mubr.bf16.gmra.mrb[0].mxu0 %v392
      %v606 = vpop.f32.mrb[0].mxu0
      %v607 = vadd.f32 %v295, %v606
      %v608 = vpop.f32.mrb[0].mxu0
      %v609 = vpop.f32.mrb[0].mxu0
      %v610 = vadd.f32 %v295, %v609
      %v611 = vpop.f32.mrb[0].mxu0
      %612 = vmatprep.mubr.bf16.mxu0 %v395
      %613 = vmatmul.mubr.bf16.gmra.mrb[0].mxu0 %v394
      %v614 = vpop.f32.mrb[0].mxu0
      %v615 = vadd.f32 %v295, %v614
      %v616 = vpop.f32.mrb[0].mxu0
      %v617 = vpop.f32.mrb[0].mxu0
      %v618 = vadd.f32 %v295, %v617
      %v619 = vpop.f32.mrb[0].mxu0
      %620 = vmatprep.mubr.bf16.mxu0 %v397
      %621 = vmatmul.mubr.bf16.gmra.mrb[0].mxu0 %v396
      %v622 = vpop.f32.mrb[0].mxu0
      %v623 = vadd.f32 %v295, %v622
      %v624 = vpop.f32.mrb[0].mxu0
      %v625 = vpop.f32.mrb[0].mxu0
      %v626 = vadd.f32 %v295, %v625
      %v627 = vpop.f32.mrb[0].mxu0
      %628 = vmatprep.mubr.bf16.mxu0 %v399
      %629 = vmatmul.mubr.bf16.gmra.mrb[0].mxu0 %v398
      %v630 = vpop.f32.mrb[0].mxu0
      %v631 = vadd.f32 %v295, %v630
      %v632 = vpop.f32.mrb[0].mxu0
      %v633 = vpop.f32.mrb[0].mxu0
      %v634 = vadd.f32 %v295, %v633
      %v635 = vpop.f32.mrb[0].mxu0
      %636 = vmatprep.mubr.bf16.mxu0 %v401
      %637 = vmatmul.mubr.bf16.gmra.mrb[0].mxu0 %v400
      %v638 = vpop.f32.mrb[0].mxu0
      %v639 = vadd.f32 %v295, %v638
      %v640 = vpop.f32.mrb[0].mxu0
      %v641 = vpop.f32.mrb[0].mxu0
      %v642 = vadd.f32 %v295, %v641
      %v643 = vpop.f32.mrb[0].mxu0
      %644 = vmatprep.mubr.bf16.mxu0 %v403
      %645 = vmatmul.mubr.bf16.gmra.mrb[0].mxu0 %v402
      %v646 = vpop.f32.mrb[0].mxu0
      %v647 = vadd.f32 %v295, %v646
      %v648 = vpop.f32.mrb[0].mxu0
      %v649 = vpop.f32.mrb[0].mxu0
      %v650 = vadd.f32 %v295, %v649
      %v651 = vpop.f32.mrb[0].mxu0
      %652 = vmatprep.mubr.bf16.mxu0 %v405
      %653 = vmatmul.mubr.bf16.gmra.mrb[0].mxu0 %v404
      %v654 = vpop.f32.mrb[0].mxu0
      %v655 = vadd.f32 %v295, %v654
      %v656 = vpop.f32.mrb[0].mxu0
      %v657 = vpop.f32.mrb[0].mxu0
      %v658 = vadd.f32 %v295, %v657
      %v659 = vpop.f32.mrb[0].mxu0
      %660 = vmatprep.mubr.bf16.mxu0 %v407
      %661 = vmatmul.mubr.bf16.gmra.mrb[0].mxu0 %v406
      %v662 = vpop.f32.mrb[0].mxu0
      %v663 = vadd.f32 %v295, %v662
      %v664 = vpop.f32.mrb[0].mxu0
      %v665 = vpop.f32.mrb[0].mxu0
      %v666 = vadd.f32 %v295, %v665
      %v667 = vpop.f32.mrb[0].mxu0
      %668 = vmatprep.mubr.bf16.mxu0 %v409
      %669 = vmatmul.mubr.bf16.gmra.mrb[0].mxu0 %v408
      %v670 = vpop.f32.mrb[0].mxu0
      %v671 = vadd.f32 %v295, %v670
      %v672 = vpop.f32.mrb[0].mxu0
      %v673 = vpop.f32.mrb[0].mxu0
      %v674 = vadd.f32 %v295, %v673
      %v675 = vpop.f32.mrb[0].mxu0
      %676 = vmatprep.mubr.bf16.mxu0 %v411
      %677 = vmatmul.mubr.bf16.gmra.mrb[0].mxu0 %v410
      %v678 = vpop.f32.mrb[0].mxu0
      %v679 = vadd.f32 %v295, %v678
      %v680 = vpop.f32.mrb[0].mxu0
      %v681 = vpop.f32.mrb[0].mxu0
      %v682 = vadd.f32 %v295, %v681
      %v683 = vpop.f32.mrb[0].mxu0
      %684 = vmatprep.mubr.bf16.mxu0 %v413
      %685 = vmatmul.mubr.bf16.gmra.mrb[0].mxu0 %v412
      %v686 = vpop.f32.mrb[0].mxu0
      %v687 = vadd.f32 %v295, %v686
      %v688 = vpop.f32.mrb[0].mxu0
      %v689 = vpop.f32.mrb[0].mxu0
      %v690 = vpop.f32.mrb[0].mxu0
      %691 = vdwg.mxu0
      %v692 = vmax.f32 %v575, 0.0
      %v693 = vmax.f32 %v578, 0.0
      %v694 = vmax.f32 %v583, 0.0
      %v695 = vmax.f32 %v586, 0.0
      %v696 = vmax.f32 %v591, 0.0
      %v697 = vmax.f32 %v594, 0.0
      %v698 = vmax.f32 %v599, 0.0
      %v699 = vmax.f32 %v602, 0.0
      %v700 = vmax.f32 %v607, 0.0
      %v701 = vmax.f32 %v610, 0.0
      %v702 = vmax.f32 %v615, 0.0
      %v703 = vmax.f32 %v618, 0.0
      %v704 = vmax.f32 %v623, 0.0
      %v705 = vmax.f32 %v626, 0.0
      %v706 = vmax.f32 %v631, 0.0
      %v707 = vmax.f32 %v634, 0.0
      %v708 = vmax.f32 %v639, 0.0
      %v709 = vmax.f32 %v642, 0.0
      %v710 = vmax.f32 %v647, 0.0
      %v711 = vmax.f32 %v650, 0.0
      %v712 = vmax.f32 %v655, 0.0
      %v713 = vmax.f32 %v658, 0.0
      %v714 = vmax.f32 %v663, 0.0
      %v715 = vmax.f32 %v666, 0.0
      %v716 = vmax.f32 %v671, 0.0
      %v717 = vmax.f32 %v674, 0.0
      %v718 = vmax.f32 %v679, 0.0
      %v719 = vmax.f32 %v682, 0.0
      %v720 = vmax.f32 %v687, 0.0
      %v721 = vpack.c.bf16 %v693, %v692
      %v722 = vpack.c.bf16 %v695, %v694
      %v723 = vpack.c.bf16 %v697, %v696
      %v724 = vpack.c.bf16 %v699, %v698
      %v725 = vpack.c.bf16 %v701, %v700
      %v726 = vpack.c.bf16 %v703, %v702
      %v727 = vpack.c.bf16 %v705, %v704
      %v728 = vpack.c.bf16 %v707, %v706
      %v729 = vpack.c.bf16 %v709, %v708
      %v730 = vpack.c.bf16 %v711, %v710
      %v731 = vpack.c.bf16 %v713, %v712
      %v732 = vpack.c.bf16 %v715, %v714
      %v733 = vpack.c.bf16 %v717, %v716
      %v734 = vpack.c.bf16 %v719, %v718
      %v735 = vpack.c.bf16 %v720, %v720
      %v751 = vunpack.c.l.b16 %v721
      %v752 = vunpack.c.h.b16 %v721
      %v753 = vunpack.c.l.b16 %v722
      %v754 = vunpack.c.h.b16 %v722
      %v755 = vunpack.c.l.b16 %v723
      %v756 = vunpack.c.h.b16 %v723
      %v757 = vunpack.c.l.b16 %v724
      %v758 = vunpack.c.h.b16 %v724
      %v759 = vunpack.c.l.b16 %v725
      %v760 = vunpack.c.h.b16 %v725
      %v761 = vunpack.c.l.b16 %v726
      %v762 = vunpack.c.h.b16 %v726
      %v763 = vunpack.c.l.b16 %v727
      %v764 = vunpack.c.h.b16 %v727
      %v765 = vunpack.c.l.b16 %v728
      %v766 = vunpack.c.h.b16 %v728
      %v767 = vunpack.c.l.b16 %v729
      %v768 = vunpack.c.h.b16 %v729
      %v769 = vunpack.c.l.b16 %v730
      %v770 = vunpack.c.h.b16 %v730
      %v771 = vunpack.c.l.b16 %v731
      %v772 = vunpack.c.h.b16 %v731
      %v773 = vunpack.c.l.b16 %v732
      %v774 = vunpack.c.h.b16 %v732
      %v775 = vunpack.c.l.b16 %v733
      %v776 = vunpack.c.h.b16 %v733
      %v777 = vunpack.c.l.b16 %v734
      %v778 = vunpack.c.h.b16 %v734
      %v779 = vunpack.c.l.b16 %v735
      %v780 = vpack.c.b16 %v751, %v751
      %v781 = vpack.c.b16 %v752, %v752
      %v782 = vpack.c.b16 %v753, %v753
      %v783 = vpack.c.b16 %v754, %v754
      %v784 = vpack.c.b16 %v755, %v755
      %v785 = vpack.c.b16 %v756, %v756
      %v786 = vpack.c.b16 %v757, %v757
      %v787 = vpack.c.b16 %v758, %v758
      %v788 = vpack.c.b16 %v759, %v759
      %v789 = vpack.c.b16 %v760, %v760
      %v790 = vpack.c.b16 %v761, %v761
      %v791 = vpack.c.b16 %v762, %v762
      %v792 = vpack.c.b16 %v763, %v763
      %v793 = vpack.c.b16 %v764, %v764
      %v794 = vpack.c.b16 %v765, %v765
      %v795 = vpack.c.b16 %v766, %v766
      %v796 = vpack.c.b16 %v767, %v767
      %v797 = vpack.c.b16 %v768, %v768
      %v798 = vpack.c.b16 %v769, %v769
      %v799 = vpack.c.b16 %v770, %v770
      %v800 = vpack.c.b16 %v771, %v771
      %v801 = vpack.c.b16 %v772, %v772
      %v802 = vpack.c.b16 %v773, %v773
      %v803 = vpack.c.b16 %v774, %v774
      %v804 = vpack.c.b16 %v775, %v775
      %v805 = vpack.c.b16 %v776, %v776
      %v806 = vpack.c.b16 %v777, %v777
      %v807 = vpack.c.b16 %v778, %v778
      %v808 = vpack.c.b16 %v779, %v779
      %838 = vst [vmem:[%s226] sm:$0xf] %v780
      %839 = vst [vmem:[%s226 + $0x4] sm:$0xf] %v781
      %840 = vst [vmem:[%s226 + $0x8] sm:$0xf] %v782
      %841 = vst [vmem:[%s226 + $0xc] sm:$0xf] %v783
      %842 = vst [vmem:[%s226 + $0x10] sm:$0xf] %v784
      %843 = vst [vmem:[%s226 + $0x14] sm:$0xf] %v785
      %844 = vst [vmem:[%s226 + $0x18] sm:$0xf] %v786
      %845 = vst [vmem:[%s226 + $0x1c] sm:$0xf] %v787
      %846 = vst [vmem:[%s226 + $0x20] sm:$0xf] %v788
      %847 = vst [vmem:[%s226 + $0x24] sm:$0xf] %v789
      %848 = vst [vmem:[%s226 + $0x28] sm:$0xf] %v790
      %849 = vst [vmem:[%s226 + $0x2c] sm:$0xf] %v791
      %850 = vst [vmem:[%s226 + $0x30] sm:$0xf] %v792
      %851 = vst [vmem:[%s226 + $0x34] sm:$0xf] %v793
      %852 = vst [vmem:[%s226 + $0x38] sm:$0xf] %v794
      %853 = vst [vmem:[%s226 + $0x3c] sm:$0xf] %v795
      %854 = vst [vmem:[%s226 + $0x40] sm:$0xf] %v796
      %855 = vst [vmem:[%s226 + $0x44] sm:$0xf] %v797
      %856 = vst [vmem:[%s226 + $0x48] sm:$0xf] %v798
      %857 = vst [vmem:[%s226 + $0x4c] sm:$0xf] %v799
      %858 = vst [vmem:[%s226 + $0x50] sm:$0xf] %v800
      %859 = vst [vmem:[%s226 + $0x54] sm:$0xf] %v801
      %860 = vst [vmem:[%s226 + $0x58] sm:$0xf] %v802
      %861 = vst [vmem:[%s226 + $0x5c] sm:$0xf] %v803
      %862 = vst [vmem:[%s226 + $0x60] sm:$0xf] %v804
      %863 = vst [vmem:[%s226 + $0x64] sm:$0xf] %v805
      %864 = vst [vmem:[%s226 + $0x68] sm:$0xf] %v806
      %865 = vst [vmem:[%s226 + $0x6c] sm:$0xf] %v807
      %866 = vst [vmem:[%s226 + $0x70] sm:$0xf] %v808
      %s867 = smul.u32 29, %s18
      %p868 = scmp.lt.s32.totalorder %s867, 57
      %s869 = scalar_select %p868, %s867, 57
      %p870 = scmp.lt.s32.totalorder %s19, 0
      %s871 = scalar_select %p870, %s19, 0
      %s872 = sadd.s32 %s871, %s869
      %s873 = smul.addr %s872, 4
      %s874 = scalar_lea.vmem %s3, %s873
      // Predicated region
      $region33: #{deep_q_turtle_forward.3} parent=31 // pred_check
        %p875 = pneg %p124
      $region34: #{deep_q_turtle_forward.3} parent=31 // pred_check_branch
        %877 = sbr.rel (%p875) target = $region36
      $region35: #{deep_q_turtle_forward.3} parent=31 // pred_region
        %s878 = smul.u32 29, %s18
      $region36: #{deep_q_turtle_forward.3} parent=31 // pred_fallthru
        _
    $region32: #{deep_q_turtle_forward.3} parent=5 // pred_fallthru
      _
    %p879 = scmp.le.s32.totalorder 2, %s9
    // Predicated region
    $region37: #{deep_q_turtle_forward.3} parent=5 // pred_check
      %p880 = pneg %p879
    $region38: #{deep_q_turtle_forward.3} parent=5 // pred_check_branch
      %882 = sbr.rel (%p880) target = $region40
    $region39: #{deep_q_turtle_forward.3} parent=5 // pred_region
      %s883 = ssub.s32 %s9, 2
      // Predicated region
      $region41: #{deep_q_turtle_forward.3} parent=39 // pred_check
        %p884 = pneg %p130
      $region42: #{deep_q_turtle_forward.3} parent=39 // pred_check_branch
        %886 = sbr.rel (%p884) target = $region44
      $region43: #{deep_q_turtle_forward.3} parent=39 // pred_region
        %s887 = smul.u32 29, %s20
        %p888 = scmp.lt.s32.totalorder %s887, 57
        %s889 = scalar_select %p888, %s887, 57
        %p890 = scmp.lt.s32.totalorder %s21, 0
        %s891 = scalar_select %p890, %s21, 0
        %s892 = sadd.s32 %s891, %s889
        %s893 = smul.addr %s892, 4
        %s894 = scalar_lea.vmem %s3, %s893
      $region44: #{deep_q_turtle_forward.3} parent=39 // pred_fallthru
        _
    $region40: #{deep_q_turtle_forward.3} parent=5 // pred_fallthru
      _
  $region6: #{deep_q_turtle_forward.3} parent=0 // loop_footer
    %s13 = sadd.s32 1, %s9
  $region7: #{deep_q_turtle_forward.3} parent=0 // loop_footer_branch
    %8 = sbr.rel target = $region3
  $region8: #{deep_q_turtle_forward.3} parent=0 // loop_exit
    _

// kernel: deep_q_turtle_forward.4
$region0: #{deep_q_turtle_forward.4}
  #allocation0 [shape = 'u32[]', space=smem, size = 0x4, offset = 0x4, fixed_abs, tag = 'smem constant byte address 0x4 - core index']
  #allocation1 [shape = 'u32[144,128]{1,0:T(1,128)}', space=vmem, size = 0x12000, scoped, tag = 'internal scratch']
  %s0 = inlined_call_operand.vmem [shape: bf16[72,512], index: 0, kind: input, shape index: {}]
  %s1 = inlined_call_operand.vmem [shape: bf16[512,128], index: 1, kind: input, shape index: {}]
  %s2 = inlined_call_operand.vmem [shape: f32[1,128], index: 2, kind: input, shape index: {}]
  %s3 = inlined_call_operand.vmem [shape: bf16[72,128], index: 3, kind: output, shape index: {}]
  %s4 = sld [smem:[#allocation0]]
  $region22: #{deep_q_turtle_forward.4} parent=0
    _
  %s6 = ssub.s32 1, %s4
  %s7 = scalar_select 0, %s6, %s4
  // Predicated region
  $region2: #{deep_q_turtle_forward.4} parent=0 // pred_check
    _
  $region3: #{deep_q_turtle_forward.4} parent=0 // pred_check_branch
    %9 = sbr.rel (0) target = $region5
  $region4: #{deep_q_turtle_forward.4} parent=0 // pred_region
    _
  $region5: #{deep_q_turtle_forward.4} parent=0 // pred_fallthru
    _
  // Predicated region
  $region6: #{deep_q_turtle_forward.4} parent=0 // pred_check
    _
  $region7: #{deep_q_turtle_forward.4} parent=0 // pred_check_branch
    %11 = sbr.rel (0) target = $region9
  $region8: #{deep_q_turtle_forward.4} parent=0 // pred_region
    _
  $region9: #{deep_q_turtle_forward.4} parent=0 // pred_fallthru
    _
  // Predicated region
  $region10: #{deep_q_turtle_forward.4} parent=0 // pred_check
    _
  $region11: #{deep_q_turtle_forward.4} parent=0 // pred_check_branch
    %13 = sbr.rel (0) target = $region13
  $region12: #{deep_q_turtle_forward.4} parent=0 // pred_region
    _
  $region13: #{deep_q_turtle_forward.4} parent=0 // pred_fallthru
    _
  %v15 = vld [vmem:[%s0] sm:$0xff]
  %v16 = vld [vmem:[%s0 + $0x8] sm:$0xff]
  %v17 = vld [vmem:[%s0 + $0x10] sm:$0xff]
  %v18 = vld [vmem:[%s0 + $0x18] sm:$0xff]
  %v19 = vld [vmem:[%s0 + $0x20] sm:$0xff]
  %v20 = vld [vmem:[%s0 + $0x28] sm:$0xff]
  %v21 = vld [vmem:[%s0 + $0x30] sm:$0xff]
  %v22 = vld [vmem:[%s0 + $0x38] sm:$0xff]
  %v23 = vld [vmem:[%s0 + $0x40] sm:$0xff]
  %v24 = vld [vmem:[%s0 + $0x48] sm:$0xff]
  %v25 = vld [vmem:[%s0 + $0x50] sm:$0xff]
  %v26 = vld [vmem:[%s0 + $0x58] sm:$0xff]
  %v27 = vld [vmem:[%s0 + $0x60] sm:$0xff]
  %v28 = vld [vmem:[%s0 + $0x68] sm:$0xff]
  %v29 = vld [vmem:[%s0 + $0x70] sm:$0xff]
  %v30 = vld [vmem:[%s0 + $0x78] sm:$0xff]
  %v31 = vld [vmem:[%s0 + $0x80] sm:$0xff]
  %v32 = vld [vmem:[%s0 + $0x88] sm:$0xff]
  %v33 = vld [vmem:[%s1] sm:$0xf]
  %v34 = vld [vmem:[%s1 + $0x4] sm:$0xf]
  %v35 = vld [vmem:[%s1 + $0x8] sm:$0xf]
  %v36 = vld [vmem:[%s1 + $0xc] sm:$0xf]
  %v37 = vld [vmem:[%s1 + $0x10] sm:$0xf]
  %v38 = vld [vmem:[%s1 + $0x14] sm:$0xf]
  %v39 = vld [vmem:[%s1 + $0x18] sm:$0xf]
  %v40 = vld [vmem:[%s1 + $0x1c] sm:$0xf]
  %v41 = vld [vmem:[%s1 + $0x20] sm:$0xf]
  %v42 = vld [vmem:[%s1 + $0x24] sm:$0xf]
  %v43 = vld [vmem:[%s1 + $0x28] sm:$0xf]
  %v44 = vld [vmem:[%s1 + $0x2c] sm:$0xf]
  %v45 = vld [vmem:[%s1 + $0x30] sm:$0xf]
  %v46 = vld [vmem:[%s1 + $0x34] sm:$0xf]
  %v47 = vld [vmem:[%s1 + $0x38] sm:$0xf]
  %v48 = vld [vmem:[%s1 + $0x3c] sm:$0xf]
  %v49 = vld [vmem:[%s1 + $0x40] sm:$0xf]
  %v50 = vld [vmem:[%s1 + $0x44] sm:$0xf]
  %v51 = vld [vmem:[%s1 + $0x48] sm:$0xf]
  %v52 = vld [vmem:[%s1 + $0x4c] sm:$0xf]
  %v53 = vld [vmem:[%s1 + $0x50] sm:$0xf]
  %v54 = vld [vmem:[%s1 + $0x54] sm:$0xf]
  %v55 = vld [vmem:[%s1 + $0x58] sm:$0xf]
  %v56 = vld [vmem:[%s1 + $0x5c] sm:$0xf]
  %v57 = vld [vmem:[%s1 + $0x60] sm:$0xf]
  %v58 = vld [vmem:[%s1 + $0x64] sm:$0xf]
  %v59 = vld [vmem:[%s1 + $0x68] sm:$0xf]
  %v60 = vld [vmem:[%s1 + $0x6c] sm:$0xf]
  %v61 = vld [vmem:[%s1 + $0x70] sm:$0xf]
  %v62 = vld [vmem:[%s1 + $0x74] sm:$0xf]
  %v63 = vld [vmem:[%s1 + $0x78] sm:$0xf]
  %v64 = vld [vmem:[%s1 + $0x7c] sm:$0xf]
  %v65 = vld [vmem:[%s1 + $0x80] sm:$0xf]
  %v66 = vld [vmem:[%s1 + $0x84] sm:$0xf]
  %v67 = vld [vmem:[%s1 + $0x88] sm:$0xf]
  %v68 = vld [vmem:[%s1 + $0x8c] sm:$0xf]
  %v69 = vld [vmem:[%s1 + $0x90] sm:$0xf]
  %v70 = vld [vmem:[%s1 + $0x94] sm:$0xf]
  %v71 = vld [vmem:[%s1 + $0x98] sm:$0xf]
  %v72 = vld [vmem:[%s1 + $0x9c] sm:$0xf]
  %v73 = vld [vmem:[%s1 + $0xa0] sm:$0xf]
  %v74 = vld [vmem:[%s1 + $0xa4] sm:$0xf]
  %v75 = vld [vmem:[%s1 + $0xa8] sm:$0xf]
  %v76 = vld [vmem:[%s1 + $0xac] sm:$0xf]
  %v77 = vld [vmem:[%s1 + $0xb0] sm:$0xf]
  %v78 = vld [vmem:[%s1 + $0xb4] sm:$0xf]
  %v79 = vld [vmem:[%s1 + $0xb8] sm:$0xf]
  %v80 = vld [vmem:[%s1 + $0xbc] sm:$0xf]
  %v81 = vld [vmem:[%s1 + $0xc0] sm:$0xf]
  %v82 = vld [vmem:[%s1 + $0xc4] sm:$0xf]
  %v83 = vld [vmem:[%s1 + $0xc8] sm:$0xf]
  %v84 = vld [vmem:[%s1 + $0xcc] sm:$0xf]
  %v85 = vld [vmem:[%s1 + $0xd0] sm:$0xf]
  %v86 = vld [vmem:[%s1 + $0xd4] sm:$0xf]
  %v87 = vld [vmem:[%s1 + $0xd8] sm:$0xf]
  %v88 = vld [vmem:[%s1 + $0xdc] sm:$0xf]
  %v89 = vld [vmem:[%s1 + $0xe0] sm:$0xf]
  %v90 = vld [vmem:[%s1 + $0xe4] sm:$0xf]
  %v91 = vld [vmem:[%s1 + $0xe8] sm:$0xf]
  %v92 = vld [vmem:[%s1 + $0xec] sm:$0xf]
  %v93 = vld [vmem:[%s1 + $0xf0] sm:$0xf]
  %v94 = vld [vmem:[%s1 + $0xf4] sm:$0xf]
  %v95 = vld [vmem:[%s1 + $0xf8] sm:$0xf]
  %v96 = vld [vmem:[%s1 + $0xfc] sm:$0xf]
  %v97 = vld [vmem:[%s2] sm:$0x1]
  %v99 = vlaneseq
  %v100 = vshrl.u32 %v99, 7
  %v101 = vsub.s32 0, %v100
  %v102 = vrot.slane %v97, %v101
  %v122 = vunpack.c.l.b16 %v15
  %v123 = vunpack.c.h.b16 %v15
  %v124 = vunpack.c.l.b16 %v16
  %v125 = vunpack.c.h.b16 %v16
  %v126 = vunpack.c.l.b16 %v17
  %v127 = vunpack.c.h.b16 %v17
  %v128 = vunpack.c.l.b16 %v18
  %v129 = vunpack.c.h.b16 %v18
  %v130 = vunpack.c.l.b16 %v19
  %v131 = vunpack.c.h.b16 %v19
  %v132 = vunpack.c.l.b16 %v20
  %v133 = vunpack.c.h.b16 %v20
  %v134 = vunpack.c.l.b16 %v21
  %v135 = vunpack.c.h.b16 %v21
  %v136 = vunpack.c.l.b16 %v22
  %v137 = vunpack.c.h.b16 %v22
  %v138 = vunpack.c.l.b16 %v23
  %v139 = vunpack.c.h.b16 %v23
  %v140 = vunpack.c.l.b16 %v24
  %v141 = vunpack.c.h.b16 %v24
  %v142 = vunpack.c.l.b16 %v25
  %v143 = vunpack.c.h.b16 %v25
  %v144 = vunpack.c.l.b16 %v26
  %v145 = vunpack.c.h.b16 %v26
  %v146 = vunpack.c.l.b16 %v27
  %v147 = vunpack.c.h.b16 %v27
  %v148 = vunpack.c.l.b16 %v28
  %v149 = vunpack.c.h.b16 %v28
  %v150 = vunpack.c.l.b16 %v29
  %v151 = vunpack.c.h.b16 %v29
  %v152 = vunpack.c.l.b16 %v30
  %v153 = vunpack.c.h.b16 %v30
  %v154 = vunpack.c.l.b16 %v31
  %v155 = vunpack.c.h.b16 %v31
  %v156 = vunpack.c.l.b16 %v32
  %v157 = vunpack.c.h.b16 %v32
  %v158 = vpack.c.b16 %v126, %v122
  %v159 = vpack.c.b16 %v127, %v123
  %v160 = vpack.c.b16 %v128, %v124
  %v161 = vpack.c.b16 %v129, %v125
  %v162 = vpack.c.b16 %v134, %v130
  %v163 = vpack.c.b16 %v135, %v131
  %v164 = vpack.c.b16 %v136, %v132
  %v165 = vpack.c.b16 %v137, %v133
  %v166 = vpack.c.b16 %v142, %v138
  %v167 = vpack.c.b16 %v143, %v139
  %v168 = vpack.c.b16 %v144, %v140
  %v169 = vpack.c.b16 %v145, %v141
  %v170 = vpack.c.b16 %v150, %v146
  %v171 = vpack.c.b16 %v151, %v147
  %v172 = vpack.c.b16 %v152, %v148
  %v173 = vpack.c.b16 %v153, %v149
  %v174 = vpack.c.b16 %v154, %v154
  %v175 = vpack.c.b16 %v155, %v155
  %v176 = vpack.c.b16 %v156, %v156
  %v177 = vpack.c.b16 %v157, %v157
  %v262 = vunpack.c.l.b16 %v33
  %v263 = vunpack.c.l.b16 %v34
  %v264 = vunpack.c.l.b16 %v35
  %v265 = vunpack.c.l.b16 %v36
  %v266 = vunpack.c.l.b16 %v37
  %v267 = vunpack.c.l.b16 %v38
  %v268 = vunpack.c.l.b16 %v39
  %v269 = vunpack.c.l.b16 %v40
  %v270 = vunpack.c.l.b16 %v41
  %v271 = vunpack.c.l.b16 %v42
  %v272 = vunpack.c.l.b16 %v43
  %v273 = vunpack.c.l.b16 %v44
  %v274 = vunpack.c.l.b16 %v45
  %v275 = vunpack.c.l.b16 %v46
  %v276 = vunpack.c.l.b16 %v47
  %v277 = vunpack.c.l.b16 %v48
  %v278 = vunpack.c.l.b16 %v49
  %v279 = vunpack.c.l.b16 %v50
  %v280 = vunpack.c.l.b16 %v51
  %v281 = vunpack.c.l.b16 %v52
  %v282 = vunpack.c.l.b16 %v53
  %v283 = vunpack.c.l.b16 %v54
  %v284 = vunpack.c.l.b16 %v55
  %v285 = vunpack.c.l.b16 %v56
  %v286 = vunpack.c.l.b16 %v57
  %v287 = vunpack.c.l.b16 %v58
  %v288 = vunpack.c.l.b16 %v59
  %v289 = vunpack.c.l.b16 %v60
  %v290 = vunpack.c.l.b16 %v61
  %v291 = vunpack.c.l.b16 %v62
  %v292 = vunpack.c.l.b16 %v63
  %v293 = vunpack.c.l.b16 %v64
  %v294 = vunpack.c.l.b16 %v65
  %v295 = vunpack.c.l.b16 %v66
  %v296 = vunpack.c.l.b16 %v67
  %v297 = vunpack.c.l.b16 %v68
  %v298 = vunpack.c.l.b16 %v69
  %v299 = vunpack.c.l.b16 %v70
  %v300 = vunpack.c.l.b16 %v71
  %v301 = vunpack.c.l.b16 %v72
  %v302 = vunpack.c.l.b16 %v73
  %v303 = vunpack.c.l.b16 %v74
  %v304 = vunpack.c.l.b16 %v75
  %v305 = vunpack.c.l.b16 %v76
  %v306 = vunpack.c.l.b16 %v77
  %v307 = vunpack.c.l.b16 %v78
  %v308 = vunpack.c.l.b16 %v79
  %v309 = vunpack.c.l.b16 %v80
  %v310 = vunpack.c.l.b16 %v81
  %v311 = vunpack.c.l.b16 %v82
  %v312 = vunpack.c.l.b16 %v83
  %v313 = vunpack.c.l.b16 %v84
  %v314 = vunpack.c.l.b16 %v85
  %v315 = vunpack.c.l.b16 %v86
  %v316 = vunpack.c.l.b16 %v87
  %v317 = vunpack.c.l.b16 %v88
  %v318 = vunpack.c.l.b16 %v89
  %v319 = vunpack.c.l.b16 %v90
  %v320 = vunpack.c.l.b16 %v91
  %v321 = vunpack.c.l.b16 %v92
  %v322 = vunpack.c.l.b16 %v93
  %v323 = vunpack.c.l.b16 %v94
  %v324 = vunpack.c.l.b16 %v95
  %v325 = vunpack.c.l.b16 %v96
  %v326 = vpack.c.b16 %v263, %v262
  %v327 = vpack.c.b16 %v265, %v264
  %v328 = vpack.c.b16 %v267, %v266
  %v329 = vpack.c.b16 %v269, %v268
  %v330 = vpack.c.b16 %v271, %v270
  %v331 = vpack.c.b16 %v273, %v272
  %v332 = vpack.c.b16 %v275, %v274
  %v333 = vpack.c.b16 %v277, %v276
  %v334 = vpack.c.b16 %v279, %v278
  %v335 = vpack.c.b16 %v281, %v280
  %v336 = vpack.c.b16 %v283, %v282
  %v337 = vpack.c.b16 %v285, %v284
  %v338 = vpack.c.b16 %v287, %v286
  %v339 = vpack.c.b16 %v289, %v288
  %v340 = vpack.c.b16 %v291, %v290
  %v341 = vpack.c.b16 %v293, %v292
  %v342 = vpack.c.b16 %v295, %v294
  %v343 = vpack.c.b16 %v297, %v296
  %v344 = vpack.c.b16 %v299, %v298
  %v345 = vpack.c.b16 %v301, %v300
  %v346 = vpack.c.b16 %v303, %v302
  %v347 = vpack.c.b16 %v305, %v304
  %v348 = vpack.c.b16 %v307, %v306
  %v349 = vpack.c.b16 %v309, %v308
  %v350 = vpack.c.b16 %v311, %v310
  %v351 = vpack.c.b16 %v313, %v312
  %v352 = vpack.c.b16 %v315, %v314
  %v353 = vpack.c.b16 %v317, %v316
  %v354 = vpack.c.b16 %v319, %v318
  %v355 = vpack.c.b16 %v321, %v320
  %v356 = vpack.c.b16 %v323, %v322
  %v357 = vpack.c.b16 %v325, %v324
  %390 = vmatprep.subr.bf16.mxu0 0
  %391 = vmatpush1.bf16.msra.mxu0 %v326
  %392 = vmatprep.subr.bf16.mxu0 0
  %393 = vmatpush1.bf16.msra.mxu0 %v327
  %394 = vmatprep.subr.bf16.mxu0 0
  %395 = vmatpush1.bf16.msra.mxu0 %v328
  %396 = vmatprep.subr.bf16.mxu0 0
  %397 = vmatpush1.bf16.msra.mxu0 %v329
  %398 = vmatprep.subr.bf16.mxu0 0
  %399 = vmatpush1.bf16.msra.mxu0 %v330
  %400 = vmatprep.subr.bf16.mxu0 0
  %401 = vmatpush1.bf16.msra.mxu0 %v331
  %402 = vmatprep.subr.bf16.mxu0 0
  %403 = vmatpush1.bf16.msra.mxu0 %v332
  %404 = vmatprep.subr.bf16.mxu0 0
  %405 = vmatpush1.bf16.msra.mxu0 %v333
  %406 = vmatprep.subr.bf16.mxu0 0
  %407 = vmatpush1.bf16.msra.mxu0 %v334
  %408 = vmatprep.subr.bf16.mxu0 0
  %409 = vmatpush1.bf16.msra.mxu0 %v335
  %410 = vmatprep.subr.bf16.mxu0 0
  %411 = vmatpush1.bf16.msra.mxu0 %v336
  %412 = vmatprep.subr.bf16.mxu0 0
  %413 = vmatpush1.bf16.msra.mxu0 %v337
  %414 = vmatprep.subr.bf16.mxu0 0
  %415 = vmatpush1.bf16.msra.mxu0 %v338
  %416 = vmatprep.subr.bf16.mxu0 0
  %417 = vmatpush1.bf16.msra.mxu0 %v339
  %418 = vmatprep.subr.bf16.mxu0 0
  %419 = vmatpush1.bf16.msra.mxu0 %v340
  %420 = vmatprep.subr.bf16.mxu0 0
  %421 = vmatpush1.bf16.msra.mxu0 %v341
  %422 = vmatprep.mubr.bf16.mxu0 %v159
  %423 = vmatmul.mubr.bf16.gmra.mrb[0].mxu0 %v158
  %v424 = vpop.f32.mrb[0].mxu0
  %v425 = vadd.f32 %v102, %v424
  %v426 = vpop.f32.mrb[0].mxu0
  %v427 = vpop.f32.mrb[0].mxu0
  %v428 = vadd.f32 %v102, %v427
  %v429 = vpop.f32.mrb[0].mxu0
  %430 = vmatprep.mubr.bf16.mxu0 %v163
  %431 = vmatmul.mubr.bf16.gmra.mrb[0].mxu0 %v162
  %v432 = vpop.f32.mrb[0].mxu0
  %v433 = vadd.f32 %v102, %v432
  %v434 = vpop.f32.mrb[0].mxu0
  %v435 = vpop.f32.mrb[0].mxu0
  %v436 = vadd.f32 %v102, %v435
  %v437 = vpop.f32.mrb[0].mxu0
  %438 = vmatprep.mubr.bf16.mxu0 %v167
  %439 = vmatmul.mubr.bf16.gmra.mrb[0].mxu0 %v166
  %v440 = vpop.f32.mrb[0].mxu0
  %v441 = vadd.f32 %v102, %v440
  %v442 = vpop.f32.mrb[0].mxu0
  %v443 = vpop.f32.mrb[0].mxu0
  %v444 = vadd.f32 %v102, %v443
  %v445 = vpop.f32.mrb[0].mxu0
  %446 = vmatprep.mubr.bf16.mxu0 %v171
  %447 = vmatmul.mubr.bf16.gmra.mrb[0].mxu0 %v170
  %v448 = vpop.f32.mrb[0].mxu0
  %v449 = vadd.f32 %v102, %v448
  %v450 = vpop.f32.mrb[0].mxu0
  %v451 = vpop.f32.mrb[0].mxu0
  %v452 = vadd.f32 %v102, %v451
  %v453 = vpop.f32.mrb[0].mxu0
  %454 = vmatprep.mubr.bf16.mxu0 %v175
  %455 = vmatmul.mubr.bf16.gmra.mrb[0].mxu0 %v174
  %v456 = vpop.f32.mrb[0].mxu0
  %v457 = vadd.f32 %v102, %v456
  %v458 = vpop.f32.mrb[0].mxu0
  %v459 = vpop.f32.mrb[0].mxu0
  %v460 = vpop.f32.mrb[0].mxu0
  %461 = vdwg.mxu0
  %462 = vmatprep.subr.bf16.mxu0 0
  %463 = vmatpush1.bf16.msra.mxu0 %v342
  %464 = vmatprep.subr.bf16.mxu0 0
  %465 = vmatpush1.bf16.msra.mxu0 %v343
  %466 = vmatprep.subr.bf16.mxu0 0
  %467 = vmatpush1.bf16.msra.mxu0 %v344
  %468 = vmatprep.subr.bf16.mxu0 0
  %469 = vmatpush1.bf16.msra.mxu0 %v345
  %470 = vmatprep.subr.bf16.mxu0 0
  %471 = vmatpush1.bf16.msra.mxu0 %v346
  %472 = vmatprep.subr.bf16.mxu0 0
  %473 = vmatpush1.bf16.msra.mxu0 %v347
  %474 = vmatprep.subr.bf16.mxu0 0
  %475 = vmatpush1.bf16.msra.mxu0 %v348
  %476 = vmatprep.subr.bf16.mxu0 0
  %477 = vmatpush1.bf16.msra.mxu0 %v349
  %478 = vmatprep.subr.bf16.mxu0 0
  %479 = vmatpush1.bf16.msra.mxu0 %v350
  %480 = vmatprep.subr.bf16.mxu0 0
  %481 = vmatpush1.bf16.msra.mxu0 %v351
  %482 = vmatprep.subr.bf16.mxu0 0
  %483 = vmatpush1.bf16.msra.mxu0 %v352
  %484 = vmatprep.subr.bf16.mxu0 0
  %485 = vmatpush1.bf16.msra.mxu0 %v353
  %486 = vmatprep.subr.bf16.mxu0 0
  %487 = vmatpush1.bf16.msra.mxu0 %v354
  %488 = vmatprep.subr.bf16.mxu0 0
  %489 = vmatpush1.bf16.msra.mxu0 %v355
  %490 = vmatprep.subr.bf16.mxu0 0
  %491 = vmatpush1.bf16.msra.mxu0 %v356
  %492 = vmatprep.subr.bf16.mxu0 0
  %493 = vmatpush1.bf16.msra.mxu0 %v357
  %494 = vmatprep.mubr.bf16.mxu0 %v161
  %495 = vmatmul.mubr.bf16.gmra.mrb[0].mxu0 %v160
  %v496 = vpop.f32.mrb[0].mxu0
  %v497 = vadd.f32 %v425, %v496
  %v498 = vpop.f32.mrb[0].mxu0
  %v499 = vpop.f32.mrb[0].mxu0
  %v500 = vadd.f32 %v428, %v499
  %v501 = vpop.f32.mrb[0].mxu0
  %502 = vmatprep.mubr.bf16.mxu0 %v165
  %503 = vmatmul.mubr.bf16.gmra.mrb[0].mxu0 %v164
  %v504 = vpop.f32.mrb[0].mxu0
  %v505 = vadd.f32 %v433, %v504
  %v506 = vpop.f32.mrb[0].mxu0
  %v507 = vpop.f32.mrb[0].mxu0
  %v508 = vadd.f32 %v436, %v507
  %v509 = vpop.f32.mrb[0].mxu0
  %510 = vmatprep.mubr.bf16.mxu0 %v169
  %511 = vmatmul.mubr.bf16.gmra.mrb[0].mxu0 %v168
  %v512 = vpop.f32.mrb[0].mxu0
  %v513 = vadd.f32 %v441, %v512
  %v514 = vpop.f32.mrb[0].mxu0
  %v515 = vpop.f32.mrb[0].mxu0
  %v516 = vadd.f32 %v444, %v515
  %v517 = vpop.f32.mrb[0].mxu0
  %518 = vmatprep.mubr.bf16.mxu0 %v173
  %519 = vmatmul.mubr.bf16.gmra.mrb[0].mxu0 %v172
  %v520 = vpop.f32.mrb[0].mxu0
  %v521 = vadd.f32 %v449, %v520
  %v522 = vpop.f32.mrb[0].mxu0
  %v523 = vpop.f32.mrb[0].mxu0
  %v524 = vadd.f32 %v452, %v523
  %v525 = vpop.f32.mrb[0].mxu0
  %526 = vmatprep.mubr.bf16.mxu0 %v177
  %527 = vmatmul.mubr.bf16.gmra.mrb[0].mxu0 %v176
  %v528 = vpop.f32.mrb[0].mxu0
  %v529 = vadd.f32 %v457, %v528
  %v530 = vpop.f32.mrb[0].mxu0
  %v531 = vpop.f32.mrb[0].mxu0
  %v532 = vpop.f32.mrb[0].mxu0
  %533 = vdwg.mxu0
  %v534 = vmax.f32 %v497, 0.0
  %v535 = vmax.f32 %v500, 0.0
  %v536 = vmax.f32 %v505, 0.0
  %v537 = vmax.f32 %v508, 0.0
  %v538 = vmax.f32 %v513, 0.0
  %v539 = vmax.f32 %v516, 0.0
  %v540 = vmax.f32 %v521, 0.0
  %v541 = vmax.f32 %v524, 0.0
  %v542 = vmax.f32 %v529, 0.0
  %v543 = vpack.c.bf16 %v535, %v534
  %v544 = vpack.c.bf16 %v537, %v536
  %v545 = vpack.c.bf16 %v539, %v538
  %v546 = vpack.c.bf16 %v541, %v540
  %v547 = vpack.c.bf16 %v542, %v542
  %v553 = vunpack.c.l.b16 %v543
  %v554 = vunpack.c.h.b16 %v543
  %v555 = vunpack.c.l.b16 %v544
  %v556 = vunpack.c.h.b16 %v544
  %v557 = vunpack.c.l.b16 %v545
  %v558 = vunpack.c.h.b16 %v545
  %v559 = vunpack.c.l.b16 %v546
  %v560 = vunpack.c.h.b16 %v546
  %v561 = vunpack.c.l.b16 %v547
  %v562 = vpack.c.b16 %v553, %v553
  %v563 = vpack.c.b16 %v554, %v554
  %v564 = vpack.c.b16 %v555, %v555
  %v565 = vpack.c.b16 %v556, %v556
  %v566 = vpack.c.b16 %v557, %v557
  %v567 = vpack.c.b16 %v558, %v558
  %v568 = vpack.c.b16 %v559, %v559
  %v569 = vpack.c.b16 %v560, %v560
  %v570 = vpack.c.b16 %v561, %v561
  %580 = vst [vmem:[%s3] sm:$0xf] %v562
  %581 = vst [vmem:[%s3 + $0x4] sm:$0xf] %v563
  %582 = vst [vmem:[%s3 + $0x8] sm:$0xf] %v564
  %583 = vst [vmem:[%s3 + $0xc] sm:$0xf] %v565
  %584 = vst [vmem:[%s3 + $0x10] sm:$0xf] %v566
  %585 = vst [vmem:[%s3 + $0x14] sm:$0xf] %v567
  %586 = vst [vmem:[%s3 + $0x18] sm:$0xf] %v568
  %587 = vst [vmem:[%s3 + $0x1c] sm:$0xf] %v569
  %588 = vst [vmem:[%s3 + $0x20] sm:$0xf] %v570
  // Predicated region
  $region14: #{deep_q_turtle_forward.4} parent=0 // pred_check
    _
  $region15: #{deep_q_turtle_forward.4} parent=0 // pred_check_branch
    %590 = sbr.rel (0) target = $region17
  $region16: #{deep_q_turtle_forward.4} parent=0 // pred_region
    _
  $region17: #{deep_q_turtle_forward.4} parent=0 // pred_fallthru
    _
  // Predicated region
  $region18: #{deep_q_turtle_forward.4} parent=0 // pred_check
    _
  $region19: #{deep_q_turtle_forward.4} parent=0 // pred_check_branch
    %592 = sbr.rel (0) target = $region21
  $region20: #{deep_q_turtle_forward.4} parent=0 // pred_region
    _
  $region21: #{deep_q_turtle_forward.4} parent=0 // pred_fallthru
    _

// kernel: deep_q_turtle_forward.5
$region0: #{deep_q_turtle_forward.5}
  #allocation0 [shape = 'u32[]', space=smem, size = 0x4, offset = 0x4, fixed_abs, tag = 'smem constant byte address 0x4 - core index']
  #allocation1 [shape = 'u32[144,128]{1,0:T(1,128)}', space=vmem, size = 0x12000, scoped, tag = 'internal scratch']
  %s0 = inlined_call_operand.vmem [shape: bf16[72,1024], index: 0, kind: input, shape index: {}]
  %s1 = inlined_call_operand.vmem [shape: bf16[1024,128], index: 1, kind: input, shape index: {}]
  %s2 = inlined_call_operand.vmem [shape: f32[1,128], index: 2, kind: input, shape index: {}]
  %s3 = inlined_call_operand.vmem [shape: bf16[9,128,128], index: 3, kind: input, shape index: {}]
  %s4 = inlined_call_operand.vmem [shape: f32[1,128], index: 4, kind: input, shape index: {}]
  %s5 = inlined_call_operand.vmem [shape: bf16[128,128], index: 5, kind: input, shape index: {}]
  %s6 = inlined_call_operand.vmem [shape: f32[1,128], index: 6, kind: input, shape index: {}]
  %s7 = inlined_call_operand.vmem [shape: f32[8,128], index: 7, kind: output, shape index: {}]
  %s8 = sld [smem:[#allocation0]]
  $region38: #{deep_q_turtle_forward.5} parent=0
    _
  %s10 = ssub.s32 1, %s8
  %s11 = scalar_select 0, %s10, %s8
  // Predicated region
  $region2: #{deep_q_turtle_forward.5} parent=0 // pred_check
    _
  $region3: #{deep_q_turtle_forward.5} parent=0 // pred_check_branch
    %13 = sbr.rel (0) target = $region5
  $region4: #{deep_q_turtle_forward.5} parent=0 // pred_region
    _
  $region5: #{deep_q_turtle_forward.5} parent=0 // pred_fallthru
    _
  // Predicated region
  $region6: #{deep_q_turtle_forward.5} parent=0 // pred_check
    _
  $region7: #{deep_q_turtle_forward.5} parent=0 // pred_check_branch
    %15 = sbr.rel (0) target = $region9
  $region8: #{deep_q_turtle_forward.5} parent=0 // pred_region
    _
  $region9: #{deep_q_turtle_forward.5} parent=0 // pred_fallthru
    _
  // Predicated region
  $region10: #{deep_q_turtle_forward.5} parent=0 // pred_check
    _
  $region11: #{deep_q_turtle_forward.5} parent=0 // pred_check_branch
    %17 = sbr.rel (0) target = $region13
  $region12: #{deep_q_turtle_forward.5} parent=0 // pred_region
    _
  $region13: #{deep_q_turtle_forward.5} parent=0 // pred_fallthru
    _
  // Predicated region
  $region14: #{deep_q_turtle_forward.5} parent=0 // pred_check
    _
  $region15: #{deep_q_turtle_forward.5} parent=0 // pred_check_branch
    %19 = sbr.rel (0) target = $region17
  $region16: #{deep_q_turtle_forward.5} parent=0 // pred_region
    _
  $region17: #{deep_q_turtle_forward.5} parent=0 // pred_fallthru
    _
  // Predicated region
  $region18: #{deep_q_turtle_forward.5} parent=0 // pred_check
    _
  $region19: #{deep_q_turtle_forward.5} parent=0 // pred_check_branch
    %21 = sbr.rel (0) target = $region21
  $region20: #{deep_q_turtle_forward.5} parent=0 // pred_region
    _
  $region21: #{deep_q_turtle_forward.5} parent=0 // pred_fallthru
    _
  // Predicated region
  $region22: #{deep_q_turtle_forward.5} parent=0 // pred_check
    _
  $region23: #{deep_q_turtle_forward.5} parent=0 // pred_check_branch
    %23 = sbr.rel (0) target = $region25
  $region24: #{deep_q_turtle_forward.5} parent=0 // pred_region
    _
  $region25: #{deep_q_turtle_forward.5} parent=0 // pred_fallthru
    _
  // Predicated region
  $region26: #{deep_q_turtle_forward.5} parent=0 // pred_check
    _
  $region27: #{deep_q_turtle_forward.5} parent=0 // pred_check_branch
    %25 = sbr.rel (0) target = $region29
  $region28: #{deep_q_turtle_forward.5} parent=0 // pred_region
    _
  $region29: #{deep_q_turtle_forward.5} parent=0 // pred_fallthru
    _
  %v27 = vld [vmem:[%s0] sm:$0xff]
  %v28 = vld [vmem:[%s0 + $0x8] sm:$0xff]
  %v29 = vld [vmem:[%s0 + $0x10] sm:$0xff]
  %v30 = vld [vmem:[%s0 + $0x18] sm:$0xff]
  %v31 = vld [vmem:[%s0 + $0x20] sm:$0xff]
  %v32 = vld [vmem:[%s0 + $0x28] sm:$0xff]
  %v33 = vld [vmem:[%s0 + $0x30] sm:$0xff]
  %v34 = vld [vmem:[%s0 + $0x38] sm:$0xff]
  %v35 = vld [vmem:[%s0 + $0x40] sm:$0xff]
  %v36 = vld [vmem:[%s0 + $0x48] sm:$0xff]
  %v37 = vld [vmem:[%s0 + $0x50] sm:$0xff]
  %v38 = vld [vmem:[%s0 + $0x58] sm:$0xff]
  %v39 = vld [vmem:[%s0 + $0x60] sm:$0xff]
  %v40 = vld [vmem:[%s0 + $0x68] sm:$0xff]
  %v41 = vld [vmem:[%s0 + $0x70] sm:$0xff]
  %v42 = vld [vmem:[%s0 + $0x78] sm:$0xff]
  %v43 = vld [vmem:[%s0 + $0x80] sm:$0xff]
  %v44 = vld [vmem:[%s0 + $0x88] sm:$0xff]
  %v45 = vld [vmem:[%s0 + $0x90] sm:$0xff]
  %v46 = vld [vmem:[%s0 + $0x98] sm:$0xff]
  %v47 = vld [vmem:[%s0 + $0xa0] sm:$0xff]
  %v48 = vld [vmem:[%s0 + $0xa8] sm:$0xff]
  %v49 = vld [vmem:[%s0 + $0xb0] sm:$0xff]
  %v50 = vld [vmem:[%s0 + $0xb8] sm:$0xff]
  %v51 = vld [vmem:[%s0 + $0xc0] sm:$0xff]
  %v52 = vld [vmem:[%s0 + $0xc8] sm:$0xff]
  %v53 = vld [vmem:[%s0 + $0xd0] sm:$0xff]
  %v54 = vld [vmem:[%s0 + $0xd8] sm:$0xff]
  %v55 = vld [vmem:[%s0 + $0xe0] sm:$0xff]
  %v56 = vld [vmem:[%s0 + $0xe8] sm:$0xff]
  %v57 = vld [vmem:[%s0 + $0xf0] sm:$0xff]
  %v58 = vld [vmem:[%s0 + $0xf8] sm:$0xff]
  %v59 = vld [vmem:[%s0 + $0x100] sm:$0xff]
  %v60 = vld [vmem:[%s0 + $0x108] sm:$0xff]
  %v61 = vld [vmem:[%s0 + $0x110] sm:$0xff]
  %v62 = vld [vmem:[%s0 + $0x118] sm:$0xff]
  %v63 = vld [vmem:[%s1] sm:$0xf]
  %v64 = vld [vmem:[%s1 + $0x4] sm:$0xf]
  %v65 = vld [vmem:[%s1 + $0x8] sm:$0xf]
  %v66 = vld [vmem:[%s1 + $0xc] sm:$0xf]
  %v67 = vld [vmem:[%s1 + $0x10] sm:$0xf]
  %v68 = vld [vmem:[%s1 + $0x14] sm:$0xf]
  %v69 = vld [vmem:[%s1 + $0x18] sm:$0xf]
  %v70 = vld [vmem:[%s1 + $0x1c] sm:$0xf]
  %v71 = vld [vmem:[%s1 + $0x20] sm:$0xf]
  %v72 = vld [vmem:[%s1 + $0x24] sm:$0xf]
  %v73 = vld [vmem:[%s1 + $0x28] sm:$0xf]
  %v74 = vld [vmem:[%s1 + $0x2c] sm:$0xf]
  %v75 = vld [vmem:[%s1 + $0x30] sm:$0xf]
  %v76 = vld [vmem:[%s1 + $0x34] sm:$0xf]
  %v77 = vld [vmem:[%s1 + $0x38] sm:$0xf]
  %v78 = vld [vmem:[%s1 + $0x3c] sm:$0xf]
  %v79 = vld [vmem:[%s1 + $0x40] sm:$0xf]
  %v80 = vld [vmem:[%s1 + $0x44] sm:$0xf]
  %v81 = vld [vmem:[%s1 + $0x48] sm:$0xf]
  %v82 = vld [vmem:[%s1 + $0x4c] sm:$0xf]
  %v83 = vld [vmem:[%s1 + $0x50] sm:$0xf]
  %v84 = vld [vmem:[%s1 + $0x54] sm:$0xf]
  %v85 = vld [vmem:[%s1 + $0x58] sm:$0xf]
  %v86 = vld [vmem:[%s1 + $0x5c] sm:$0xf]
  %v87 = vld [vmem:[%s1 + $0x60] sm:$0xf]
  %v88 = vld [vmem:[%s1 + $0x64] sm:$0xf]
  %v89 = vld [vmem:[%s1 + $0x68] sm:$0xf]
  %v90 = vld [vmem:[%s1 + $0x6c] sm:$0xf]
  %v91 = vld [vmem:[%s1 + $0x70] sm:$0xf]
  %v92 = vld [vmem:[%s1 + $0x74] sm:$0xf]
  %v93 = vld [vmem:[%s1 + $0x78] sm:$0xf]
  %v94 = vld [vmem:[%s1 + $0x7c] sm:$0xf]
  %v95 = vld [vmem:[%s1 + $0x80] sm:$0xf]
  %v96 = vld [vmem:[%s1 + $0x84] sm:$0xf]
  %v97 = vld [vmem:[%s1 + $0x88] sm:$0xf]
  %v98 = vld [vmem:[%s1 + $0x8c] sm:$0xf]
  %v99 = vld [vmem:[%s1 + $0x90] sm:$0xf]
  %v100 = vld [vmem:[%s1 + $0x94] sm:$0xf]
  %v101 = vld [vmem:[%s1 + $0x98] sm:$0xf]
  %v102 = vld [vmem:[%s1 + $0x9c] sm:$0xf]
  %v103 = vld [vmem:[%s1 + $0xa0] sm:$0xf]
  %v104 = vld [vmem:[%s1 + $0xa4] sm:$0xf]
  %v105 = vld [vmem:[%s1 + $0xa8] sm:$0xf]
  %v106 = vld [vmem:[%s1 + $0xac] sm:$0xf]
  %v107 = vld [vmem:[%s1 + $0xb0] sm:$0xf]
  %v108 = vld [vmem:[%s1 + $0xb4] sm:$0xf]
  %v109 = vld [vmem:[%s1 + $0xb8] sm:$0xf]
  %v110 = vld [vmem:[%s1 + $0xbc] sm:$0xf]
  %v111 = vld [vmem:[%s1 + $0xc0] sm:$0xf]
  %v112 = vld [vmem:[%s1 + $0xc4] sm:$0xf]
  %v113 = vld [vmem:[%s1 + $0xc8] sm:$0xf]
  %v114 = vld [vmem:[%s1 + $0xcc] sm:$0xf]
  %v115 = vld [vmem:[%s1 + $0xd0] sm:$0xf]
  %v116 = vld [vmem:[%s1 + $0xd4] sm:$0xf]
  %v117 = vld [vmem:[%s1 + $0xd8] sm:$0xf]
  %v118 = vld [vmem:[%s1 + $0xdc] sm:$0xf]
  %v119 = vld [vmem:[%s1 + $0xe0] sm:$0xf]
  %v120 = vld [vmem:[%s1 + $0xe4] sm:$0xf]
  %v121 = vld [vmem:[%s1 + $0xe8] sm:$0xf]
  %v122 = vld [vmem:[%s1 + $0xec] sm:$0xf]
  %v123 = vld [vmem:[%s1 + $0xf0] sm:$0xf]
  %v124 = vld [vmem:[%s1 + $0xf4] sm:$0xf]
  %v125 = vld [vmem:[%s1 + $0xf8] sm:$0xf]
  %v126 = vld [vmem:[%s1 + $0xfc] sm:$0xf]
  %v127 = vld [vmem:[%s1 + $0x100] sm:$0xf]
  %v128 = vld [vmem:[%s1 + $0x104] sm:$0xf]
  %v129 = vld [vmem:[%s1 + $0x108] sm:$0xf]
  %v130 = vld [vmem:[%s1 + $0x10c] sm:$0xf]
  %v131 = vld [vmem:[%s1 + $0x110] sm:$0xf]
  %v132 = vld [vmem:[%s1 + $0x114] sm:$0xf]
  %v133 = vld [vmem:[%s1 + $0x118] sm:$0xf]
  %v134 = vld [vmem:[%s1 + $0x11c] sm:$0xf]
  %v135 = vld [vmem:[%s1 + $0x120] sm:$0xf]
  %v136 = vld [vmem:[%s1 + $0x124] sm:$0xf]
  %v137 = vld [vmem:[%s1 + $0x128] sm:$0xf]
  %v138 = vld [vmem:[%s1 + $0x12c] sm:$0xf]
  %v139 = vld [vmem:[%s1 + $0x130] sm:$0xf]
  %v140 = vld [vmem:[%s1 + $0x134] sm:$0xf]
  %v141 = vld [vmem:[%s1 + $0x138] sm:$0xf]
  %v142 = vld [vmem:[%s1 + $0x13c] sm:$0xf]
  %v143 = vld [vmem:[%s1 + $0x140] sm:$0xf]
  %v144 = vld [vmem:[%s1 + $0x144] sm:$0xf]
  %v145 = vld [vmem:[%s1 + $0x148] sm:$0xf]
  %v146 = vld [vmem:[%s1 + $0x14c] sm:$0xf]
  %v147 = vld [vmem:[%s1 + $0x150] sm:$0xf]
  %v148 = vld [vmem:[%s1 + $0x154] sm:$0xf]
  %v149 = vld [vmem:[%s1 + $0x158] sm:$0xf]
  %v150 = vld [vmem:[%s1 + $0x15c] sm:$0xf]
  %v151 = vld [vmem:[%s1 + $0x160] sm:$0xf]
  %v152 = vld [vmem:[%s1 + $0x164] sm:$0xf]
  %v153 = vld [vmem:[%s1 + $0x168] sm:$0xf]
  %v154 = vld [vmem:[%s1 + $0x16c] sm:$0xf]
  %v155 = vld [vmem:[%s1 + $0x170] sm:$0xf]
  %v156 = vld [vmem:[%s1 + $0x174] sm:$0xf]
  %v157 = vld [vmem:[%s1 + $0x178] sm:$0xf]
  %v158 = vld [vmem:[%s1 + $0x17c] sm:$0xf]
  %v159 = vld [vmem:[%s1 + $0x180] sm:$0xf]
  %v160 = vld [vmem:[%s1 + $0x184] sm:$0xf]
  %v161 = vld [vmem:[%s1 + $0x188] sm:$0xf]
  %v162 = vld [vmem:[%s1 + $0x18c] sm:$0xf]
  %v163 = vld [vmem:[%s1 + $0x190] sm:$0xf]
  %v164 = vld [vmem:[%s1 + $0x194] sm:$0xf]
  %v165 = vld [vmem:[%s1 + $0x198] sm:$0xf]
  %v166 = vld [vmem:[%s1 + $0x19c] sm:$0xf]
  %v167 = vld [vmem:[%s1 + $0x1a0] sm:$0xf]
  %v168 = vld [vmem:[%s1 + $0x1a4] sm:$0xf]
  %v169 = vld [vmem:[%s1 + $0x1a8] sm:$0xf]
  %v170 = vld [vmem:[%s1 + $0x1ac] sm:$0xf]
  %v171 = vld [vmem:[%s1 + $0x1b0] sm:$0xf]
  %v172 = vld [vmem:[%s1 + $0x1b4] sm:$0xf]
  %v173 = vld [vmem:[%s1 + $0x1b8] sm:$0xf]
  %v174 = vld [vmem:[%s1 + $0x1bc] sm:$0xf]
  %v175 = vld [vmem:[%s1 + $0x1c0] sm:$0xf]
  %v176 = vld [vmem:[%s1 + $0x1c4] sm:$0xf]
  %v177 = vld [vmem:[%s1 + $0x1c8] sm:$0xf]
  %v178 = vld [vmem:[%s1 + $0x1cc] sm:$0xf]
  %v179 = vld [vmem:[%s1 + $0x1d0] sm:$0xf]
  %v180 = vld [vmem:[%s1 + $0x1d4] sm:$0xf]
  %v181 = vld [vmem:[%s1 + $0x1d8] sm:$0xf]
  %v182 = vld [vmem:[%s1 + $0x1dc] sm:$0xf]
  %v183 = vld [vmem:[%s1 + $0x1e0] sm:$0xf]
  %v184 = vld [vmem:[%s1 + $0x1e4] sm:$0xf]
  %v185 = vld [vmem:[%s1 + $0x1e8] sm:$0xf]
  %v186 = vld [vmem:[%s1 + $0x1ec] sm:$0xf]
  %v187 = vld [vmem:[%s1 + $0x1f0] sm:$0xf]
  %v188 = vld [vmem:[%s1 + $0x1f4] sm:$0xf]
  %v189 = vld [vmem:[%s1 + $0x1f8] sm:$0xf]
  %v190 = vld [vmem:[%s1 + $0x1fc] sm:$0xf]
  %v191 = vld [vmem:[%s2] sm:$0x1]
  %v193 = vlaneseq
  %v194 = vshrl.u32 %v193, 7
  %v195 = vsub.s32 0, %v194
  %v196 = vrot.slane %v191, %v195
  %v234 = vunpack.c.l.b16 %v27
  %v235 = vunpack.c.h.b16 %v27
  %v236 = vunpack.c.l.b16 %v28
  %v237 = vunpack.c.h.b16 %v28
  %v238 = vunpack.c.l.b16 %v29
  %v239 = vunpack.c.h.b16 %v29
  %v240 = vunpack.c.l.b16 %v30
  %v241 = vunpack.c.h.b16 %v30
  %v242 = vunpack.c.l.b16 %v31
  %v243 = vunpack.c.h.b16 %v31
  %v244 = vunpack.c.l.b16 %v32
  %v245 = vunpack.c.h.b16 %v32
  %v246 = vunpack.c.l.b16 %v33
  %v247 = vunpack.c.h.b16 %v33
  %v248 = vunpack.c.l.b16 %v34
  %v249 = vunpack.c.h.b16 %v34
  %v250 = vunpack.c.l.b16 %v35
  %v251 = vunpack.c.h.b16 %v35
  %v252 = vunpack.c.l.b16 %v36
  %v253 = vunpack.c.h.b16 %v36
  %v254 = vunpack.c.l.b16 %v37
  %v255 = vunpack.c.h.b16 %v37
  %v256 = vunpack.c.l.b16 %v38
  %v257 = vunpack.c.h.b16 %v38
  %v258 = vunpack.c.l.b16 %v39
  %v259 = vunpack.c.h.b16 %v39
  %v260 = vunpack.c.l.b16 %v40
  %v261 = vunpack.c.h.b16 %v40
  %v262 = vunpack.c.l.b16 %v41
  %v263 = vunpack.c.h.b16 %v41
  %v264 = vunpack.c.l.b16 %v42
  %v265 = vunpack.c.h.b16 %v42
  %v266 = vunpack.c.l.b16 %v43
  %v267 = vunpack.c.h.b16 %v43
  %v268 = vunpack.c.l.b16 %v44
  %v269 = vunpack.c.h.b16 %v44
  %v270 = vunpack.c.l.b16 %v45
  %v271 = vunpack.c.h.b16 %v45
  %v272 = vunpack.c.l.b16 %v46
  %v273 = vunpack.c.h.b16 %v46
  %v274 = vunpack.c.l.b16 %v47
  %v275 = vunpack.c.h.b16 %v47
  %v276 = vunpack.c.l.b16 %v48
  %v277 = vunpack.c.h.b16 %v48
  %v278 = vunpack.c.l.b16 %v49
  %v279 = vunpack.c.h.b16 %v49
  %v280 = vunpack.c.l.b16 %v50
  %v281 = vunpack.c.h.b16 %v50
  %v282 = vunpack.c.l.b16 %v51
  %v283 = vunpack.c.h.b16 %v51
  %v284 = vunpack.c.l.b16 %v52
  %v285 = vunpack.c.h.b16 %v52
  %v286 = vunpack.c.l.b16 %v53
  %v287 = vunpack.c.h.b16 %v53
  %v288 = vunpack.c.l.b16 %v54
  %v289 = vunpack.c.h.b16 %v54
  %v290 = vunpack.c.l.b16 %v55
  %v291 = vunpack.c.h.b16 %v55
  %v292 = vunpack.c.l.b16 %v56
  %v293 = vunpack.c.h.b16 %v56
  %v294 = vunpack.c.l.b16 %v57
  %v295 = vunpack.c.h.b16 %v57
  %v296 = vunpack.c.l.b16 %v58
  %v297 = vunpack.c.h.b16 %v58
  %v298 = vunpack.c.l.b16 %v59
  %v299 = vunpack.c.h.b16 %v59
  %v300 = vunpack.c.l.b16 %v60
  %v301 = vunpack.c.h.b16 %v60
  %v302 = vunpack.c.l.b16 %v61
  %v303 = vunpack.c.h.b16 %v61
  %v304 = vunpack.c.l.b16 %v62
  %v305 = vunpack.c.h.b16 %v62
  %v306 = vpack.c.b16 %v242, %v234
  %v307 = vpack.c.b16 %v243, %v235
  %v308 = vpack.c.b16 %v244, %v236
  %v309 = vpack.c.b16 %v245, %v237
  %v310 = vpack.c.b16 %v246, %v238
  %v311 = vpack.c.b16 %v247, %v239
  %v312 = vpack.c.b16 %v248, %v240
  %v313 = vpack.c.b16 %v249, %v241
  %v314 = vpack.c.b16 %v258, %v250
  %v315 = vpack.c.b16 %v259, %v251
  %v316 = vpack.c.b16 %v260, %v252
  %v317 = vpack.c.b16 %v261, %v253
  %v318 = vpack.c.b16 %v262, %v254
  %v319 = vpack.c.b16 %v263, %v255
  %v320 = vpack.c.b16 %v264, %v256
  %v321 = vpack.c.b16 %v265, %v257
  %v322 = vpack.c.b16 %v274, %v266
  %v323 = vpack.c.b16 %v275, %v267
  %v324 = vpack.c.b16 %v276, %v268
  %v325 = vpack.c.b16 %v277, %v269
  %v326 = vpack.c.b16 %v278, %v270
  %v327 = vpack.c.b16 %v279, %v271
  %v328 = vpack.c.b16 %v280, %v272
  %v329 = vpack.c.b16 %v281, %v273
  %v330 = vpack.c.b16 %v290, %v282
  %v331 = vpack.c.b16 %v291, %v283
  %v332 = vpack.c.b16 %v292, %v284
  %v333 = vpack.c.b16 %v293, %v285
  %v334 = vpack.c.b16 %v294, %v286
  %v335 = vpack.c.b16 %v295, %v287
  %v336 = vpack.c.b16 %v296, %v288
  %v337 = vpack.c.b16 %v297, %v289
  %v338 = vpack.c.b16 %v298, %v298
  %v339 = vpack.c.b16 %v299, %v299
  %v340 = vpack.c.b16 %v300, %v300
  %v341 = vpack.c.b16 %v301, %v301
  %v342 = vpack.c.b16 %v302, %v302
  %v343 = vpack.c.b16 %v303, %v303
  %v344 = vpack.c.b16 %v304, %v304
  %v345 = vpack.c.b16 %v305, %v305
  %v514 = vunpack.c.l.b16 %v63
  %v515 = vunpack.c.l.b16 %v64
  %v516 = vunpack.c.l.b16 %v65
  %v517 = vunpack.c.l.b16 %v66
  %v518 = vunpack.c.l.b16 %v67
  %v519 = vunpack.c.l.b16 %v68
  %v520 = vunpack.c.l.b16 %v69
  %v521 = vunpack.c.l.b16 %v70
  %v522 = vunpack.c.l.b16 %v71
  %v523 = vunpack.c.l.b16 %v72
  %v524 = vunpack.c.l.b16 %v73
  %v525 = vunpack.c.l.b16 %v74
  %v526 = vunpack.c.l.b16 %v75
  %v527 = vunpack.c.l.b16 %v76
  %v528 = vunpack.c.l.b16 %v77
  %v529 = vunpack.c.l.b16 %v78
  %v530 = vunpack.c.l.b16 %v79
  %v531 = vunpack.c.l.b16 %v80
  %v532 = vunpack.c.l.b16 %v81
  %v533 = vunpack.c.l.b16 %v82
  %v534 = vunpack.c.l.b16 %v83
  %v535 = vunpack.c.l.b16 %v84
  %v536 = vunpack.c.l.b16 %v85
  %v537 = vunpack.c.l.b16 %v86
  %v538 = vunpack.c.l.b16 %v87
  %v539 = vunpack.c.l.b16 %v88
  %v540 = vunpack.c.l.b16 %v89
  %v541 = vunpack.c.l.b16 %v90
  %v542 = vunpack.c.l.b16 %v91
  %v543 = vunpack.c.l.b16 %v92
  %v544 = vunpack.c.l.b16 %v93
  %v545 = vunpack.c.l.b16 %v94
  %v546 = vunpack.c.l.b16 %v95
  %v547 = vunpack.c.l.b16 %v96
  %v548 = vunpack.c.l.b16 %v97
  %v549 = vunpack.c.l.b16 %v98
  %v550 = vunpack.c.l.b16 %v99
  %v551 = vunpack.c.l.b16 %v100
  %v552 = vunpack.c.l.b16 %v101
  %v553 = vunpack.c.l.b16 %v102
  %v554 = vunpack.c.l.b16 %v103
  %v555 = vunpack.c.l.b16 %v104
  %v556 = vunpack.c.l.b16 %v105
  %v557 = vunpack.c.l.b16 %v106
  %v558 = vunpack.c.l.b16 %v107
  %v559 = vunpack.c.l.b16 %v108
  %v560 = vunpack.c.l.b16 %v109
  %v561 = vunpack.c.l.b16 %v110
  %v562 = vunpack.c.l.b16 %v111
  %v563 = vunpack.c.l.b16 %v112
  %v564 = vunpack.c.l.b16 %v113
  %v565 = vunpack.c.l.b16 %v114
  %v566 = vunpack.c.l.b16 %v115
  %v567 = vunpack.c.l.b16 %v116
  %v568 = vunpack.c.l.b16 %v117
  %v569 = vunpack.c.l.b16 %v118
  %v570 = vunpack.c.l.b16 %v119
  %v571 = vunpack.c.l.b16 %v120
  %v572 = vunpack.c.l.b16 %v121
  %v573 = vunpack.c.l.b16 %v122
  %v574 = vunpack.c.l.b16 %v123
  %v575 = vunpack.c.l.b16 %v124
  %v576 = vunpack.c.l.b16 %v125
  %v577 = vunpack.c.l.b16 %v126
  %v578 = vunpack.c.l.b16 %v127
  %v579 = vunpack.c.l.b16 %v128
  %v580 = vunpack.c.l.b16 %v129
  %v581 = vunpack.c.l.b16 %v130
  %v582 = vunpack.c.l.b16 %v131
  %v583 = vunpack.c.l.b16 %v132
  %v584 = vunpack.c.l.b16 %v133
  %v585 = vunpack.c.l.b16 %v134
  %v586 = vunpack.c.l.b16 %v135
  %v587 = vunpack.c.l.b16 %v136
  %v588 = vunpack.c.l.b16 %v137
  %v589 = vunpack.c.l.b16 %v138
  %v590 = vunpack.c.l.b16 %v139
  %v591 = vunpack.c.l.b16 %v140
  %v592 = vunpack.c.l.b16 %v141
  %v593 = vunpack.c.l.b16 %v142
  %v594 = vunpack.c.l.b16 %v143
  %v595 = vunpack.c.l.b16 %v144
  %v596 = vunpack.c.l.b16 %v145
  %v597 = vunpack.c.l.b16 %v146
  %v598 = vunpack.c.l.b16 %v147
  %v599 = vunpack.c.l.b16 %v148
  %v600 = vunpack.c.l.b16 %v149
  %v601 = vunpack.c.l.b16 %v150
  %v602 = vunpack.c.l.b16 %v151
  %v603 = vunpack.c.l.b16 %v152
  %v604 = vunpack.c.l.b16 %v153
  %v605 = vunpack.c.l.b16 %v154
  %v606 = vunpack.c.l.b16 %v155
  %v607 = vunpack.c.l.b16 %v156
  %v608 = vunpack.c.l.b16 %v157
  %v609 = vunpack.c.l.b16 %v158
  %v610 = vunpack.c.l.b16 %v159
  %v611 = vunpack.c.l.b16 %v160
  %v612 = vunpack.c.l.b16 %v161
  %v613 = vunpack.c.l.b16 %v162
  %v614 = vunpack.c.l.b16 %v163
  %v615 = vunpack.c.l.b16 %v164
  %v616 = vunpack.c.l.b16 %v165
  %v617 = vunpack.c.l.b16 %v166
  %v618 = vunpack.c.l.b16 %v167
  %v619 = vunpack.c.l.b16 %v168
  %v620 = vunpack.c.l.b16 %v169
  %v621 = vunpack.c.l.b16 %v170
  %v622 = vunpack.c.l.b16 %v171
  %v623 = vunpack.c.l.b16 %v172
  %v624 = vunpack.c.l.b16 %v173
  %v625 = vunpack.c.l.b16 %v174
  %v626 = vunpack.c.l.b16 %v175
  %v627 = vunpack.c.l.b16 %v176
  %v628 = vunpack.c.l.b16 %v177
  %v629 = vunpack.c.l.b16 %v178
  %v630 = vunpack.c.l.b16 %v179
  %v631 = vunpack.c.l.b16 %v180
  %v632 = vunpack.c.l.b16 %v181
  %v633 = vunpack.c.l.b16 %v182
  %v634 = vunpack.c.l.b16 %v183
  %v635 = vunpack.c.l.b16 %v184
  %v636 = vunpack.c.l.b16 %v185
  %v637 = vunpack.c.l.b16 %v186
  %v638 = vunpack.c.l.b16 %v187
  %v639 = vunpack.c.l.b16 %v188
  %v640 = vunpack.c.l.b16 %v189
  %v641 = vunpack.c.l.b16 %v190
  %v642 = vpack.c.b16 %v515, %v514
  %v643 = vpack.c.b16 %v517, %v516
  %v644 = vpack.c.b16 %v519, %v518
  %v645 = vpack.c.b16 %v521, %v520
  %v646 = vpack.c.b16 %v523, %v522
  %v647 = vpack.c.b16 %v525, %v524
  %v648 = vpack.c.b16 %v527, %v526
  %v649 = vpack.c.b16 %v529, %v528
  %v650 = vpack.c.b16 %v531, %v530
  %v651 = vpack.c.b16 %v533, %v532
  %v652 = vpack.c.b16 %v535, %v534
  %v653 = vpack.c.b16 %v537, %v536
  %v654 = vpack.c.b16 %v539, %v538
  %v655 = vpack.c.b16 %v541, %v540
  %v656 = vpack.c.b16 %v543, %v542
  %v657 = vpack.c.b16 %v545, %v544
  %v658 = vpack.c.b16 %v547, %v546
  %v659 = vpack.c.b16 %v549, %v548
  %v660 = vpack.c.b16 %v551, %v550
  %v661 = vpack.c.b16 %v553, %v552
  %v662 = vpack.c.b16 %v555, %v554
  %v663 = vpack.c.b16 %v557, %v556
  %v664 = vpack.c.b16 %v559, %v558
  %v665 = vpack.c.b16 %v561, %v560
  %v666 = vpack.c.b16 %v563, %v562
  %v667 = vpack.c.b16 %v565, %v564
  %v668 = vpack.c.b16 %v567, %v566
  %v669 = vpack.c.b16 %v569, %v568
  %v670 = vpack.c.b16 %v571, %v570
  %v671 = vpack.c.b16 %v573, %v572
  %v672 = vpack.c.b16 %v575, %v574
  %v673 = vpack.c.b16 %v577, %v576
  %v674 = vpack.c.b16 %v579, %v578
  %v675 = vpack.c.b16 %v581, %v580
  %v676 = vpack.c.b16 %v583, %v582
  %v677 = vpack.c.b16 %v585, %v584
  %v678 = vpack.c.b16 %v587, %v586
  %v679 = vpack.c.b16 %v589, %v588
  %v680 = vpack.c.b16 %v591, %v590
  %v681 = vpack.c.b16 %v593, %v592
  %v682 = vpack.c.b16 %v595, %v594
  %v683 = vpack.c.b16 %v597, %v596
  %v684 = vpack.c.b16 %v599, %v598
  %v685 = vpack.c.b16 %v601, %v600
  %v686 = vpack.c.b16 %v603, %v602
  %v687 = vpack.c.b16 %v605, %v604
  %v688 = vpack.c.b16 %v607, %v606
  %v689 = vpack.c.b16 %v609, %v608
  %v690 = vpack.c.b16 %v611, %v610
  %v691 = vpack.c.b16 %v613, %v612
  %v692 = vpack.c.b16 %v615, %v614
  %v693 = vpack.c.b16 %v617, %v616
  %v694 = vpack.c.b16 %v619, %v618
  %v695 = vpack.c.b16 %v621, %v620
  %v696 = vpack.c.b16 %v623, %v622
  %v697 = vpack.c.b16 %v625, %v624
  %v698 = vpack.c.b16 %v627, %v626
  %v699 = vpack.c.b16 %v629, %v628
  %v700 = vpack.c.b16 %v631, %v630
  %v701 = vpack.c.b16 %v633, %v632
  %v702 = vpack.c.b16 %v635, %v634
  %v703 = vpack.c.b16 %v637, %v636
  %v704 = vpack.c.b16 %v639, %v638
  %v705 = vpack.c.b16 %v641, %v640
  %770 = vmatprep.subr.bf16.mxu0 0
  %771 = vmatpush1.bf16.msra.mxu0 %v642
  %772 = vmatprep.subr.bf16.mxu0 0
  %773 = vmatpush1.bf16.msra.mxu0 %v643
  %774 = vmatprep.subr.bf16.mxu0 0
  %775 = vmatpush1.bf16.msra.mxu0 %v644
  %776 = vmatprep.subr.bf16.mxu0 0
  %777 = vmatpush1.bf16.msra.mxu0 %v645
  %778 = vmatprep.subr.bf16.mxu0 0
  %779 = vmatpush1.bf16.msra.mxu0 %v646
  %780 = vmatprep.subr.bf16.mxu0 0
  %781 = vmatpush1.bf16.msra.mxu0 %v647
  %782 = vmatprep.subr.bf16.mxu0 0
  %783 = vmatpush1.bf16.msra.mxu0 %v648
  %784 = vmatprep.subr.bf16.mxu0 0
  %785 = vmatpush1.bf16.msra.mxu0 %v649
  %786 = vmatprep.subr.bf16.mxu0 0
  %787 = vmatpush1.bf16.msra.mxu0 %v650
  %788 = vmatprep.subr.bf16.mxu0 0
  %789 = vmatpush1.bf16.msra.mxu0 %v651
  %790 = vmatprep.subr.bf16.mxu0 0
  %791 = vmatpush1.bf16.msra.mxu0 %v652
  %792 = vmatprep.subr.bf16.mxu0 0
  %793 = vmatpush1.bf16.msra.mxu0 %v653
  %794 = vmatprep.subr.bf16.mxu0 0
  %795 = vmatpush1.bf16.msra.mxu0 %v654
  %796 = vmatprep.subr.bf16.mxu0 0
  %797 = vmatpush1.bf16.msra.mxu0 %v655
  %798 = vmatprep.subr.bf16.mxu0 0
  %799 = vmatpush1.bf16.msra.mxu0 %v656
  %800 = vmatprep.subr.bf16.mxu0 0
  %801 = vmatpush1.bf16.msra.mxu0 %v657
  %802 = vmatprep.mubr.bf16.mxu0 %v307
  %803 = vmatmul.mubr.bf16.gmra.mrb[0].mxu0 %v306
  %v804 = vpop.f32.mrb[0].mxu0
  %v805 = vadd.f32 %v196, %v804
  %v806 = vpop.f32.mrb[0].mxu0
  %v807 = vpop.f32.mrb[0].mxu0
  %v808 = vadd.f32 %v196, %v807
  %v809 = vpop.f32.mrb[0].mxu0
  %810 = vmatprep.mubr.bf16.mxu0 %v315
  %811 = vmatmul.mubr.bf16.gmra.mrb[0].mxu0 %v314
  %v812 = vpop.f32.mrb[0].mxu0
  %v813 = vadd.f32 %v196, %v812
  %v814 = vpop.f32.mrb[0].mxu0
  %v815 = vpop.f32.mrb[0].mxu0
  %v816 = vadd.f32 %v196, %v815
  %v817 = vpop.f32.mrb[0].mxu0
  %818 = vmatprep.mubr.bf16.mxu0 %v323
  %819 = vmatmul.mubr.bf16.gmra.mrb[0].mxu0 %v322
  %v820 = vpop.f32.mrb[0].mxu0
  %v821 = vadd.f32 %v196, %v820
  %v822 = vpop.f32.mrb[0].mxu0
  %v823 = vpop.f32.mrb[0].mxu0
  %v824 = vadd.f32 %v196, %v823
  %v825 = vpop.f32.mrb[0].mxu0
  %826 = vmatprep.mubr.bf16.mxu0 %v331
  %827 = vmatmul.mubr.bf16.gmra.mrb[0].mxu0 %v330
  %v828 = vpop.f32.mrb[0].mxu0
  %v829 = vadd.f32 %v196, %v828
  %v830 = vpop.f32.mrb[0].mxu0
  %v831 = vpop.f32.mrb[0].mxu0
  %v832 = vadd.f32 %v196, %v831
  %v833 = vpop.f32.mrb[0].mxu0
  %834 = vmatprep.mubr.bf16.mxu0 %v339
  %835 = vmatmul.mubr.bf16.gmra.mrb[0].mxu0 %v338
  %v836 = vpop.f32.mrb[0].mxu0
  %v837 = vadd.f32 %v196, %v836
  %v838 = vpop.f32.mrb[0].mxu0
  %v839 = vpop.f32.mrb[0].mxu0
  %v840 = vpop.f32.mrb[0].mxu0
  %841 = vdwg.mxu0
  %842 = vmatprep.subr.bf16.mxu0 0
  %843 = vmatpush1.bf16.msra.mxu0 %v658
  %844 = vmatprep.subr.bf16.mxu0 0
  %845 = vmatpush1.bf16.msra.mxu0 %v659
  %846 = vmatprep.subr.bf16.mxu0 0
  %847 = vmatpush1.bf16.msra.mxu0 %v660
  %848 = vmatprep.subr.bf16.mxu0 0
  %849 = vmatpush1.bf16.msra.mxu0 %v661
  %850 = vmatprep.subr.bf16.mxu0 0
  %851 = vmatpush1.bf16.msra.mxu0 %v662
  %852 = vmatprep.subr.bf16.mxu0 0
  %853 = vmatpush1.bf16.msra.mxu0 %v663
  %854 = vmatprep.subr.bf16.mxu0 0
  %855 = vmatpush1.bf16.msra.mxu0 %v664
  %856 = vmatprep.subr.bf16.mxu0 0
  %857 = vmatpush1.bf16.msra.mxu0 %v665
  %858 = vmatprep.subr.bf16.mxu0 0
  %859 = vmatpush1.bf16.msra.mxu0 %v666
  %860 = vmatprep.subr.bf16.mxu0 0
  %861 = vmatpush1.bf16.msra.mxu0 %v667
  %862 = vmatprep.subr.bf16.mxu0 0
  %863 = vmatpush1.bf16.msra.mxu0 %v668
  %864 = vmatprep.subr.bf16.mxu0 0
  %865 = vmatpush1.bf16.msra.mxu0 %v669
  %866 = vmatprep.subr.bf16.mxu0 0
  %867 = vmatpush1.bf16.msra.mxu0 %v670
  %868 = vmatprep.subr.bf16.mxu0 0
  %869 = vmatpush1.bf16.msra.mxu0 %v671
  %870 = vmatprep.subr.bf16.mxu0 0
  %871 = vmatpush1.bf16.msra.mxu0 %v672
  %872 = vmatprep.subr.bf16.mxu0 0
  %873 = vmatpush1.bf16.msra.mxu0 %v673
  %874 = vmatprep.mubr.bf16.mxu0 %v309
  %875 = vmatmul.mubr.bf16.gmra.mrb[0].mxu0 %v308
  %v876 = vpop.f32.mrb[0].mxu0
  %v877 = vadd.f32 %v805, %v876
  %v878 = vpop.f32.mrb[0].mxu0
  %v879 = vpop.f32.mrb[0].mxu0
  %v880 = vadd.f32 %v808, %v879
  %v881 = vpop.f32.mrb[0].mxu0
  %882 = vmatprep.mubr.bf16.mxu0 %v317
  %883 = vmatmul.mubr.bf16.gmra.mrb[0].mxu0 %v316
  %v884 = vpop.f32.mrb[0].mxu0
  %v885 = vadd.f32 %v813, %v884
  %v886 = vpop.f32.mrb[0].mxu0
  %v887 = vpop.f32.mrb[0].mxu0
  %v888 = vadd.f32 %v816, %v887
  %v889 = vpop.f32.mrb[0].mxu0
  %890 = vmatprep.mubr.bf16.mxu0 %v325
  %891 = vmatmul.mubr.bf16.gmra.mrb[0].mxu0 %v324
  %v892 = vpop.f32.mrb[0].mxu0
  %v893 = vadd.f32 %v821, %v892
  %v894 = vpop.f32.mrb[0].mxu0
  %v895 = vpop.f32.mrb[0].mxu0
  %v896 = vadd.f32 %v824, %v895
  %v897 = vpop.f32.mrb[0].mxu0
  %898 = vmatprep.mubr.bf16.mxu0 %v333
  %899 = vmatmul.mubr.bf16.gmra.mrb[0].mxu0 %v332
  %v900 = vpop.f32.mrb[0].mxu0
  %v901 = vadd.f32 %v829, %v900
  %v902 = vpop.f32.mrb[0].mxu0
  %v903 = vpop.f32.mrb[0].mxu0
  %v904 = vadd.f32 %v832, %v903
  %v905 = vpop.f32.mrb[0].mxu0
  %906 = vmatprep.mubr.bf16.mxu0 %v341
  %907 = vmatmul.mubr.bf16.gmra.mrb[0].mxu0 %v340
  %v908 = vpop.f32.mrb[0].mxu0
  %v909 = vadd.f32 %v837, %v908
  %v910 = vpop.f32.mrb[0].mxu0
  %v911 = vpop.f32.mrb[0].mxu0
  %v912 = vpop.f32.mrb[0].mxu0
  %913 = vdwg.mxu0
  %914 = vmatprep.subr.bf16.mxu0 0
  %915 = vmatpush1.bf16.msra.mxu0 %v674
  %916 = vmatprep.subr.bf16.mxu0 0
  %917 = vmatpush1.bf16.msra.mxu0 %v675
  %918 = vmatprep.subr.bf16.mxu0 0
  %919 = vmatpush1.bf16.msra.mxu0 %v676
  %920 = vmatprep.subr.bf16.mxu0 0
  %921 = vmatpush1.bf16.msra.mxu0 %v677
  %922 = vmatprep.subr.bf16.mxu0 0
  %923 = vmatpush1.bf16.msra.mxu0 %v678
  %924 = vmatprep.subr.bf16.mxu0 0
  %925 = vmatpush1.bf16.msra.mxu0 %v679
  %926 = vmatprep.subr.bf16.mxu0 0
  %927 = vmatpush1.bf16.msra.mxu0 %v680
  %928 = vmatprep.subr.bf16.mxu0 0
  %929 = vmatpush1.bf16.msra.mxu0 %v681
  %930 = vmatprep.subr.bf16.mxu0 0
  %931 = vmatpush1.bf16.msra.mxu0 %v682
  %932 = vmatprep.subr.bf16.mxu0 0
  %933 = vmatpush1.bf16.msra.mxu0 %v683
  %934 = vmatprep.subr.bf16.mxu0 0
  %935 = vmatpush1.bf16.msra.mxu0 %v684
  %936 = vmatprep.subr.bf16.mxu0 0
  %937 = vmatpush1.bf16.msra.mxu0 %v685
  %938 = vmatprep.subr.bf16.mxu0 0
  %939 = vmatpush1.bf16.msra.mxu0 %v686
  %940 = vmatprep.subr.bf16.mxu0 0
  %941 = vmatpush1.bf16.msra.mxu0 %v687
  %942 = vmatprep.subr.bf16.mxu0 0
  %943 = vmatpush1.bf16.msra.mxu0 %v688
  %944 = vmatprep.subr.bf16.mxu0 0
  %945 = vmatpush1.bf16.msra.mxu0 %v689
  %946 = vmatprep.mubr.bf16.mxu0 %v311
  %947 = vmatmul.mubr.bf16.gmra.mrb[0].mxu0 %v310
  %v948 = vpop.f32.mrb[0].mxu0
  %v949 = vadd.f32 %v877, %v948
  %v950 = vpop.f32.mrb[0].mxu0
  %v951 = vpop.f32.mrb[0].mxu0
  %v952 = vadd.f32 %v880, %v951
  %v953 = vpop.f32.mrb[0].mxu0
  %954 = vmatprep.mubr.bf16.mxu0 %v319
  %955 = vmatmul.mubr.bf16.gmra.mrb[0].mxu0 %v318
  %v956 = vpop.f32.mrb[0].mxu0
  %v957 = vadd.f32 %v885, %v956
  %v958 = vpop.f32.mrb[0].mxu0
  %v959 = vpop.f32.mrb[0].mxu0
  %v960 = vadd.f32 %v888, %v959
  %v961 = vpop.f32.mrb[0].mxu0
  %962 = vmatprep.mubr.bf16.mxu0 %v327
  %963 = vmatmul.mubr.bf16.gmra.mrb[0].mxu0 %v326
  %v964 = vpop.f32.mrb[0].mxu0
  %v965 = vadd.f32 %v893, %v964
  %v966 = vpop.f32.mrb[0].mxu0
  %v967 = vpop.f32.mrb[0].mxu0
  %v968 = vadd.f32 %v896, %v967
  %v969 = vpop.f32.mrb[0].mxu0
  %970 = vmatprep.mubr.bf16.mxu0 %v335
  %971 = vmatmul.mubr.bf16.gmra.mrb[0].mxu0 %v334
  %v972 = vpop.f32.mrb[0].mxu0
  %v973 = vadd.f32 %v901, %v972
  %v974 = vpop.f32.mrb[0].mxu0
  %v975 = vpop.f32.mrb[0].mxu0
  %v976 = vadd.f32 %v904, %v975
  %v977 = vpop.f32.mrb[0].mxu0
  %978 = vmatprep.mubr.bf16.mxu0 %v343
  %979 = vmatmul.mubr.bf16.gmra.mrb[0].mxu0 %v342
  %v980 = vpop.f32.mrb[0].mxu0
  %v981 = vadd.f32 %v909, %v980
  %v982 = vpop.f32.mrb[0].mxu0
  %v983 = vpop.f32.mrb[0].mxu0
  %v984 = vpop.f32.mrb[0].mxu0
  %985 = vdwg.mxu0
  %986 = vmatprep.subr.bf16.mxu0 0
  %987 = vmatpush1.bf16.msra.mxu0 %v690
  %988 = vmatprep.subr.bf16.mxu0 0
  %989 = vmatpush1.bf16.msra.mxu0 %v691
  %990 = vmatprep.subr.bf16.mxu0 0
  %991 = vmatpush1.bf16.msra.mxu0 %v692
  %992 = vmatprep.subr.bf16.mxu0 0
  %993 = vmatpush1.bf16.msra.mxu0 %v693
  %994 = vmatprep.subr.bf16.mxu0 0
  %995 = vmatpush1.bf16.msra.mxu0 %v694
  %996 = vmatprep.subr.bf16.mxu0 0
  %997 = vmatpush1.bf16.msra.mxu0 %v695
  %998 = vmatprep.subr.bf16.mxu0 0
  %999 = vmatpush1.bf16.msra.mxu0 %v696
  %1000 = vmatprep.subr.bf16.mxu0 0
  %1001 = vmatpush1.bf16.msra.mxu0 %v697
  %1002 = vmatprep.subr.bf16.mxu0 0
  %1003 = vmatpush1.bf16.msra.mxu0 %v698
  %1004 = vmatprep.subr.bf16.mxu0 0
  %1005 = vmatpush1.bf16.msra.mxu0 %v699
  %1006 = vmatprep.subr.bf16.mxu0 0
  %1007 = vmatpush1.bf16.msra.mxu0 %v700
  %1008 = vmatprep.subr.bf16.mxu0 0
  %1009 = vmatpush1.bf16.msra.mxu0 %v701
  %1010 = vmatprep.subr.bf16.mxu0 0
  %1011 = vmatpush1.bf16.msra.mxu0 %v702
  %1012 = vmatprep.subr.bf16.mxu0 0
  %1013 = vmatpush1.bf16.msra.mxu0 %v703
  %1014 = vmatprep.subr.bf16.mxu0 0
  %1015 = vmatpush1.bf16.msra.mxu0 %v704
  %1016 = vmatprep.subr.bf16.mxu0 0
  %1017 = vmatpush1.bf16.msra.mxu0 %v705
  %1018 = vmatprep.mubr.bf16.mxu0 %v313
  %1019 = vmatmul.mubr.bf16.gmra.mrb[0].mxu0 %v312
  %v1020 = vpop.f32.mrb[0].mxu0
  %v1021 = vadd.f32 %v949, %v1020
  %v1022 = vpop.f32.mrb[0].mxu0
  %v1023 = vpop.f32.mrb[0].mxu0
  %v1024 = vadd.f32 %v952, %v1023
  %v1025 = vpop.f32.mrb[0].mxu0
  %1026 = vmatprep.mubr.bf16.mxu0 %v321
  %1027 = vmatmul.mubr.bf16.gmra.mrb[0].mxu0 %v320
  %v1028 = vpop.f32.mrb[0].mxu0
  %v1029 = vadd.f32 %v957, %v1028
  %v1030 = vpop.f32.mrb[0].mxu0
  %v1031 = vpop.f32.mrb[0].mxu0
  %v1032 = vadd.f32 %v960, %v1031
  %v1033 = vpop.f32.mrb[0].mxu0
  %1034 = vmatprep.mubr.bf16.mxu0 %v329
  %1035 = vmatmul.mubr.bf16.gmra.mrb[0].mxu0 %v328
  %v1036 = vpop.f32.mrb[0].mxu0
  %v1037 = vadd.f32 %v965, %v1036
  %v1038 = vpop.f32.mrb[0].mxu0
  %v1039 = vpop.f32.mrb[0].mxu0
  %v1040 = vadd.f32 %v968, %v1039
  %v1041 = vpop.f32.mrb[0].mxu0
  %1042 = vmatprep.mubr.bf16.mxu0 %v337
  %1043 = vmatmul.mubr.bf16.gmra.mrb[0].mxu0 %v336
  %v1044 = vpop.f32.mrb[0].mxu0
  %v1045 = vadd.f32 %v973, %v1044
  %v1046 = vpop.f32.mrb[0].mxu0
  %v1047 = vpop.f32.mrb[0].mxu0
  %v1048 = vadd.f32 %v976, %v1047
  %v1049 = vpop.f32.mrb[0].mxu0
  %1050 = vmatprep.mubr.bf16.mxu0 %v345
  %1051 = vmatmul.mubr.bf16.gmra.mrb[0].mxu0 %v344
  %v1052 = vpop.f32.mrb[0].mxu0
  %v1053 = vadd.f32 %v981, %v1052
  %v1054 = vpop.f32.mrb[0].mxu0
  %v1055 = vpop.f32.mrb[0].mxu0
  %v1056 = vpop.f32.mrb[0].mxu0
  %1057 = vdwg.mxu0
  %v1058 = vmax.f32 %v1021, 0.0
  %v1059 = vmax.f32 %v1024, 0.0
  %v1060 = vmax.f32 %v1029, 0.0
  %v1061 = vmax.f32 %v1032, 0.0
  %v1062 = vmax.f32 %v1037, 0.0
  %v1063 = vmax.f32 %v1040, 0.0
  %v1064 = vmax.f32 %v1045, 0.0
  %v1065 = vmax.f32 %v1048, 0.0
  %v1066 = vmax.f32 %v1053, 0.0
  %v1067 = vpack.c.bf16 %v1059, %v1058
  %v1068 = vpack.c.bf16 %v1061, %v1060
  %v1069 = vpack.c.bf16 %v1063, %v1062
  %v1070 = vpack.c.bf16 %v1065, %v1064
  %v1071 = vpack.c.bf16 %v1066, %v1066
  %v1072 = vld [vmem:[%s3] sm:$0xf]
  %v1073 = vld [vmem:[%s3 + $0x4] sm:$0xf]
  %v1074 = vld [vmem:[%s3 + $0x8] sm:$0xf]
  %v1075 = vld [vmem:[%s3 + $0xc] sm:$0xf]
  %v1076 = vld [vmem:[%s3 + $0x10] sm:$0xf]
  %v1077 = vld [vmem:[%s3 + $0x14] sm:$0xf]
  %v1078 = vld [vmem:[%s3 + $0x18] sm:$0xf]
  %v1079 = vld [vmem:[%s3 + $0x1c] sm:$0xf]
  %v1080 = vld [vmem:[%s3 + $0x20] sm:$0xf]
  %v1081 = vld [vmem:[%s3 + $0x24] sm:$0xf]
  %v1082 = vld [vmem:[%s3 + $0x28] sm:$0xf]
  %v1083 = vld [vmem:[%s3 + $0x2c] sm:$0xf]
  %v1084 = vld [vmem:[%s3 + $0x30] sm:$0xf]
  %v1085 = vld [vmem:[%s3 + $0x34] sm:$0xf]
  %v1086 = vld [vmem:[%s3 + $0x38] sm:$0xf]
  %v1087 = vld [vmem:[%s3 + $0x3c] sm:$0xf]
  %s1088 = scalar_lea.vmem %s3, 64
  %v1089 = vld [vmem:[%s1088] sm:$0xf]
  %v1090 = vld [vmem:[%s1088 + $0x4] sm:$0xf]
  %v1091 = vld [vmem:[%s1088 + $0x8] sm:$0xf]
  %v1092 = vld [vmem:[%s1088 + $0xc] sm:$0xf]
  %v1093 = vld [vmem:[%s1088 + $0x10] sm:$0xf]
  %v1094 = vld [vmem:[%s1088 + $0x14] sm:$0xf]
  %v1095 = vld [vmem:[%s1088 + $0x18] sm:$0xf]
  %v1096 = vld [vmem:[%s1088 + $0x1c] sm:$0xf]
  %v1097 = vld [vmem:[%s1088 + $0x20] sm:$0xf]
  %v1098 = vld [vmem:[%s1088 + $0x24] sm:$0xf]
  %v1099 = vld [vmem:[%s1088 + $0x28] sm:$0xf]
  %v1100 = vld [vmem:[%s1088 + $0x2c] sm:$0xf]
  %v1101 = vld [vmem:[%s1088 + $0x30] sm:$0xf]
  %v1102 = vld [vmem:[%s1088 + $0x34] sm:$0xf]
  %v1103 = vld [vmem:[%s1088 + $0x38] sm:$0xf]
  %v1104 = vld [vmem:[%s1088 + $0x3c] sm:$0xf]
  %v1106 = vrot.slane %v1067, 4
  %v1124 = vunpack.c.l.b16 %v1089
  %v1125 = vunpack.c.l.b16 %v1090
  %v1126 = vunpack.c.l.b16 %v1091
  %v1127 = vunpack.c.l.b16 %v1092
  %v1128 = vunpack.c.l.b16 %v1093
  %v1129 = vunpack.c.l.b16 %v1094
  %v1130 = vunpack.c.l.b16 %v1095
  %v1131 = vunpack.c.l.b16 %v1096
  %v1132 = vunpack.c.l.b16 %v1097
  %v1133 = vunpack.c.l.b16 %v1098
  %v1134 = vunpack.c.l.b16 %v1099
  %v1135 = vunpack.c.l.b16 %v1100
  %v1136 = vunpack.c.l.b16 %v1101
  %v1137 = vunpack.c.l.b16 %v1102
  %v1138 = vunpack.c.l.b16 %v1103
  %v1139 = vunpack.c.l.b16 %v1104
  %v1140 = vpack.c.b16 %v1125, %v1124
  %v1141 = vpack.c.b16 %v1127, %v1126
  %v1142 = vpack.c.b16 %v1129, %v1128
  %v1143 = vpack.c.b16 %v1131, %v1130
  %v1144 = vpack.c.b16 %v1133, %v1132
  %v1145 = vpack.c.b16 %v1135, %v1134
  %v1146 = vpack.c.b16 %v1137, %v1136
  %v1147 = vpack.c.b16 %v1139, %v1138
  %1156 = vmatprep.subr.bf16.mxu0 0
  %1157 = vmatpush1.bf16.msra.mxu0 %v1140
  %1158 = vmatprep.subr.bf16.mxu0 0
  %1159 = vmatpush1.bf16.msra.mxu0 %v1141
  %1160 = vmatprep.subr.bf16.mxu0 0
  %1161 = vmatpush1.bf16.msra.mxu0 %v1142
  %1162 = vmatprep.subr.bf16.mxu0 0
  %1163 = vmatpush1.bf16.msra.mxu0 %v1143
  %1164 = vmatprep.subr.bf16.mxu0 0
  %1165 = vmatpush1.bf16.msra.mxu0 %v1144
  %1166 = vmatprep.subr.bf16.mxu0 0
  %1167 = vmatpush1.bf16.msra.mxu0 %v1145
  %1168 = vmatprep.subr.bf16.mxu0 0
  %1169 = vmatpush1.bf16.msra.mxu0 %v1146
  %1170 = vmatprep.subr.bf16.mxu0 0
  %1171 = vmatpush1.bf16.msra.mxu0 %v1147
  %1172 = vmatprep.subr.bf16.mxu0 0
  %1173 = vmatpush1.bf16.msra.mxu0 0
  %1174 = vmatprep.subr.bf16.mxu0 0
  %1175 = vmatpush1.bf16.msra.mxu0 0
  %1176 = vmatprep.subr.bf16.mxu0 0
  %1177 = vmatpush1.bf16.msra.mxu0 0
  %1178 = vmatprep.subr.bf16.mxu0 0
  %1179 = vmatpush1.bf16.msra.mxu0 0
  %1180 = vmatprep.subr.bf16.mxu0 0
  %1181 = vmatpush1.bf16.msra.mxu0 0
  %1182 = vmatprep.subr.bf16.mxu0 0
  %1183 = vmatpush1.bf16.msra.mxu0 0
  %1184 = vmatprep.subr.bf16.mxu0 0
  %1185 = vmatpush1.bf16.msra.mxu0 0
  %1186 = vmatprep.subr.bf16.mxu0 0
  %1187 = vmatpush1.bf16.msra.mxu0 0
  %1188 = vmatprep.mubr.bf16.mxu0 0
  %1189 = vmatmul.mubr.bf16.gmra.mrb[0].mxu0 %v1106
  %v1190 = vpop.f32.mrb[0].mxu0
  %v1191 = vadd.f32 0.0, %v1190
  %v1192 = vpop.f32.mrb[0].mxu0
  %v1193 = vpop.f32.mrb[0].mxu0
  %v1194 = vpop.f32.mrb[0].mxu0
  %1195 = vdwg.mxu0
  %v1212 = vunpack.c.l.b16 %v1072
  %v1213 = vunpack.c.l.b16 %v1073
  %v1214 = vunpack.c.l.b16 %v1074
  %v1215 = vunpack.c.l.b16 %v1075
  %v1216 = vunpack.c.l.b16 %v1076
  %v1217 = vunpack.c.l.b16 %v1077
  %v1218 = vunpack.c.l.b16 %v1078
  %v1219 = vunpack.c.l.b16 %v1079
  %v1220 = vunpack.c.l.b16 %v1080
  %v1221 = vunpack.c.l.b16 %v1081
  %v1222 = vunpack.c.l.b16 %v1082
  %v1223 = vunpack.c.l.b16 %v1083
  %v1224 = vunpack.c.l.b16 %v1084
  %v1225 = vunpack.c.l.b16 %v1085
  %v1226 = vunpack.c.l.b16 %v1086
  %v1227 = vunpack.c.l.b16 %v1087
  %v1228 = vpack.c.b16 %v1213, %v1212
  %v1229 = vpack.c.b16 %v1215, %v1214
  %v1230 = vpack.c.b16 %v1217, %v1216
  %v1231 = vpack.c.b16 %v1219, %v1218
  %v1232 = vpack.c.b16 %v1221, %v1220
  %v1233 = vpack.c.b16 %v1223, %v1222
  %v1234 = vpack.c.b16 %v1225, %v1224
  %v1235 = vpack.c.b16 %v1227, %v1226
  %1244 = vmatprep.subr.bf16.mxu0 0
  %1245 = vmatpush1.bf16.msra.mxu0 %v1228
  %1246 = vmatprep.subr.bf16.mxu0 0
  %1247 = vmatpush1.bf16.msra.mxu0 %v1229
  %1248 = vmatprep.subr.bf16.mxu0 0
  %1249 = vmatpush1.bf16.msra.mxu0 %v1230
  %1250 = vmatprep.subr.bf16.mxu0 0
  %1251 = vmatpush1.bf16.msra.mxu0 %v1231
  %1252 = vmatprep.subr.bf16.mxu0 0
  %1253 = vmatpush1.bf16.msra.mxu0 %v1232
  %1254 = vmatprep.subr.bf16.mxu0 0
  %1255 = vmatpush1.bf16.msra.mxu0 %v1233
  %1256 = vmatprep.subr.bf16.mxu0 0
  %1257 = vmatpush1.bf16.msra.mxu0 %v1234
  %1258 = vmatprep.subr.bf16.mxu0 0
  %1259 = vmatpush1.bf16.msra.mxu0 %v1235
  %1260 = vmatprep.subr.bf16.mxu0 0
  %1261 = vmatpush1.bf16.msra.mxu0 0
  %1262 = vmatprep.subr.bf16.mxu0 0
  %1263 = vmatpush1.bf16.msra.mxu0 0
  %1264 = vmatprep.subr.bf16.mxu0 0
  %1265 = vmatpush1.bf16.msra.mxu0 0
  %1266 = vmatprep.subr.bf16.mxu0 0
  %1267 = vmatpush1.bf16.msra.mxu0 0
  %1268 = vmatprep.subr.bf16.mxu0 0
  %1269 = vmatpush1.bf16.msra.mxu0 0
  %1270 = vmatprep.subr.bf16.mxu0 0
  %1271 = vmatpush1.bf16.msra.mxu0 0
  %1272 = vmatprep.subr.bf16.mxu0 0
  %1273 = vmatpush1.bf16.msra.mxu0 0
  %1274 = vmatprep.subr.bf16.mxu0 0
  %1275 = vmatpush1.bf16.msra.mxu0 0
  %1276 = vmatprep.mubr.bf16.mxu0 0
  %1277 = vmatmul.mubr.bf16.gmra.mrb[0].mxu0 %v1067
  %v1278 = vpop.f32.mrb[0].mxu0
  %v1279 = vadd.f32 %v1191, %v1278
  %v1280 = vpop.f32.mrb[0].mxu0
  %v1281 = vpop.f32.mrb[0].mxu0
  %v1282 = vpop.f32.mrb[0].mxu0
  %1283 = vdwg.mxu0
  %s1284 = scalar_lea.vmem %s3, 128
  %v1285 = vld [vmem:[%s1284] sm:$0xf]
  %v1286 = vld [vmem:[%s1284 + $0x4] sm:$0xf]
  %v1287 = vld [vmem:[%s1284 + $0x8] sm:$0xf]
  %v1288 = vld [vmem:[%s1284 + $0xc] sm:$0xf]
  %v1289 = vld [vmem:[%s1284 + $0x10] sm:$0xf]
  %v1290 = vld [vmem:[%s1284 + $0x14] sm:$0xf]
  %v1291 = vld [vmem:[%s1284 + $0x18] sm:$0xf]
  %v1292 = vld [vmem:[%s1284 + $0x1c] sm:$0xf]
  %v1293 = vld [vmem:[%s1284 + $0x20] sm:$0xf]
  %v1294 = vld [vmem:[%s1284 + $0x24] sm:$0xf]
  %v1295 = vld [vmem:[%s1284 + $0x28] sm:$0xf]
  %v1296 = vld [vmem:[%s1284 + $0x2c] sm:$0xf]
  %v1297 = vld [vmem:[%s1284 + $0x30] sm:$0xf]
  %v1298 = vld [vmem:[%s1284 + $0x34] sm:$0xf]
  %v1299 = vld [vmem:[%s1284 + $0x38] sm:$0xf]
  %v1300 = vld [vmem:[%s1284 + $0x3c] sm:$0xf]
  %v1317 = vunpack.c.l.b16 %v1285
  %v1318 = vunpack.c.l.b16 %v1286
  %v1319 = vunpack.c.l.b16 %v1287
  %v1320 = vunpack.c.l.b16 %v1288
  %v1321 = vunpack.c.l.b16 %v1289
  %v1322 = vunpack.c.l.b16 %v1290
  %v1323 = vunpack.c.l.b16 %v1291
  %v1324 = vunpack.c.l.b16 %v1292
  %v1325 = vunpack.c.l.b16 %v1293
  %v1326 = vunpack.c.l.b16 %v1294
  %v1327 = vunpack.c.l.b16 %v1295
  %v1328 = vunpack.c.l.b16 %v1296
  %v1329 = vunpack.c.l.b16 %v1297
  %v1330 = vunpack.c.l.b16 %v1298
  %v1331 = vunpack.c.l.b16 %v1299
  %v1332 = vunpack.c.l.b16 %v1300
  %v1333 = vpack.c.b16 %v1318, %v1317
  %v1334 = vpack.c.b16 %v1320, %v1319
  %v1335 = vpack.c.b16 %v1322, %v1321
  %v1336 = vpack.c.b16 %v1324, %v1323
  %v1337 = vpack.c.b16 %v1326, %v1325
  %v1338 = vpack.c.b16 %v1328, %v1327
  %v1339 = vpack.c.b16 %v1330, %v1329
  %v1340 = vpack.c.b16 %v1332, %v1331
  %1349 = vmatprep.subr.bf16.mxu0 0
  %1350 = vmatpush1.bf16.msra.mxu0 %v1333
  %1351 = vmatprep.subr.bf16.mxu0 0
  %1352 = vmatpush1.bf16.msra.mxu0 %v1334
  %1353 = vmatprep.subr.bf16.mxu0 0
  %1354 = vmatpush1.bf16.msra.mxu0 %v1335
  %1355 = vmatprep.subr.bf16.mxu0 0
  %1356 = vmatpush1.bf16.msra.mxu0 %v1336
  %1357 = vmatprep.subr.bf16.mxu0 0
  %1358 = vmatpush1.bf16.msra.mxu0 %v1337
  %1359 = vmatprep.subr.bf16.mxu0 0
  %1360 = vmatpush1.bf16.msra.mxu0 %v1338
  %1361 = vmatprep.subr.bf16.mxu0 0
  %1362 = vmatpush1.bf16.msra.mxu0 %v1339
  %1363 = vmatprep.subr.bf16.mxu0 0
  %1364 = vmatpush1.bf16.msra.mxu0 %v1340
  %1365 = vmatprep.subr.bf16.mxu0 0
  %1366 = vmatpush1.bf16.msra.mxu0 0
  %1367 = vmatprep.subr.bf16.mxu0 0
  %1368 = vmatpush1.bf16.msra.mxu0 0
  %1369 = vmatprep.subr.bf16.mxu0 0
  %1370 = vmatpush1.bf16.msra.mxu0 0
  %1371 = vmatprep.subr.bf16.mxu0 0
  %1372 = vmatpush1.bf16.msra.mxu0 0
  %1373 = vmatprep.subr.bf16.mxu0 0
  %1374 = vmatpush1.bf16.msra.mxu0 0
  %1375 = vmatprep.subr.bf16.mxu0 0
  %1376 = vmatpush1.bf16.msra.mxu0 0
  %1377 = vmatprep.subr.bf16.mxu0 0
  %1378 = vmatpush1.bf16.msra.mxu0 0
  %1379 = vmatprep.subr.bf16.mxu0 0
  %1380 = vmatpush1.bf16.msra.mxu0 0
  %1381 = vmatprep.mubr.bf16.mxu0 0
  %1382 = vmatmul.mubr.bf16.gmra.mrb[0].mxu0 %v1068
  %v1383 = vpop.f32.mrb[0].mxu0
  %v1384 = vadd.f32 0.0, %v1383
  %v1385 = vpop.f32.mrb[0].mxu0
  %v1386 = vpop.f32.mrb[0].mxu0
  %v1387 = vpop.f32.mrb[0].mxu0
  %1388 = vdwg.mxu0
  %v1389 = vadd.f32 %v1279, %v1384
  %s1390 = scalar_lea.vmem %s3, 192
  %v1391 = vld [vmem:[%s1390] sm:$0xf]
  %v1392 = vld [vmem:[%s1390 + $0x4] sm:$0xf]
  %v1393 = vld [vmem:[%s1390 + $0x8] sm:$0xf]
  %v1394 = vld [vmem:[%s1390 + $0xc] sm:$0xf]
  %v1395 = vld [vmem:[%s1390 + $0x10] sm:$0xf]
  %v1396 = vld [vmem:[%s1390 + $0x14] sm:$0xf]
  %v1397 = vld [vmem:[%s1390 + $0x18] sm:$0xf]
  %v1398 = vld [vmem:[%s1390 + $0x1c] sm:$0xf]
  %v1399 = vld [vmem:[%s1390 + $0x20] sm:$0xf]
  %v1400 = vld [vmem:[%s1390 + $0x24] sm:$0xf]
  %v1401 = vld [vmem:[%s1390 + $0x28] sm:$0xf]
  %v1402 = vld [vmem:[%s1390 + $0x2c] sm:$0xf]
  %v1403 = vld [vmem:[%s1390 + $0x30] sm:$0xf]
  %v1404 = vld [vmem:[%s1390 + $0x34] sm:$0xf]
  %v1405 = vld [vmem:[%s1390 + $0x38] sm:$0xf]
  %v1406 = vld [vmem:[%s1390 + $0x3c] sm:$0xf]
  %v1408 = vrot.slane %v1068, 4
  %v1426 = vunpack.c.l.b16 %v1391
  %v1427 = vunpack.c.l.b16 %v1392
  %v1428 = vunpack.c.l.b16 %v1393
  %v1429 = vunpack.c.l.b16 %v1394
  %v1430 = vunpack.c.l.b16 %v1395
  %v1431 = vunpack.c.l.b16 %v1396
  %v1432 = vunpack.c.l.b16 %v1397
  %v1433 = vunpack.c.l.b16 %v1398
  %v1434 = vunpack.c.l.b16 %v1399
  %v1435 = vunpack.c.l.b16 %v1400
  %v1436 = vunpack.c.l.b16 %v1401
  %v1437 = vunpack.c.l.b16 %v1402
  %v1438 = vunpack.c.l.b16 %v1403
  %v1439 = vunpack.c.l.b16 %v1404
  %v1440 = vunpack.c.l.b16 %v1405
  %v1441 = vunpack.c.l.b16 %v1406
  %v1442 = vpack.c.b16 %v1427, %v1426
  %v1443 = vpack.c.b16 %v1429, %v1428
  %v1444 = vpack.c.b16 %v1431, %v1430
  %v1445 = vpack.c.b16 %v1433, %v1432
  %v1446 = vpack.c.b16 %v1435, %v1434
  %v1447 = vpack.c.b16 %v1437, %v1436
  %v1448 = vpack.c.b16 %v1439, %v1438
  %v1449 = vpack.c.b16 %v1441, %v1440
  %1458 = vmatprep.subr.bf16.mxu0 0
  %1459 = vmatpush1.bf16.msra.mxu0 %v1442
  %1460 = vmatprep.subr.bf16.mxu0 0
  %1461 = vmatpush1.bf16.msra.mxu0 %v1443
  %1462 = vmatprep.subr.bf16.mxu0 0
  %1463 = vmatpush1.bf16.msra.mxu0 %v1444
  %1464 = vmatprep.subr.bf16.mxu0 0
  %1465 = vmatpush1.bf16.msra.mxu0 %v1445
  %1466 = vmatprep.subr.bf16.mxu0 0
  %1467 = vmatpush1.bf16.msra.mxu0 %v1446
  %1468 = vmatprep.subr.bf16.mxu0 0
  %1469 = vmatpush1.bf16.msra.mxu0 %v1447
  %1470 = vmatprep.subr.bf16.mxu0 0
  %1471 = vmatpush1.bf16.msra.mxu0 %v1448
  %1472 = vmatprep.subr.bf16.mxu0 0
  %1473 = vmatpush1.bf16.msra.mxu0 %v1449
  %1474 = vmatprep.subr.bf16.mxu0 0
  %1475 = vmatpush1.bf16.msra.mxu0 0
  %1476 = vmatprep.subr.bf16.mxu0 0
  %1477 = vmatpush1.bf16.msra.mxu0 0
  %1478 = vmatprep.subr.bf16.mxu0 0
  %1479 = vmatpush1.bf16.msra.mxu0 0
  %1480 = vmatprep.subr.bf16.mxu0 0
  %1481 = vmatpush1.bf16.msra.mxu0 0
  %1482 = vmatprep.subr.bf16.mxu0 0
  %1483 = vmatpush1.bf16.msra.mxu0 0
  %1484 = vmatprep.subr.bf16.mxu0 0
  %1485 = vmatpush1.bf16.msra.mxu0 0
  %1486 = vmatprep.subr.bf16.mxu0 0
  %1487 = vmatpush1.bf16.msra.mxu0 0
  %1488 = vmatprep.subr.bf16.mxu0 0
  %1489 = vmatpush1.bf16.msra.mxu0 0
  %1490 = vmatprep.mubr.bf16.mxu0 0
  %1491 = vmatmul.mubr.bf16.gmra.mrb[0].mxu0 %v1408
  %v1492 = vpop.f32.mrb[0].mxu0
  %v1493 = vadd.f32 0.0, %v1492
  %v1494 = vpop.f32.mrb[0].mxu0
  %v1495 = vpop.f32.mrb[0].mxu0
  %v1496 = vpop.f32.mrb[0].mxu0
  %1497 = vdwg.mxu0
  %v1498 = vadd.f32 %v1389, %v1493
  %s1499 = scalar_lea.vmem %s3, 256
  %v1500 = vld [vmem:[%s1499] sm:$0xf]
  %v1501 = vld [vmem:[%s1499 + $0x4] sm:$0xf]
  %v1502 = vld [vmem:[%s1499 + $0x8] sm:$0xf]
  %v1503 = vld [vmem:[%s1499 + $0xc] sm:$0xf]
  %v1504 = vld [vmem:[%s1499 + $0x10] sm:$0xf]
  %v1505 = vld [vmem:[%s1499 + $0x14] sm:$0xf]
  %v1506 = vld [vmem:[%s1499 + $0x18] sm:$0xf]
  %v1507 = vld [vmem:[%s1499 + $0x1c] sm:$0xf]
  %v1508 = vld [vmem:[%s1499 + $0x20] sm:$0xf]
  %v1509 = vld [vmem:[%s1499 + $0x24] sm:$0xf]
  %v1510 = vld [vmem:[%s1499 + $0x28] sm:$0xf]
  %v1511 = vld [vmem:[%s1499 + $0x2c] sm:$0xf]
  %v1512 = vld [vmem:[%s1499 + $0x30] sm:$0xf]
  %v1513 = vld [vmem:[%s1499 + $0x34] sm:$0xf]
  %v1514 = vld [vmem:[%s1499 + $0x38] sm:$0xf]
  %v1515 = vld [vmem:[%s1499 + $0x3c] sm:$0xf]
  %v1532 = vunpack.c.l.b16 %v1500
  %v1533 = vunpack.c.l.b16 %v1501
  %v1534 = vunpack.c.l.b16 %v1502
  %v1535 = vunpack.c.l.b16 %v1503
  %v1536 = vunpack.c.l.b16 %v1504
  %v1537 = vunpack.c.l.b16 %v1505
  %v1538 = vunpack.c.l.b16 %v1506
  %v1539 = vunpack.c.l.b16 %v1507
  %v1540 = vunpack.c.l.b16 %v1508
  %v1541 = vunpack.c.l.b16 %v1509
  %v1542 = vunpack.c.l.b16 %v1510
  %v1543 = vunpack.c.l.b16 %v1511
  %v1544 = vunpack.c.l.b16 %v1512
  %v1545 = vunpack.c.l.b16 %v1513
  %v1546 = vunpack.c.l.b16 %v1514
  %v1547 = vunpack.c.l.b16 %v1515
  %v1548 = vpack.c.b16 %v1533, %v1532
  %v1549 = vpack.c.b16 %v1535, %v1534
  %v1550 = vpack.c.b16 %v1537, %v1536
  %v1551 = vpack.c.b16 %v1539, %v1538
  %v1552 = vpack.c.b16 %v1541, %v1540
  %v1553 = vpack.c.b16 %v1543, %v1542
  %v1554 = vpack.c.b16 %v1545, %v1544
  %v1555 = vpack.c.b16 %v1547, %v1546
  %1564 = vmatprep.subr.bf16.mxu0 0
  %1565 = vmatpush1.bf16.msra.mxu0 %v1548
  %1566 = vmatprep.subr.bf16.mxu0 0
  %1567 = vmatpush1.bf16.msra.mxu0 %v1549
  %1568 = vmatprep.subr.bf16.mxu0 0
  %1569 = vmatpush1.bf16.msra.mxu0 %v1550
  %1570 = vmatprep.subr.bf16.mxu0 0
  %1571 = vmatpush1.bf16.msra.mxu0 %v1551
  %1572 = vmatprep.subr.bf16.mxu0 0
  %1573 = vmatpush1.bf16.msra.mxu0 %v1552
  %1574 = vmatprep.subr.bf16.mxu0 0
  %1575 = vmatpush1.bf16.msra.mxu0 %v1553
  %1576 = vmatprep.subr.bf16.mxu0 0
  %1577 = vmatpush1.bf16.msra.mxu0 %v1554
  %1578 = vmatprep.subr.bf16.mxu0 0
  %1579 = vmatpush1.bf16.msra.mxu0 %v1555
  %1580 = vmatprep.subr.bf16.mxu0 0
  %1581 = vmatpush1.bf16.msra.mxu0 0
  %1582 = vmatprep.subr.bf16.mxu0 0
  %1583 = vmatpush1.bf16.msra.mxu0 0
  %1584 = vmatprep.subr.bf16.mxu0 0
  %1585 = vmatpush1.bf16.msra.mxu0 0
  %1586 = vmatprep.subr.bf16.mxu0 0
  %1587 = vmatpush1.bf16.msra.mxu0 0
  %1588 = vmatprep.subr.bf16.mxu0 0
  %1589 = vmatpush1.bf16.msra.mxu0 0
  %1590 = vmatprep.subr.bf16.mxu0 0
  %1591 = vmatpush1.bf16.msra.mxu0 0
  %1592 = vmatprep.subr.bf16.mxu0 0
  %1593 = vmatpush1.bf16.msra.mxu0 0
  %1594 = vmatprep.subr.bf16.mxu0 0
  %1595 = vmatpush1.bf16.msra.mxu0 0
  %1596 = vmatprep.mubr.bf16.mxu0 0
  %1597 = vmatmul.mubr.bf16.gmra.mrb[0].mxu0 %v1069
  %v1598 = vpop.f32.mrb[0].mxu0
  %v1599 = vadd.f32 0.0, %v1598
  %v1600 = vpop.f32.mrb[0].mxu0
  %v1601 = vpop.f32.mrb[0].mxu0
  %v1602 = vpop.f32.mrb[0].mxu0
  %1603 = vdwg.mxu0
  %v1604 = vadd.f32 %v1498, %v1599
  %s1605 = scalar_lea.vmem %s3, 320
  %v1606 = vld [vmem:[%s1605] sm:$0xf]
  %v1607 = vld [vmem:[%s1605 + $0x4] sm:$0xf]
  %v1608 = vld [vmem:[%s1605 + $0x8] sm:$0xf]
  %v1609 = vld [vmem:[%s1605 + $0xc] sm:$0xf]
  %v1610 = vld [vmem:[%s1605 + $0x10] sm:$0xf]
  %v1611 = vld [vmem:[%s1605 + $0x14] sm:$0xf]
  %v1612 = vld [vmem:[%s1605 + $0x18] sm:$0xf]
  %v1613 = vld [vmem:[%s1605 + $0x1c] sm:$0xf]
  %v1614 = vld [vmem:[%s1605 + $0x20] sm:$0xf]
  %v1615 = vld [vmem:[%s1605 + $0x24] sm:$0xf]
  %v1616 = vld [vmem:[%s1605 + $0x28] sm:$0xf]
  %v1617 = vld [vmem:[%s1605 + $0x2c] sm:$0xf]
  %v1618 = vld [vmem:[%s1605 + $0x30] sm:$0xf]
  %v1619 = vld [vmem:[%s1605 + $0x34] sm:$0xf]
  %v1620 = vld [vmem:[%s1605 + $0x38] sm:$0xf]
  %v1621 = vld [vmem:[%s1605 + $0x3c] sm:$0xf]
  %v1623 = vrot.slane %v1069, 4
  %v1641 = vunpack.c.l.b16 %v1606
  %v1642 = vunpack.c.l.b16 %v1607
  %v1643 = vunpack.c.l.b16 %v1608
  %v1644 = vunpack.c.l.b16 %v1609
  %v1645 = vunpack.c.l.b16 %v1610
  %v1646 = vunpack.c.l.b16 %v1611
  %v1647 = vunpack.c.l.b16 %v1612
  %v1648 = vunpack.c.l.b16 %v1613
  %v1649 = vunpack.c.l.b16 %v1614
  %v1650 = vunpack.c.l.b16 %v1615
  %v1651 = vunpack.c.l.b16 %v1616
  %v1652 = vunpack.c.l.b16 %v1617
  %v1653 = vunpack.c.l.b16 %v1618
  %v1654 = vunpack.c.l.b16 %v1619
  %v1655 = vunpack.c.l.b16 %v1620
  %v1656 = vunpack.c.l.b16 %v1621
  %v1657 = vpack.c.b16 %v1642, %v1641
  %v1658 = vpack.c.b16 %v1644, %v1643
  %v1659 = vpack.c.b16 %v1646, %v1645
  %v1660 = vpack.c.b16 %v1648, %v1647
  %v1661 = vpack.c.b16 %v1650, %v1649
  %v1662 = vpack.c.b16 %v1652, %v1651
  %v1663 = vpack.c.b16 %v1654, %v1653
  %v1664 = vpack.c.b16 %v1656, %v1655
  %1673 = vmatprep.subr.bf16.mxu0 0
  %1674 = vmatpush1.bf16.msra.mxu0 %v1657
  %1675 = vmatprep.subr.bf16.mxu0 0
  %1676 = vmatpush1.bf16.msra.mxu0 %v1658
  %1677 = vmatprep.subr.bf16.mxu0 0
  %1678 = vmatpush1.bf16.msra.mxu0 %v1659
  %1679 = vmatprep.subr.bf16.mxu0 0
  %1680 = vmatpush1.bf16.msra.mxu0 %v1660
  %1681 = vmatprep.subr.bf16.mxu0 0
  %1682 = vmatpush1.bf16.msra.mxu0 %v1661
  %1683 = vmatprep.subr.bf16.mxu0 0
  %1684 = vmatpush1.bf16.msra.mxu0 %v1662
  %1685 = vmatprep.subr.bf16.mxu0 0
  %1686 = vmatpush1.bf16.msra.mxu0 %v1663
  %1687 = vmatprep.subr.bf16.mxu0 0
  %1688 = vmatpush1.bf16.msra.mxu0 %v1664
  %1689 = vmatprep.subr.bf16.mxu0 0
  %1690 = vmatpush1.bf16.msra.mxu0 0
  %1691 = vmatprep.subr.bf16.mxu0 0
  %1692 = vmatpush1.bf16.msra.mxu0 0
  %1693 = vmatprep.subr.bf16.mxu0 0
  %1694 = vmatpush1.bf16.msra.mxu0 0
  %1695 = vmatprep.subr.bf16.mxu0 0
  %1696 = vmatpush1.bf16.msra.mxu0 0
  %1697 = vmatprep.subr.bf16.mxu0 0
  %1698 = vmatpush1.bf16.msra.mxu0 0
  %1699 = vmatprep.subr.bf16.mxu0 0
  %1700 = vmatpush1.bf16.msra.mxu0 0
  %1701 = vmatprep.subr.bf16.mxu0 0
  %1702 = vmatpush1.bf16.msra.mxu0 0
  %1703 = vmatprep.subr.bf16.mxu0 0
  %1704 = vmatpush1.bf16.msra.mxu0 0
  %1705 = vmatprep.mubr.bf16.mxu0 0
  %1706 = vmatmul.mubr.bf16.gmra.mrb[0].mxu0 %v1623
  %v1707 = vpop.f32.mrb[0].mxu0
  %v1708 = vadd.f32 0.0, %v1707
  %v1709 = vpop.f32.mrb[0].mxu0
  %v1710 = vpop.f32.mrb[0].mxu0
  %v1711 = vpop.f32.mrb[0].mxu0
  %1712 = vdwg.mxu0
  %v1713 = vadd.f32 %v1604, %v1708
  %s1714 = scalar_lea.vmem %s3, 384
  %v1715 = vld [vmem:[%s1714] sm:$0xf]
  %v1716 = vld [vmem:[%s1714 + $0x4] sm:$0xf]
  %v1717 = vld [vmem:[%s1714 + $0x8] sm:$0xf]
  %v1718 = vld [vmem:[%s1714 + $0xc] sm:$0xf]
  %v1719 = vld [vmem:[%s1714 + $0x10] sm:$0xf]
  %v1720 = vld [vmem:[%s1714 + $0x14] sm:$0xf]
  %v1721 = vld [vmem:[%s1714 + $0x18] sm:$0xf]
  %v1722 = vld [vmem:[%s1714 + $0x1c] sm:$0xf]
  %v1723 = vld [vmem:[%s1714 + $0x20] sm:$0xf]
  %v1724 = vld [vmem:[%s1714 + $0x24] sm:$0xf]
  %v1725 = vld [vmem:[%s1714 + $0x28] sm:$0xf]
  %v1726 = vld [vmem:[%s1714 + $0x2c] sm:$0xf]
  %v1727 = vld [vmem:[%s1714 + $0x30] sm:$0xf]
  %v1728 = vld [vmem:[%s1714 + $0x34] sm:$0xf]
  %v1729 = vld [vmem:[%s1714 + $0x38] sm:$0xf]
  %v1730 = vld [vmem:[%s1714 + $0x3c] sm:$0xf]
  %v1747 = vunpack.c.l.b16 %v1715
  %v1748 = vunpack.c.l.b16 %v1716
  %v1749 = vunpack.c.l.b16 %v1717
  %v1750 = vunpack.c.l.b16 %v1718
  %v1751 = vunpack.c.l.b16 %v1719
  %v1752 = vunpack.c.l.b16 %v1720
  %v1753 = vunpack.c.l.b16 %v1721
  %v1754 = vunpack.c.l.b16 %v1722
  %v1755 = vunpack.c.l.b16 %v1723
  %v1756 = vunpack.c.l.b16 %v1724
  %v1757 = vunpack.c.l.b16 %v1725
  %v1758 = vunpack.c.l.b16 %v1726
  %v1759 = vunpack.c.l.b16 %v1727
  %v1760 = vunpack.c.l.b16 %v1728
  %v1761 = vunpack.c.l.b16 %v1729
  %v1762 = vunpack.c.l.b16 %v1730
  %v1763 = vpack.c.b16 %v1748, %v1747
  %v1764 = vpack.c.b16 %v1750, %v1749
  %v1765 = vpack.c.b16 %v1752, %v1751
  %v1766 = vpack.c.b16 %v1754, %v1753
  %v1767 = vpack.c.b16 %v1756, %v1755
  %v1768 = vpack.c.b16 %v1758, %v1757
  %v1769 = vpack.c.b16 %v1760, %v1759
  %v1770 = vpack.c.b16 %v1762, %v1761
  %1779 = vmatprep.subr.bf16.mxu0 0
  %1780 = vmatpush1.bf16.msra.mxu0 %v1763
  %1781 = vmatprep.subr.bf16.mxu0 0
  %1782 = vmatpush1.bf16.msra.mxu0 %v1764
  %1783 = vmatprep.subr.bf16.mxu0 0
  %1784 = vmatpush1.bf16.msra.mxu0 %v1765
  %1785 = vmatprep.subr.bf16.mxu0 0
  %1786 = vmatpush1.bf16.msra.mxu0 %v1766
  %1787 = vmatprep.subr.bf16.mxu0 0
  %1788 = vmatpush1.bf16.msra.mxu0 %v1767
  %1789 = vmatprep.subr.bf16.mxu0 0
  %1790 = vmatpush1.bf16.msra.mxu0 %v1768
  %1791 = vmatprep.subr.bf16.mxu0 0
  %1792 = vmatpush1.bf16.msra.mxu0 %v1769
  %1793 = vmatprep.subr.bf16.mxu0 0
  %1794 = vmatpush1.bf16.msra.mxu0 %v1770
  %1795 = vmatprep.subr.bf16.mxu0 0
  %1796 = vmatpush1.bf16.msra.mxu0 0
  %1797 = vmatprep.subr.bf16.mxu0 0
  %1798 = vmatpush1.bf16.msra.mxu0 0
  %1799 = vmatprep.subr.bf16.mxu0 0
  %1800 = vmatpush1.bf16.msra.mxu0 0
  %1801 = vmatprep.subr.bf16.mxu0 0
  %1802 = vmatpush1.bf16.msra.mxu0 0
  %1803 = vmatprep.subr.bf16.mxu0 0
  %1804 = vmatpush1.bf16.msra.mxu0 0
  %1805 = vmatprep.subr.bf16.mxu0 0
  %1806 = vmatpush1.bf16.msra.mxu0 0
  %1807 = vmatprep.subr.bf16.mxu0 0
  %1808 = vmatpush1.bf16.msra.mxu0 0
  %1809 = vmatprep.subr.bf16.mxu0 0
  %1810 = vmatpush1.bf16.msra.mxu0 0
  %1811 = vmatprep.mubr.bf16.mxu0 0
  %1812 = vmatmul.mubr.bf16.gmra.mrb[0].mxu0 %v1070
  %v1813 = vpop.f32.mrb[0].mxu0
  %v1814 = vadd.f32 0.0, %v1813
  %v1815 = vpop.f32.mrb[0].mxu0
  %v1816 = vpop.f32.mrb[0].mxu0
  %v1817 = vpop.f32.mrb[0].mxu0
  %1818 = vdwg.mxu0
  %v1819 = vadd.f32 %v1713, %v1814
  %s1820 = scalar_lea.vmem %s3, 448
  %v1821 = vld [vmem:[%s1820] sm:$0xf]
  %v1822 = vld [vmem:[%s1820 + $0x4] sm:$0xf]
  %v1823 = vld [vmem:[%s1820 + $0x8] sm:$0xf]
  %v1824 = vld [vmem:[%s1820 + $0xc] sm:$0xf]
  %v1825 = vld [vmem:[%s1820 + $0x10] sm:$0xf]
  %v1826 = vld [vmem:[%s1820 + $0x14] sm:$0xf]
  %v1827 = vld [vmem:[%s1820 + $0x18] sm:$0xf]
  %v1828 = vld [vmem:[%s1820 + $0x1c] sm:$0xf]
  %v1829 = vld [vmem:[%s1820 + $0x20] sm:$0xf]
  %v1830 = vld [vmem:[%s1820 + $0x24] sm:$0xf]
  %v1831 = vld [vmem:[%s1820 + $0x28] sm:$0xf]
  %v1832 = vld [vmem:[%s1820 + $0x2c] sm:$0xf]
  %v1833 = vld [vmem:[%s1820 + $0x30] sm:$0xf]
  %v1834 = vld [vmem:[%s1820 + $0x34] sm:$0xf]
  %v1835 = vld [vmem:[%s1820 + $0x38] sm:$0xf]
  %v1836 = vld [vmem:[%s1820 + $0x3c] sm:$0xf]
  %v1838 = vrot.slane %v1070, 4
  %v1856 = vunpack.c.l.b16 %v1821
  %v1857 = vunpack.c.l.b16 %v1822
  %v1858 = vunpack.c.l.b16 %v1823
  %v1859 = vunpack.c.l.b16 %v1824
  %v1860 = vunpack.c.l.b16 %v1825
  %v1861 = vunpack.c.l.b16 %v1826
  %v1862 = vunpack.c.l.b16 %v1827
  %v1863 = vunpack.c.l.b16 %v1828
  %v1864 = vunpack.c.l.b16 %v1829
  %v1865 = vunpack.c.l.b16 %v1830
  %v1866 = vunpack.c.l.b16 %v1831
  %v1867 = vunpack.c.l.b16 %v1832
  %v1868 = vunpack.c.l.b16 %v1833
  %v1869 = vunpack.c.l.b16 %v1834
  %v1870 = vunpack.c.l.b16 %v1835
  %v1871 = vunpack.c.l.b16 %v1836
  %v1872 = vpack.c.b16 %v1857, %v1856
  %v1873 = vpack.c.b16 %v1859, %v1858
  %v1874 = vpack.c.b16 %v1861, %v1860
  %v1875 = vpack.c.b16 %v1863, %v1862
  %v1876 = vpack.c.b16 %v1865, %v1864
  %v1877 = vpack.c.b16 %v1867, %v1866
  %v1878 = vpack.c.b16 %v1869, %v1868
  %v1879 = vpack.c.b16 %v1871, %v1870
  %1888 = vmatprep.subr.bf16.mxu0 0
  %1889 = vmatpush1.bf16.msra.mxu0 %v1872
  %1890 = vmatprep.subr.bf16.mxu0 0
  %1891 = vmatpush1.bf16.msra.mxu0 %v1873
  %1892 = vmatprep.subr.bf16.mxu0 0
  %1893 = vmatpush1.bf16.msra.mxu0 %v1874
  %1894 = vmatprep.subr.bf16.mxu0 0
  %1895 = vmatpush1.bf16.msra.mxu0 %v1875
  %1896 = vmatprep.subr.bf16.mxu0 0
  %1897 = vmatpush1.bf16.msra.mxu0 %v1876
  %1898 = vmatprep.subr.bf16.mxu0 0
  %1899 = vmatpush1.bf16.msra.mxu0 %v1877
  %1900 = vmatprep.subr.bf16.mxu0 0
  %1901 = vmatpush1.bf16.msra.mxu0 %v1878
  %1902 = vmatprep.subr.bf16.mxu0 0
  %1903 = vmatpush1.bf16.msra.mxu0 %v1879
  %1904 = vmatprep.subr.bf16.mxu0 0
  %1905 = vmatpush1.bf16.msra.mxu0 0
  %1906 = vmatprep.subr.bf16.mxu0 0
  %1907 = vmatpush1.bf16.msra.mxu0 0
  %1908 = vmatprep.subr.bf16.mxu0 0
  %1909 = vmatpush1.bf16.msra.mxu0 0
  %1910 = vmatprep.subr.bf16.mxu0 0
  %1911 = vmatpush1.bf16.msra.mxu0 0
  %1912 = vmatprep.subr.bf16.mxu0 0
  %1913 = vmatpush1.bf16.msra.mxu0 0
  %1914 = vmatprep.subr.bf16.mxu0 0
  %1915 = vmatpush1.bf16.msra.mxu0 0
  %1916 = vmatprep.subr.bf16.mxu0 0
  %1917 = vmatpush1.bf16.msra.mxu0 0
  %1918 = vmatprep.subr.bf16.mxu0 0
  %1919 = vmatpush1.bf16.msra.mxu0 0
  %1920 = vmatprep.mubr.bf16.mxu0 0
  %1921 = vmatmul.mubr.bf16.gmra.mrb[0].mxu0 %v1838
  %v1922 = vpop.f32.mrb[0].mxu0
  %v1923 = vadd.f32 0.0, %v1922
  %v1924 = vpop.f32.mrb[0].mxu0
  %v1925 = vpop.f32.mrb[0].mxu0
  %v1926 = vpop.f32.mrb[0].mxu0
  %1927 = vdwg.mxu0
  %v1928 = vadd.f32 %v1819, %v1923
  %s1929 = scalar_lea.vmem %s3, 512
  %v1930 = vld [vmem:[%s1929] sm:$0xf]
  %v1931 = vld [vmem:[%s1929 + $0x4] sm:$0xf]
  %v1932 = vld [vmem:[%s1929 + $0x8] sm:$0xf]
  %v1933 = vld [vmem:[%s1929 + $0xc] sm:$0xf]
  %v1934 = vld [vmem:[%s1929 + $0x10] sm:$0xf]
  %v1935 = vld [vmem:[%s1929 + $0x14] sm:$0xf]
  %v1936 = vld [vmem:[%s1929 + $0x18] sm:$0xf]
  %v1937 = vld [vmem:[%s1929 + $0x1c] sm:$0xf]
  %v1938 = vld [vmem:[%s1929 + $0x20] sm:$0xf]
  %v1939 = vld [vmem:[%s1929 + $0x24] sm:$0xf]
  %v1940 = vld [vmem:[%s1929 + $0x28] sm:$0xf]
  %v1941 = vld [vmem:[%s1929 + $0x2c] sm:$0xf]
  %v1942 = vld [vmem:[%s1929 + $0x30] sm:$0xf]
  %v1943 = vld [vmem:[%s1929 + $0x34] sm:$0xf]
  %v1944 = vld [vmem:[%s1929 + $0x38] sm:$0xf]
  %v1945 = vld [vmem:[%s1929 + $0x3c] sm:$0xf]
  %v1962 = vunpack.c.l.b16 %v1930
  %v1963 = vunpack.c.l.b16 %v1931
  %v1964 = vunpack.c.l.b16 %v1932
  %v1965 = vunpack.c.l.b16 %v1933
  %v1966 = vunpack.c.l.b16 %v1934
  %v1967 = vunpack.c.l.b16 %v1935
  %v1968 = vunpack.c.l.b16 %v1936
  %v1969 = vunpack.c.l.b16 %v1937
  %v1970 = vunpack.c.l.b16 %v1938
  %v1971 = vunpack.c.l.b16 %v1939
  %v1972 = vunpack.c.l.b16 %v1940
  %v1973 = vunpack.c.l.b16 %v1941
  %v1974 = vunpack.c.l.b16 %v1942
  %v1975 = vunpack.c.l.b16 %v1943
  %v1976 = vunpack.c.l.b16 %v1944
  %v1977 = vunpack.c.l.b16 %v1945
  %v1978 = vpack.c.b16 %v1963, %v1962
  %v1979 = vpack.c.b16 %v1965, %v1964
  %v1980 = vpack.c.b16 %v1967, %v1966
  %v1981 = vpack.c.b16 %v1969, %v1968
  %v1982 = vpack.c.b16 %v1971, %v1970
  %v1983 = vpack.c.b16 %v1973, %v1972
  %v1984 = vpack.c.b16 %v1975, %v1974
  %v1985 = vpack.c.b16 %v1977, %v1976
  %1994 = vmatprep.subr.bf16.mxu0 0
  %1995 = vmatpush1.bf16.msra.mxu0 %v1978
  %1996 = vmatprep.subr.bf16.mxu0 0
  %1997 = vmatpush1.bf16.msra.mxu0 %v1979
  %1998 = vmatprep.subr.bf16.mxu0 0
  %1999 = vmatpush1.bf16.msra.mxu0 %v1980
  %2000 = vmatprep.subr.bf16.mxu0 0
  %2001 = vmatpush1.bf16.msra.mxu0 %v1981
  %2002 = vmatprep.subr.bf16.mxu0 0
  %2003 = vmatpush1.bf16.msra.mxu0 %v1982
  %2004 = vmatprep.subr.bf16.mxu0 0
  %2005 = vmatpush1.bf16.msra.mxu0 %v1983
  %2006 = vmatprep.subr.bf16.mxu0 0
  %2007 = vmatpush1.bf16.msra.mxu0 %v1984
  %2008 = vmatprep.subr.bf16.mxu0 0
  %2009 = vmatpush1.bf16.msra.mxu0 %v1985
  %2010 = vmatprep.subr.bf16.mxu0 0
  %2011 = vmatpush1.bf16.msra.mxu0 0
  %2012 = vmatprep.subr.bf16.mxu0 0
  %2013 = vmatpush1.bf16.msra.mxu0 0
  %2014 = vmatprep.subr.bf16.mxu0 0
  %2015 = vmatpush1.bf16.msra.mxu0 0
  %2016 = vmatprep.subr.bf16.mxu0 0
  %2017 = vmatpush1.bf16.msra.mxu0 0
  %2018 = vmatprep.subr.bf16.mxu0 0
  %2019 = vmatpush1.bf16.msra.mxu0 0
  %2020 = vmatprep.subr.bf16.mxu0 0
  %2021 = vmatpush1.bf16.msra.mxu0 0
  %2022 = vmatprep.subr.bf16.mxu0 0
  %2023 = vmatpush1.bf16.msra.mxu0 0
  %2024 = vmatprep.subr.bf16.mxu0 0
  %2025 = vmatpush1.bf16.msra.mxu0 0
  %2026 = vmatprep.mubr.bf16.mxu0 0
  %2027 = vmatmul.mubr.bf16.gmra.mrb[0].mxu0 %v1071
  %v2028 = vpop.f32.mrb[0].mxu0
  %v2029 = vadd.f32 0.0, %v2028
  %v2030 = vpop.f32.mrb[0].mxu0
  %v2031 = vpop.f32.mrb[0].mxu0
  %v2032 = vpop.f32.mrb[0].mxu0
  %2033 = vdwg.mxu0
  %v2034 = vadd.f32 %v1928, %v2029
  %v2035 = vld [vmem:[%s4] sm:$0x1]
  %v2037 = vlaneseq
  %v2038 = vshrl.u32 %v2037, 7
  %v2039 = vsub.s32 0, %v2038
  %v2040 = vrot.slane %v2035, %v2039
  %v2042 = vadd.f32 %v2034, %v2040
  %v2043 = vmax.f32 %v2042, 0.0
  %v2044 = vpack.c.bf16 %v2043, %v2043
  %v2045 = vld [vmem:[%s5] sm:$0xf]
  %v2046 = vld [vmem:[%s5 + $0x4] sm:$0xf]
  %v2047 = vld [vmem:[%s5 + $0x8] sm:$0xf]
  %v2048 = vld [vmem:[%s5 + $0xc] sm:$0xf]
  %v2049 = vld [vmem:[%s5 + $0x10] sm:$0xf]
  %v2050 = vld [vmem:[%s5 + $0x14] sm:$0xf]
  %v2051 = vld [vmem:[%s5 + $0x18] sm:$0xf]
  %v2052 = vld [vmem:[%s5 + $0x1c] sm:$0xf]
  %v2053 = vld [vmem:[%s5 + $0x20] sm:$0xf]
  %v2054 = vld [vmem:[%s5 + $0x24] sm:$0xf]
  %v2055 = vld [vmem:[%s5 + $0x28] sm:$0xf]
  %v2056 = vld [vmem:[%s5 + $0x2c] sm:$0xf]
  %v2057 = vld [vmem:[%s5 + $0x30] sm:$0xf]
  %v2058 = vld [vmem:[%s5 + $0x34] sm:$0xf]
  %v2059 = vld [vmem:[%s5 + $0x38] sm:$0xf]
  %v2060 = vld [vmem:[%s5 + $0x3c] sm:$0xf]
  %v2061 = vld [vmem:[%s6] sm:$0x1]
  %v2063 = vlaneseq
  %v2064 = vshrl.u32 %v2063, 7
  %v2065 = vsub.s32 0, %v2064
  %v2066 = vrot.slane %v2061, %v2065
  %v2084 = vunpack.c.l.b16 %v2045
  %v2085 = vunpack.c.l.b16 %v2046
  %v2086 = vunpack.c.l.b16 %v2047
  %v2087 = vunpack.c.l.b16 %v2048
  %v2088 = vunpack.c.l.b16 %v2049
  %v2089 = vunpack.c.l.b16 %v2050
  %v2090 = vunpack.c.l.b16 %v2051
  %v2091 = vunpack.c.l.b16 %v2052
  %v2092 = vunpack.c.l.b16 %v2053
  %v2093 = vunpack.c.l.b16 %v2054
  %v2094 = vunpack.c.l.b16 %v2055
  %v2095 = vunpack.c.l.b16 %v2056
  %v2096 = vunpack.c.l.b16 %v2057
  %v2097 = vunpack.c.l.b16 %v2058
  %v2098 = vunpack.c.l.b16 %v2059
  %v2099 = vunpack.c.l.b16 %v2060
  %v2100 = vpack.c.b16 %v2085, %v2084
  %v2101 = vpack.c.b16 %v2087, %v2086
  %v2102 = vpack.c.b16 %v2089, %v2088
  %v2103 = vpack.c.b16 %v2091, %v2090
  %v2104 = vpack.c.b16 %v2093, %v2092
  %v2105 = vpack.c.b16 %v2095, %v2094
  %v2106 = vpack.c.b16 %v2097, %v2096
  %v2107 = vpack.c.b16 %v2099, %v2098
  %2116 = vmatprep.subr.bf16.mxu0 0
  %2117 = vmatpush1.bf16.msra.mxu0 %v2100
  %2118 = vmatprep.subr.bf16.mxu0 0
  %2119 = vmatpush1.bf16.msra.mxu0 %v2101
  %2120 = vmatprep.subr.bf16.mxu0 0
  %2121 = vmatpush1.bf16.msra.mxu0 %v2102
  %2122 = vmatprep.subr.bf16.mxu0 0
  %2123 = vmatpush1.bf16.msra.mxu0 %v2103
  %2124 = vmatprep.subr.bf16.mxu0 0
  %2125 = vmatpush1.bf16.msra.mxu0 %v2104
  %2126 = vmatprep.subr.bf16.mxu0 0
  %2127 = vmatpush1.bf16.msra.mxu0 %v2105
  %2128 = vmatprep.subr.bf16.mxu0 0
  %2129 = vmatpush1.bf16.msra.mxu0 %v2106
  %2130 = vmatprep.subr.bf16.mxu0 0
  %2131 = vmatpush1.bf16.msra.mxu0 %v2107
  %2132 = vmatprep.subr.bf16.mxu0 0
  %2133 = vmatpush1.bf16.msra.mxu0 0
  %2134 = vmatprep.subr.bf16.mxu0 0
  %2135 = vmatpush1.bf16.msra.mxu0 0
  %2136 = vmatprep.subr.bf16.mxu0 0
  %2137 = vmatpush1.bf16.msra.mxu0 0
  %2138 = vmatprep.subr.bf16.mxu0 0
  %2139 = vmatpush1.bf16.msra.mxu0 0
  %2140 = vmatprep.subr.bf16.mxu0 0
  %2141 = vmatpush1.bf16.msra.mxu0 0
  %2142 = vmatprep.subr.bf16.mxu0 0
  %2143 = vmatpush1.bf16.msra.mxu0 0
  %2144 = vmatprep.subr.bf16.mxu0 0
  %2145 = vmatpush1.bf16.msra.mxu0 0
  %2146 = vmatprep.subr.bf16.mxu0 0
  %2147 = vmatpush1.bf16.msra.mxu0 0
  %2148 = vmatprep.mubr.bf16.mxu0 0
  %2149 = vmatmul.mubr.bf16.gmra.mrb[0].mxu0 %v2044
  %v2150 = vpop.f32.mrb[0].mxu0
  %v2151 = vadd.f32 %v2066, %v2150
  %v2152 = vpop.f32.mrb[0].mxu0
  %v2153 = vpop.f32.mrb[0].mxu0
  %v2154 = vpop.f32.mrb[0].mxu0
  %2155 = vdwg.mxu0
  %v2156 = vmax.f32 %v2151, 0.0
  %2157 = vst [vmem:[%s7] sm:$0xff] %v2156
  // Predicated region
  $region30: #{deep_q_turtle_forward.5} parent=0 // pred_check
    _
  $region31: #{deep_q_turtle_forward.5} parent=0 // pred_check_branch
    %2159 = sbr.rel (0) target = $region33
  $region32: #{deep_q_turtle_forward.5} parent=0 // pred_region
    _
  $region33: #{deep_q_turtle_forward.5} parent=0 // pred_fallthru
    _
  // Predicated region
  $region34: #{deep_q_turtle_forward.5} parent=0 // pred_check
    _
  $region35: #{deep_q_turtle_forward.5} parent=0 // pred_check_branch
    %2161 = sbr.rel (0) target = $region37
  $region36: #{deep_q_turtle_forward.5} parent=0 // pred_region
    _
  $region37: #{deep_q_turtle_forward.5} parent=0 // pred_fallthru
    _

</llo_original>
